<compile_context>
chip_gen: v7x
topology: tpu7x:2x2x1
jax: 0.10.0
libtpu: 0.0.40
codegen_flags: <defaults>
</compile_context>

<pallas_src>
import jax
import jax.numpy as jnp
from jax.experimental import pallas as pl
from jax.experimental.pallas import tpu as pltpu

_BF16 = jnp.bfloat16
_F32 = jnp.float32


def fgse_kernel(gammas_ref,                      # SMEM (2,): [gamma_rd, gamma_dr]
                xr_ref, xd_ref,                  # VMEM (1, C, L) bf16
                w_r_ref, b_r_ref,                # (3C, C) bf16, (3C, 1) f32: [q_rd | k_dr | v_dr] from xr
                w_d_ref, b_d_ref,                # (3C, C) bf16, (3C, 1) f32: [k_rd | v_rd | q_dr] from xd
                fc1_wT_ref, fc1_b_ref,           # (2C, C//2) bf16, (1, C//2) f32
                fc2_wT_ref, fc2_b_ref,           # (C//2, 2C) bf16, (1, 2C) f32
                mg_wr_ref, mg_wd_ref, mg_b_ref,  # (C, C) bf16 x2, (C, 1) f32
                out_ref):                        # (2, 1, C, L) f32: [rgb ; hha]
    C = xr_ref.shape[1]
    L = xr_ref.shape[2]

    xr_bf = xr_ref[0]                            # (C, L) bf16
    xd_bf = xd_ref[0]
    xr = xr_bf.astype(_F32)
    xd = xd_bf.astype(_F32)

    # ---- fused 1x1-conv projections: one (3C,C)@(C,L) bf16 matmul per stream ----
    proj_r = jnp.dot(w_r_ref[...], xr_bf, preferred_element_type=_F32) + b_r_ref[...]
    proj_d = jnp.dot(w_d_ref[...], xd_bf, preferred_element_type=_F32) + b_d_ref[...]
    q_rd, k_dr, v_dr = proj_r[:C], proj_r[C:2 * C], proj_r[2 * C:]
    k_rd, v_rd, q_dr = proj_d[:C], proj_d[C:2 * C], proj_d[2 * C:]

    def attention(q, k, v, gamma):
        # q, k, v: (C, L) f32.  scores[i, j] = <q[:, i], k[:, j]>;
        # torch Softmax(dim=1) == softmax over the query index i (axis 0).
        qT = q.T.astype(_BF16)                                            # (L, C), XLU transpose
        s = jnp.dot(qT, k.astype(_BF16), preferred_element_type=_F32)     # (Lq, Lk) f32
        s = s - jnp.max(s, axis=0, keepdims=True)
        e = jnp.exp(s)
        # Fold the per-column softmax reciprocal AND gamma into v before the matmul:
        # out[c, i] = sum_j v[c, j] * gamma / denom[j] * e[i, j]
        inv = pl.reciprocal(jnp.sum(e, axis=0, keepdims=True), approx=True)   # (1, Lk)
        v_scaled = (v * (inv * gamma)).astype(_BF16)                          # (C, Lk)
        return jax.lax.dot_general(v_scaled, e.astype(_BF16),
                                   (((1,), (1,)), ((), ())),
                                   preferred_element_type=_F32)               # (C, Lq)

    out_rd = jnp.maximum(attention(q_rd, k_rd, v_rd, gammas_ref[0]) + xr, 0.0)   # (C, L)
    out_dr = jnp.maximum(attention(q_dr, k_dr, v_dr, gammas_ref[1]) + xd, 0.0)
    out_rd_bf = out_rd.astype(_BF16)
    out_dr_bf = out_dr.astype(_BF16)

    # ---- SE gate: GAP over the lane dim as a ones-row matmul -> (1, C) on lanes ----
    ones_row = jnp.ones((1, L), _BF16)
    inv_l = 1.0 / L
    gap_r = jax.lax.dot_general(ones_row, out_rd_bf, (((1,), (1,)), ((), ())),
                                preferred_element_type=_F32) * inv_l             # (1, C)
    gap_d = jax.lax.dot_general(ones_row, out_dr_bf, (((1,), (1,)), ((), ())),
                                preferred_element_type=_F32) * inv_l
    gap = jnp.concatenate([gap_r, gap_d], axis=1).astype(_BF16)                  # (1, 2C)
    h = jnp.maximum(jnp.dot(gap, fc1_wT_ref[...], preferred_element_type=_F32)
                    + fc1_b_ref[...], 0.0)                                       # (1, C//2)
    s_gate = (jnp.dot(h.astype(_BF16), fc2_wT_ref[...], preferred_element_type=_F32)
              + fc2_b_ref[...])                                                  # (1, 2C)
    s_r = s_gate[:, :C].astype(_BF16)                                            # (1, C)
    s_d = s_gate[:, C:].astype(_BF16)

    # ---- merge 1x1 conv (2C -> C): fold the gate into the weight columns ----
    # mg_w @ [s_r*out_rd ; s_d*out_dr]  ==  (mg_wr * s_r) @ out_rd + (mg_wd * s_d) @ out_dr
    merge = (jnp.dot(mg_wr_ref[...] * s_r, out_rd_bf, preferred_element_type=_F32)
             + jnp.dot(mg_wd_ref[...] * s_d, out_dr_bf, preferred_element_type=_F32)
             + mg_b_ref[...])
    merge = jnp.maximum(merge, 0.0)                                              # (C, L)

    out_ref[0, 0] = jnp.maximum((xr + merge) * 0.5, 0.0).astype(out_ref.dtype)
    out_ref[1, 0] = jnp.maximum((xd + merge) * 0.5, 0.0).astype(out_ref.dtype)


def fgse_forward(xr, xd, params):
    """xr, xd: (B, C, W, H) float32 (NCHW).  Returns (2B, C, W, H) like the torch module."""
    B, C, Wd, Ht = xr.shape
    L = Wd * Ht

    # Lane-dense (B, C, L) views: pure reshape + bf16 cast, NO transposes.
    xr_cl = xr.reshape(B, C, L).astype(_BF16)
    xd_cl = xd.reshape(B, C, L).astype(_BF16)

    def bf(w):
        return jnp.asarray(w, _F32).astype(_BF16)

    # xr-stream projections: query_convrd, key_convdr, value_convdr (stacked along rows)
    w_r = bf(jnp.concatenate([params['wq_rd'], params['wk_dr'], params['wv_dr']], axis=0))   # (3C, C)
    b_r = jnp.concatenate([params['bq_rd'], params['bk_dr'], params['bv_dr']]
                          ).reshape(3 * C, 1).astype(_F32)
    # xd-stream projections: key_convrd, value_convrd, query_convdr
    w_d = bf(jnp.concatenate([params['wk_rd'], params['wv_rd'], params['wq_dr']], axis=0))   # (3C, C)
    b_d = jnp.concatenate([params['bk_rd'], params['bv_rd'], params['bq_dr']]
                          ).reshape(3 * C, 1).astype(_F32)

    fc1_wT = bf(jnp.asarray(params['fc1_w'], _F32).T)          # (2C, C//2)
    fc1_b = params['fc1_b'].reshape(1, C // 2).astype(_F32)
    fc2_wT = bf(jnp.asarray(params['fc2_w'], _F32).T)          # (C//2, 2C)
    fc2_b = params['fc2_b'].reshape(1, 2 * C).astype(_F32)
    mg_w = jnp.asarray(params['mg_w'], _F32)                   # (C, 2C)
    mg_wr = bf(mg_w[:, :C])                                    # (C, C)
    mg_wd = bf(mg_w[:, C:])
    mg_b = params['mg_b'].reshape(C, 1).astype(_F32)

    gammas = jnp.stack([params['gamma_rd'], params['gamma_dr']]).reshape(2).astype(_F32)

    const2 = lambda b: (0, 0)
    batch3 = lambda b: (b, 0, 0)

    # Rough VMEM budget: projections + score/exp matrices + out_* buffers + double-buffered
    # I/O blocks + weights.  Capped at 64 MiB so the request is valid on v7x too.
    est = (2 * 3 * C * L * 4 + 2 * L * L * 4 + 6 * C * L * 4
           + 2 * 2 * C * L * 2 + 2 * 2 * C * L * 4
           + 4 * (3 * C * C * 2) + 4 * (2 * C * C * 2 + 2 * C * (C // 2) * 2))
    vmem_limit = int(min(64 * 2 ** 20, max(32 * 2 ** 20, 2 * est)))

    out = pl.pallas_call(
        fgse_kernel,
        out_shape=jax.ShapeDtypeStruct((2, B, C, L), _F32),
        grid=(B,),
        in_specs=[
            pl.BlockSpec(memory_space=pltpu.MemorySpace.SMEM),   # gammas (scalars)
            pl.BlockSpec((1, C, L), batch3),                     # xr  (bf16, lane-dense on L)
            pl.BlockSpec((1, C, L), batch3),                     # xd
            pl.BlockSpec((3 * C, C), const2),                    # w_r
            pl.BlockSpec((3 * C, 1), const2),                    # b_r
            pl.BlockSpec((3 * C, C), const2),                    # w_d
            pl.BlockSpec((3 * C, 1), const2),                    # b_d
            pl.BlockSpec((2 * C, C // 2), const2),               # fc1_wT
            pl.BlockSpec((1, C // 2), const2),                   # fc1_b
            pl.BlockSpec((C // 2, 2 * C), const2),               # fc2_wT
            pl.BlockSpec((1, 2 * C), const2),                    # fc2_b
            pl.BlockSpec((C, C), const2),                        # mg_wr
            pl.BlockSpec((C, C), const2),                        # mg_wd
            pl.BlockSpec((C, 1), const2),                        # mg_b
        ],
        out_specs=pl.BlockSpec((2, 1, C, L), lambda b: (0, b, 0, 0)),
        compiler_params=pltpu.CompilerParams(
            dimension_semantics=("parallel",),                   # megacore on v7x
            vmem_limit_bytes=vmem_limit),
    )(gammas, xr_cl, xd_cl, w_r, b_r, w_d, b_d,
      fc1_wT, fc1_b, fc2_wT, fc2_b, mg_wr, mg_wd, mg_b)

    # (2, B, C, L) -> (2B, C, W, H): free reshape (replaces torch.cat along batch).
    return out.reshape(2 * B, C, Wd, Ht)


def fgse_reference(xr, xd, p):
    """Pure-JAX f32 reference mirroring the PyTorch forward exactly (sr_ratio=1)."""
    B, C, Wd, Ht = xr.shape
    L = Wd * Ht
    hp = jax.lax.Precision.HIGHEST

    def conv1x1(x, w, b):                       # x:(B,Cin,...), w:(Cout,Cin), b:(Cout,)
        y = jnp.einsum('oc,bc...->bo...', w, x, precision=hp)
        return y + b.reshape((1, -1) + (1,) * (x.ndim - 2))

    q_r = conv1x1(xr, p['wq_rd'], p['bq_rd']).reshape(B, C, L).transpose(0, 2, 1)
    k_d = conv1x1(xd, p['wk_rd'], p['bk_rd']).reshape(B, C, L)
    v_d = conv1x1(xd, p['wv_rd'], p['bv_rd']).reshape(B, C, L)
    att_rd = jax.nn.softmax(jnp.einsum('blc,bcm->blm', q_r, k_d, precision=hp), axis=1)
    out_rd = jnp.einsum('bcm,blm->bcl', v_d, att_rd, precision=hp).reshape(B, C, Wd, Ht)

    q_d = conv1x1(xd, p['wq_dr'], p['bq_dr']).reshape(B, C, L).transpose(0, 2, 1)
    k_r = conv1x1(xr, p['wk_dr'], p['bk_dr']).reshape(B, C, L)
    v_r = conv1x1(xr, p['wv_dr'], p['bv_dr']).reshape(B, C, L)
    att_dr = jax.nn.softmax(jnp.einsum('blc,bcm->blm', q_d, k_r, precision=hp), axis=1)
    out_dr = jnp.einsum('bcm,blm->bcl', v_r, att_dr, precision=hp).reshape(B, C, Wd, Ht)

    out_rd = jnp.maximum(p['gamma_rd'] * out_rd + xr, 0.0)
    out_dr = jnp.maximum(p['gamma_dr'] * out_dr + xd, 0.0)

    rgb_gap = jnp.mean(out_rd, axis=(2, 3), keepdims=True)
    hha_gap = jnp.mean(out_dr, axis=(2, 3), keepdims=True)
    stack = jnp.concatenate([rgb_gap, hha_gap], axis=1)
    stack = jnp.maximum(conv1x1(stack, p['fc1_w'], p['fc1_b']), 0.0)
    stack = conv1x1(stack, p['fc2_w'], p['fc2_b'])

    rgb_ = stack[:, :C] * out_rd
    hha_ = stack[:, C:] * out_dr
    merge = jnp.maximum(conv1x1(jnp.concatenate([rgb_, hha_], axis=1),
                                p['mg_w'], p['mg_b']), 0.0)

    rgb_out = jnp.maximum((xr + merge) * 0.5, 0.0)
    hha_out = jnp.maximum((xd + merge) * 0.5, 0.0)
    return jnp.concatenate([rgb_out, hha_out], axis=0)


if __name__ == "__main__":
    # Small but lane-dense config: L = W*H = 256 lanes, C = 128 sublanes.
    B, C, Wd, Ht = 2, 128, 16, 16

    key = jax.random.PRNGKey(0)
    ks = list(jax.random.split(key, 24))

    def u(k, shape, fan_in):
        bound = 1.0 / (fan_in ** 0.5)
        return jax.random.uniform(k, shape, jnp.float32, -bound, bound)

    params = {
        # 1x1 conv weights stored as (Cout, Cin); biases (Cout,)   (PyTorch-like init)
        'wq_rd': u(ks[0], (C, C), C), 'bq_rd': u(ks[1], (C,), C),
        'wk_rd': u(ks[2], (C, C), C), 'bk_rd': u(ks[3], (C,), C),
        'wv_rd': u(ks[4], (C, C), C), 'bv_rd': u(ks[5], (C,), C),
        'wq_dr': u(ks[6], (C, C), C), 'bq_dr': u(ks[7], (C,), C),
        'wk_dr': u(ks[8], (C, C), C), 'bk_dr': u(ks[9], (C,), C),
        'wv_dr': u(ks[10], (C, C), C), 'bv_dr': u(ks[11], (C,), C),
        'fc1_w': u(ks[12], (C // 2, 2 * C), 2 * C), 'fc1_b': u(ks[13], (C // 2,), 2 * C),
        'fc2_w': u(ks[14], (2 * C, C // 2), C // 2), 'fc2_b': u(ks[15], (2 * C,), C // 2),
        'mg_w': u(ks[16], (C, 2 * C), 2 * C), 'mg_b': u(ks[17], (C,), 2 * C),
        # the module initializes these to 0; use non-zero values so the attention
        # path actually contributes to the checked output.
        'gamma_rd': jnp.float32(0.5),
        'gamma_dr': jnp.float32(0.25),
    }

    xr = jax.random.normal(ks[18], (B, C, Wd, Ht), jnp.float32)
    xd = jax.random.normal(ks[19], (B, C, Wd, Ht), jnp.float32)

    out = jax.jit(fgse_forward)(xr, xd, params)
    out = jax.block_until_ready(out)

    ref = fgse_reference(xr, xd, params)
    assert out.shape == (2 * B, C, Wd, Ht), out.shape
    err = float(jnp.max(jnp.abs(out - ref)))
    scale = float(jnp.max(jnp.abs(ref))) + 1.0
    # bf16 MXU operands + approx softmax reciprocal vs an f32 reference: 2e-2 relative
    # still catches any structural bug (wrong softmax axis / transposed attention ~ O(1)).
    assert err / scale < 2e-2, f"mismatch vs reference: abs {err}, rel {err / scale}"
    print("KERNEL_OK")
</pallas_src>

<mosaic_0001>
module attributes {stable_mosaic.version = 11 : i64} {
  func.func @fgse_kernel(%arg0: i32, %arg1: memref<2xf32, #tpu.memory_space<smem>>, %arg2: memref<1x128x256xbf16, #tpu.memory_space<vmem>>, %arg3: memref<1x128x256xbf16, #tpu.memory_space<vmem>>, %arg4: memref<384x128xbf16, #tpu.memory_space<vmem>>, %arg5: memref<384x1xf32, #tpu.memory_space<vmem>>, %arg6: memref<384x128xbf16, #tpu.memory_space<vmem>>, %arg7: memref<384x1xf32, #tpu.memory_space<vmem>>, %arg8: memref<256x64xbf16, #tpu.memory_space<vmem>>, %arg9: memref<1x64xf32, #tpu.memory_space<vmem>>, %arg10: memref<64x256xbf16, #tpu.memory_space<vmem>>, %arg11: memref<1x256xf32, #tpu.memory_space<vmem>>, %arg12: memref<128x128xbf16, #tpu.memory_space<vmem>>, %arg13: memref<128x128xbf16, #tpu.memory_space<vmem>>, %arg14: memref<128x1xf32, #tpu.memory_space<vmem>>, %arg15: memref<2x1x128x256xf32, #tpu.memory_space<vmem>>) attributes {dimension_semantics = [#tpu.dimension_semantics<parallel>], iteration_bounds = array<i64: 2>, scalar_prefetch = 0 : i64, scratch_operands = 0 : i64, tpu.core_type = #tpu.core_type<tc>, window_params = [{transform_indices = @transform_0, window_bounds = array<i64: 2>}, {transform_indices = @transform_1, window_bounds = array<i64: 1, 128, 256>}, {transform_indices = @transform_2, window_bounds = array<i64: 1, 128, 256>}, {pipeline_mode = #tpu.pipeline_mode<synchronous>, transform_indices = @transform_3, window_bounds = array<i64: 384, 128>}, {pipeline_mode = #tpu.pipeline_mode<synchronous>, transform_indices = @transform_4, window_bounds = array<i64: 384, 1>}, {pipeline_mode = #tpu.pipeline_mode<synchronous>, transform_indices = @transform_5, window_bounds = array<i64: 384, 128>}, {pipeline_mode = #tpu.pipeline_mode<synchronous>, transform_indices = @transform_6, window_bounds = array<i64: 384, 1>}, {pipeline_mode = #tpu.pipeline_mode<synchronous>, transform_indices = @transform_7, window_bounds = array<i64: 256, 64>}, {pipeline_mode = #tpu.pipeline_mode<synchronous>, transform_indices = @transform_8, window_bounds = array<i64: 1, 64>}, {pipeline_mode = #tpu.pipeline_mode<synchronous>, transform_indices = @transform_9, window_bounds = array<i64: 64, 256>}, {pipeline_mode = #tpu.pipeline_mode<synchronous>, transform_indices = @transform_10, window_bounds = array<i64: 1, 256>}, {pipeline_mode = #tpu.pipeline_mode<synchronous>, transform_indices = @transform_11, window_bounds = array<i64: 128, 128>}, {pipeline_mode = #tpu.pipeline_mode<synchronous>, transform_indices = @transform_12, window_bounds = array<i64: 128, 128>}, {pipeline_mode = #tpu.pipeline_mode<synchronous>, transform_indices = @transform_13, window_bounds = array<i64: 128, 1>}, {transform_indices = @transform_14, window_bounds = array<i64: 2, 1, 128, 256>}]} {
    %c0 = arith.constant 0 : index
    %c0_0 = arith.constant 0 : index
    %c0_1 = arith.constant 0 : index
    %0 = vector.load %arg2[%c0, %c0_0, %c0_1] : memref<1x128x256xbf16, #tpu.memory_space<vmem>>, vector<1x128x256xbf16>
    %1 = vector.shape_cast %0 : vector<1x128x256xbf16> to vector<128x256xbf16>
    %c0_2 = arith.constant 0 : index
    %c0_3 = arith.constant 0 : index
    %c0_4 = arith.constant 0 : index
    %2 = vector.load %arg3[%c0_2, %c0_3, %c0_4] : memref<1x128x256xbf16, #tpu.memory_space<vmem>>, vector<1x128x256xbf16>
    %3 = vector.shape_cast %2 : vector<1x128x256xbf16> to vector<128x256xbf16>
    %4 = arith.extf %1 : vector<128x256xbf16> to vector<128x256xf32>
    %5 = arith.extf %3 : vector<128x256xbf16> to vector<128x256xf32>
    %c0_5 = arith.constant 0 : index
    %c0_6 = arith.constant 0 : index
    %6 = vector.load %arg4[%c0_5, %c0_6] : memref<384x128xbf16, #tpu.memory_space<vmem>>, vector<384x128xbf16>
    %cst = arith.constant dense<0.000000e+00> : vector<384x256xf32>
    %7 = tpu.matmul %6, %1, %cst {dimension_numbers = #tpu.dot_dimension_numbers<[1], [0], [0], [1], [0, 0, 1, 1], [], []>} : vector<384x128xbf16>, vector<128x256xbf16>, vector<384x256xf32> -> vector<384x256xf32>
    %c0_7 = arith.constant 0 : index
    %c0_8 = arith.constant 0 : index
    %8 = vector.load %arg5[%c0_7, %c0_8] : memref<384x1xf32, #tpu.memory_space<vmem>>, vector<384x1xf32>
    %9 = vector.broadcast %8 : vector<384x1xf32> to vector<384x256xf32>
    %10 = arith.addf %7, %9 : vector<384x256xf32>
    %c0_9 = arith.constant 0 : index
    %c0_10 = arith.constant 0 : index
    %11 = vector.load %arg6[%c0_9, %c0_10] : memref<384x128xbf16, #tpu.memory_space<vmem>>, vector<384x128xbf16>
    %cst_11 = arith.constant dense<0.000000e+00> : vector<384x256xf32>
    %12 = tpu.matmul %11, %3, %cst_11 {dimension_numbers = #tpu.dot_dimension_numbers<[1], [0], [0], [1], [0, 0, 1, 1], [], []>} : vector<384x128xbf16>, vector<128x256xbf16>, vector<384x256xf32> -> vector<384x256xf32>
    %c0_12 = arith.constant 0 : index
    %c0_13 = arith.constant 0 : index
    %13 = vector.load %arg7[%c0_12, %c0_13] : memref<384x1xf32, #tpu.memory_space<vmem>>, vector<384x1xf32>
    %14 = vector.broadcast %13 : vector<384x1xf32> to vector<384x256xf32>
    %15 = arith.addf %12, %14 : vector<384x256xf32>
    %16 = vector.extract_strided_slice %10 {offsets = [0, 0], sizes = [128, 256], strides = [1, 1]} : vector<384x256xf32> to vector<128x256xf32>
    %17 = vector.extract_strided_slice %10 {offsets = [128, 0], sizes = [128, 256], strides = [1, 1]} : vector<384x256xf32> to vector<128x256xf32>
    %18 = vector.extract_strided_slice %10 {offsets = [256, 0], sizes = [128, 256], strides = [1, 1]} : vector<384x256xf32> to vector<128x256xf32>
    %19 = vector.extract_strided_slice %15 {offsets = [0, 0], sizes = [128, 256], strides = [1, 1]} : vector<384x256xf32> to vector<128x256xf32>
    %20 = vector.extract_strided_slice %15 {offsets = [128, 0], sizes = [128, 256], strides = [1, 1]} : vector<384x256xf32> to vector<128x256xf32>
    %21 = vector.extract_strided_slice %15 {offsets = [256, 0], sizes = [128, 256], strides = [1, 1]} : vector<384x256xf32> to vector<128x256xf32>
    %c0_14 = arith.constant 0 : index
    %22 = memref.load %arg1[%c0_14] : memref<2xf32, #tpu.memory_space<smem>>
    %23 = tpu.transpose %16, [1, 0] : vector<128x256xf32> -> vector<256x128xf32>
    %24 = arith.truncf %23 : vector<256x128xf32> to vector<256x128xbf16>
    %25 = arith.truncf %19 : vector<128x256xf32> to vector<128x256xbf16>
    %cst_15 = arith.constant dense<0.000000e+00> : vector<256x256xf32>
    %26 = tpu.matmul %24, %25, %cst_15 {dimension_numbers = #tpu.dot_dimension_numbers<[1], [0], [0], [1], [0, 0, 1, 1], [], []>} : vector<256x128xbf16>, vector<128x256xbf16>, vector<256x256xf32> -> vector<256x256xf32>
    %cst_16 = arith.constant dense<0xFF800000> : vector<256xf32>
    %27 = vector.multi_reduction <maximumf>, %26, %cst_16 [0] : vector<256x256xf32> to vector<256xf32>
    %28 = vector.shape_cast %27 : vector<256xf32> to vector<1x256xf32>
    %29 = vector.broadcast %28 : vector<1x256xf32> to vector<256x256xf32>
    %30 = arith.subf %26, %29 : vector<256x256xf32>
    %31 = math.exp %30 : vector<256x256xf32>
    %cst_17 = arith.constant dense<0.000000e+00> : vector<256xf32>
    %32 = vector.multi_reduction <add>, %31, %cst_17 [0] : vector<256x256xf32> to vector<256xf32>
    %33 = vector.shape_cast %32 : vector<256xf32> to vector<1x256xf32>
    %34 = tpu.reciprocal %33 {approx = true} : vector<1x256xf32> -> vector<1x256xf32>
    %35 = vector.broadcast %22 : f32 to vector<1x256xf32>
    %36 = arith.mulf %34, %35 : vector<1x256xf32>
    %37 = vector.broadcast %36 : vector<1x256xf32> to vector<128x256xf32>
    %38 = arith.mulf %20, %37 : vector<128x256xf32>
    %39 = arith.truncf %38 : vector<128x256xf32> to vector<128x256xbf16>
    %40 = arith.truncf %31 : vector<256x256xf32> to vector<256x256xbf16>
    %cst_18 = arith.constant dense<0.000000e+00> : vector<128x256xf32>
    %41 = tpu.matmul %39, %40, %cst_18 {dimension_numbers = #tpu.dot_dimension_numbers<[1], [1], [0], [0], [0, 0, 1, 0], [], []>} : vector<128x256xbf16>, vector<256x256xbf16>, vector<128x256xf32> -> vector<128x256xf32>
    %42 = arith.addf %41, %4 : vector<128x256xf32>
    %cst_19 = arith.constant 0.000000e+00 : f32
    %43 = vector.broadcast %cst_19 : f32 to vector<128x256xf32>
    %44 = arith.maximumf %42, %43 : vector<128x256xf32>
    %c1 = arith.constant 1 : index
    %45 = memref.load %arg1[%c1] : memref<2xf32, #tpu.memory_space<smem>>
    %46 = tpu.transpose %21, [1, 0] : vector<128x256xf32> -> vector<256x128xf32>
    %47 = arith.truncf %46 : vector<256x128xf32> to vector<256x128xbf16>
    %48 = arith.truncf %17 : vector<128x256xf32> to vector<128x256xbf16>
    %cst_20 = arith.constant dense<0.000000e+00> : vector<256x256xf32>
    %49 = tpu.matmul %47, %48, %cst_20 {dimension_numbers = #tpu.dot_dimension_numbers<[1], [0], [0], [1], [0, 0, 1, 1], [], []>} : vector<256x128xbf16>, vector<128x256xbf16>, vector<256x256xf32> -> vector<256x256xf32>
    %cst_21 = arith.constant dense<0xFF800000> : vector<256xf32>
    %50 = vector.multi_reduction <maximumf>, %49, %cst_21 [0] : vector<256x256xf32> to vector<256xf32>
    %51 = vector.shape_cast %50 : vector<256xf32> to vector<1x256xf32>
    %52 = vector.broadcast %51 : vector<1x256xf32> to vector<256x256xf32>
    %53 = arith.subf %49, %52 : vector<256x256xf32>
    %54 = math.exp %53 : vector<256x256xf32>
    %cst_22 = arith.constant dense<0.000000e+00> : vector<256xf32>
    %55 = vector.multi_reduction <add>, %54, %cst_22 [0] : vector<256x256xf32> to vector<256xf32>
    %56 = vector.shape_cast %55 : vector<256xf32> to vector<1x256xf32>
    %57 = tpu.reciprocal %56 {approx = true} : vector<1x256xf32> -> vector<1x256xf32>
    %58 = vector.broadcast %45 : f32 to vector<1x256xf32>
    %59 = arith.mulf %57, %58 : vector<1x256xf32>
    %60 = vector.broadcast %59 : vector<1x256xf32> to vector<128x256xf32>
    %61 = arith.mulf %18, %60 : vector<128x256xf32>
    %62 = arith.truncf %61 : vector<128x256xf32> to vector<128x256xbf16>
    %63 = arith.truncf %54 : vector<256x256xf32> to vector<256x256xbf16>
    %cst_23 = arith.constant dense<0.000000e+00> : vector<128x256xf32>
    %64 = tpu.matmul %62, %63, %cst_23 {dimension_numbers = #tpu.dot_dimension_numbers<[1], [1], [0], [0], [0, 0, 1, 0], [], []>} : vector<128x256xbf16>, vector<256x256xbf16>, vector<128x256xf32> -> vector<128x256xf32>
    %65 = arith.addf %64, %5 : vector<128x256xf32>
    %cst_24 = arith.constant 0.000000e+00 : f32
    %66 = vector.broadcast %cst_24 : f32 to vector<128x256xf32>
    %67 = arith.maximumf %65, %66 : vector<128x256xf32>
    %68 = arith.truncf %44 : vector<128x256xf32> to vector<128x256xbf16>
    %69 = arith.truncf %67 : vector<128x256xf32> to vector<128x256xbf16>
    %cst_25 = arith.constant 1.000000e+00 : bf16
    %70 = vector.broadcast %cst_25 : bf16 to vector<1x256xbf16>
    %cst_26 = arith.constant dense<0.000000e+00> : vector<1x128xf32>
    %71 = tpu.matmul %70, %68, %cst_26 {dimension_numbers = #tpu.dot_dimension_numbers<[1], [1], [0], [0], [0, 0, 1, 0], [], []>} : vector<1x256xbf16>, vector<128x256xbf16>, vector<1x128xf32> -> vector<1x128xf32>
    %cst_27 = arith.constant 3.906250e-03 : f32
    %72 = vector.broadcast %cst_27 : f32 to vector<1x128xf32>
    %73 = arith.mulf %71, %72 : vector<1x128xf32>
    %cst_28 = arith.constant dense<0.000000e+00> : vector<1x128xf32>
    %74 = tpu.matmul %70, %69, %cst_28 {dimension_numbers = #tpu.dot_dimension_numbers<[1], [1], [0], [0], [0, 0, 1, 0], [], []>} : vector<1x256xbf16>, vector<128x256xbf16>, vector<1x128xf32> -> vector<1x128xf32>
    %cst_29 = arith.constant 3.906250e-03 : f32
    %75 = vector.broadcast %cst_29 : f32 to vector<1x128xf32>
    %76 = arith.mulf %74, %75 : vector<1x128xf32>
    %77 = tpu.concatenate %73, %76 in 1 : vector<1x128xf32>, vector<1x128xf32> -> vector<1x256xf32>
    %78 = arith.truncf %77 : vector<1x256xf32> to vector<1x256xbf16>
    %c0_30 = arith.constant 0 : index
    %c0_31 = arith.constant 0 : index
    %79 = vector.load %arg8[%c0_30, %c0_31] : memref<256x64xbf16, #tpu.memory_space<vmem>>, vector<256x64xbf16>
    %cst_32 = arith.constant dense<0.000000e+00> : vector<1x64xf32>
    %80 = tpu.matmul %78, %79, %cst_32 {dimension_numbers = #tpu.dot_dimension_numbers<[1], [0], [0], [1], [0, 0, 1, 1], [], []>} : vector<1x256xbf16>, vector<256x64xbf16>, vector<1x64xf32> -> vector<1x64xf32>
    %c0_33 = arith.constant 0 : index
    %c0_34 = arith.constant 0 : index
    %81 = vector.load %arg9[%c0_33, %c0_34] : memref<1x64xf32, #tpu.memory_space<vmem>>, vector<1x64xf32>
    %82 = arith.addf %80, %81 : vector<1x64xf32>
    %cst_35 = arith.constant 0.000000e+00 : f32
    %83 = vector.broadcast %cst_35 : f32 to vector<1x64xf32>
    %84 = arith.maximumf %82, %83 : vector<1x64xf32>
    %85 = arith.truncf %84 : vector<1x64xf32> to vector<1x64xbf16>
    %c0_36 = arith.constant 0 : index
    %c0_37 = arith.constant 0 : index
    %86 = vector.load %arg10[%c0_36, %c0_37] : memref<64x256xbf16, #tpu.memory_space<vmem>>, vector<64x256xbf16>
    %cst_38 = arith.constant dense<0.000000e+00> : vector<1x256xf32>
    %87 = tpu.matmul %85, %86, %cst_38 {dimension_numbers = #tpu.dot_dimension_numbers<[1], [0], [0], [1], [0, 0, 1, 1], [], []>} : vector<1x64xbf16>, vector<64x256xbf16>, vector<1x256xf32> -> vector<1x256xf32>
    %c0_39 = arith.constant 0 : index
    %c0_40 = arith.constant 0 : index
    %88 = vector.load %arg11[%c0_39, %c0_40] : memref<1x256xf32, #tpu.memory_space<vmem>>, vector<1x256xf32>
    %89 = arith.addf %87, %88 : vector<1x256xf32>
    %90 = vector.extract_strided_slice %89 {offsets = [0, 0], sizes = [1, 128], strides = [1, 1]} : vector<1x256xf32> to vector<1x128xf32>
    %91 = arith.truncf %90 : vector<1x128xf32> to vector<1x128xbf16>
    %92 = vector.extract_strided_slice %89 {offsets = [0, 128], sizes = [1, 128], strides = [1, 1]} : vector<1x256xf32> to vector<1x128xf32>
    %93 = arith.truncf %92 : vector<1x128xf32> to vector<1x128xbf16>
    %c0_41 = arith.constant 0 : index
    %c0_42 = arith.constant 0 : index
    %94 = vector.load %arg12[%c0_41, %c0_42] : memref<128x128xbf16, #tpu.memory_space<vmem>>, vector<128x128xbf16>
    %95 = vector.broadcast %91 : vector<1x128xbf16> to vector<128x128xbf16>
    %96 = arith.mulf %94, %95 : vector<128x128xbf16>
    %cst_43 = arith.constant dense<0.000000e+00> : vector<128x256xf32>
    %97 = tpu.matmul %96, %68, %cst_43 {dimension_numbers = #tpu.dot_dimension_numbers<[1], [0], [0], [1], [0, 0, 1, 1], [], []>} : vector<128x128xbf16>, vector<128x256xbf16>, vector<128x256xf32> -> vector<128x256xf32>
    %c0_44 = arith.constant 0 : index
    %c0_45 = arith.constant 0 : index
    %98 = vector.load %arg13[%c0_44, %c0_45] : memref<128x128xbf16, #tpu.memory_space<vmem>>, vector<128x128xbf16>
    %99 = vector.broadcast %93 : vector<1x128xbf16> to vector<128x128xbf16>
    %100 = arith.mulf %98, %99 : vector<128x128xbf16>
    %cst_46 = arith.constant dense<0.000000e+00> : vector<128x256xf32>
    %101 = tpu.matmul %100, %69, %cst_46 {dimension_numbers = #tpu.dot_dimension_numbers<[1], [0], [0], [1], [0, 0, 1, 1], [], []>} : vector<128x128xbf16>, vector<128x256xbf16>, vector<128x256xf32> -> vector<128x256xf32>
    %102 = arith.addf %97, %101 : vector<128x256xf32>
    %c0_47 = arith.constant 0 : index
    %c0_48 = arith.constant 0 : index
    %103 = vector.load %arg14[%c0_47, %c0_48] : memref<128x1xf32, #tpu.memory_space<vmem>>, vector<128x1xf32>
    %104 = vector.broadcast %103 : vector<128x1xf32> to vector<128x256xf32>
    %105 = arith.addf %102, %104 : vector<128x256xf32>
    %cst_49 = arith.constant 0.000000e+00 : f32
    %106 = vector.broadcast %cst_49 : f32 to vector<128x256xf32>
    %107 = arith.maximumf %105, %106 : vector<128x256xf32>
    %108 = arith.addf %4, %107 : vector<128x256xf32>
    %cst_50 = arith.constant 5.000000e-01 : f32
    %109 = vector.broadcast %cst_50 : f32 to vector<128x256xf32>
    %110 = arith.mulf %108, %109 : vector<128x256xf32>
    %cst_51 = arith.constant 0.000000e+00 : f32
    %111 = vector.broadcast %cst_51 : f32 to vector<128x256xf32>
    %112 = arith.maximumf %110, %111 : vector<128x256xf32>
    %c0_52 = arith.constant 0 : index
    %c0_53 = arith.constant 0 : index
    %c0_54 = arith.constant 0 : index
    %c0_55 = arith.constant 0 : index
    %113 = vector.load %arg15[%c0_52, %c0_53, %c0_54, %c0_55] : memref<2x1x128x256xf32, #tpu.memory_space<vmem>>, vector<1x1x128x256xf32>
    %114 = vector.shape_cast %113 : vector<1x1x128x256xf32> to vector<128x256xf32>
    %115 = vector.shape_cast %112 : vector<128x256xf32> to vector<1x1x128x256xf32>
    tpu.vector_store %arg15[%c0_52, %c0_53, %c0_54, %c0_55], %115 {strides = array<i32>} : memref<2x1x128x256xf32, #tpu.memory_space<vmem>>, vector<1x1x128x256xf32>,
    %116 = arith.addf %5, %107 : vector<128x256xf32>
    %cst_56 = arith.constant 5.000000e-01 : f32
    %117 = vector.broadcast %cst_56 : f32 to vector<128x256xf32>
    %118 = arith.mulf %116, %117 : vector<128x256xf32>
    %cst_57 = arith.constant 0.000000e+00 : f32
    %119 = vector.broadcast %cst_57 : f32 to vector<128x256xf32>
    %120 = arith.maximumf %118, %119 : vector<128x256xf32>
    %c1_58 = arith.constant 1 : index
    %c0_59 = arith.constant 0 : index
    %c0_60 = arith.constant 0 : index
    %c0_61 = arith.constant 0 : index
    %121 = vector.load %arg15[%c1_58, %c0_59, %c0_60, %c0_61] : memref<2x1x128x256xf32, #tpu.memory_space<vmem>>, vector<1x1x128x256xf32>
    %122 = vector.shape_cast %121 : vector<1x1x128x256xf32> to vector<128x256xf32>
    %123 = vector.shape_cast %120 : vector<128x256xf32> to vector<1x1x128x256xf32>
    tpu.vector_store %arg15[%c1_58, %c0_59, %c0_60, %c0_61], %123 {strides = array<i32>} : memref<2x1x128x256xf32, #tpu.memory_space<vmem>>, vector<1x1x128x256xf32>,
    return
  }
  func.func @transform_0(%arg0: i32) -> i32 {
    %c0_i32 = arith.constant 0 : i32
    %c0_i32_0 = arith.constant 0 : i32
    return %c0_i32 : i32
  }
  func.func @transform_1(%arg0: i32) -> (i32, i32, i32) {
    %c0_i32 = arith.constant 0 : i32
    %c0_i32_0 = arith.constant 0 : i32
    %c0_i32_1 = arith.constant 0 : i32
    return %arg0, %c0_i32, %c0_i32_0 : i32, i32, i32
  }
  func.func @transform_2(%arg0: i32) -> (i32, i32, i32) {
    %c0_i32 = arith.constant 0 : i32
    %c0_i32_0 = arith.constant 0 : i32
    %c0_i32_1 = arith.constant 0 : i32
    return %arg0, %c0_i32, %c0_i32_0 : i32, i32, i32
  }
  func.func @transform_3(%arg0: i32) -> (i32, i32) {
    %c0_i32 = arith.constant 0 : i32
    %c0_i32_0 = arith.constant 0 : i32
    %c0_i32_1 = arith.constant 0 : i32
    return %c0_i32, %c0_i32_0 : i32, i32
  }
  func.func @transform_4(%arg0: i32) -> (i32, i32) {
    %c0_i32 = arith.constant 0 : i32
    %c0_i32_0 = arith.constant 0 : i32
    %c0_i32_1 = arith.constant 0 : i32
    return %c0_i32, %c0_i32_0 : i32, i32
  }
  func.func @transform_5(%arg0: i32) -> (i32, i32) {
    %c0_i32 = arith.constant 0 : i32
    %c0_i32_0 = arith.constant 0 : i32
    %c0_i32_1 = arith.constant 0 : i32
    return %c0_i32, %c0_i32_0 : i32, i32
  }
  func.func @transform_6(%arg0: i32) -> (i32, i32) {
    %c0_i32 = arith.constant 0 : i32
    %c0_i32_0 = arith.constant 0 : i32
    %c0_i32_1 = arith.constant 0 : i32
    return %c0_i32, %c0_i32_0 : i32, i32
  }
  func.func @transform_7(%arg0: i32) -> (i32, i32) {
    %c0_i32 = arith.constant 0 : i32
    %c0_i32_0 = arith.constant 0 : i32
    %c0_i32_1 = arith.constant 0 : i32
    return %c0_i32, %c0_i32_0 : i32, i32
  }
  func.func @transform_8(%arg0: i32) -> (i32, i32) {
    %c0_i32 = arith.constant 0 : i32
    %c0_i32_0 = arith.constant 0 : i32
    %c0_i32_1 = arith.constant 0 : i32
    return %c0_i32, %c0_i32_0 : i32, i32
  }
  func.func @transform_9(%arg0: i32) -> (i32, i32) {
    %c0_i32 = arith.constant 0 : i32
    %c0_i32_0 = arith.constant 0 : i32
    %c0_i32_1 = arith.constant 0 : i32
    return %c0_i32, %c0_i32_0 : i32, i32
  }
  func.func @transform_10(%arg0: i32) -> (i32, i32) {
    %c0_i32 = arith.constant 0 : i32
    %c0_i32_0 = arith.constant 0 : i32
    %c0_i32_1 = arith.constant 0 : i32
    return %c0_i32, %c0_i32_0 : i32, i32
  }
  func.func @transform_11(%arg0: i32) -> (i32, i32) {
    %c0_i32 = arith.constant 0 : i32
    %c0_i32_0 = arith.constant 0 : i32
    %c0_i32_1 = arith.constant 0 : i32
    return %c0_i32, %c0_i32_0 : i32, i32
  }
  func.func @transform_12(%arg0: i32) -> (i32, i32) {
    %c0_i32 = arith.constant 0 : i32
    %c0_i32_0 = arith.constant 0 : i32
    %c0_i32_1 = arith.constant 0 : i32
    return %c0_i32, %c0_i32_0 : i32, i32
  }
  func.func @transform_13(%arg0: i32) -> (i32, i32) {
    %c0_i32 = arith.constant 0 : i32
    %c0_i32_0 = arith.constant 0 : i32
    %c0_i32_1 = arith.constant 0 : i32
    return %c0_i32, %c0_i32_0 : i32, i32
  }
  func.func @transform_14(%arg0: i32) -> (i32, i32, i32, i32) {
    %c0_i32 = arith.constant 0 : i32
    %c0_i32_0 = arith.constant 0 : i32
    %c0_i32_1 = arith.constant 0 : i32
    %c0_i32_2 = arith.constant 0 : i32
    return %c0_i32, %arg0, %c0_i32_0, %c0_i32_1 : i32, i32, i32, i32
  }
}

</mosaic_0001>

<llo_original>
// kernel: fgse_forward.1
$region0: #{fgse_forward.1}
  #allocation0 [shape = 'u32[]', space=smem, size = 0x4, offset = 0x4, fixed_abs, tag = 'smem constant byte address 0x4 - core index']
  #allocation1 [shape = 'u32[144,128]{1,0:T(1,128)}', space=vmem, size = 0x12000, scoped, tag = 'internal scratch']
  %s0 = inlined_call_operand.vmem [shape: f32[2], index: 0, kind: input, shape index: {}]
  %s1 = inlined_call_operand.vmem [shape: bf16[2,128,256], index: 1, kind: input, shape index: {}]
  %s2 = inlined_call_operand.vmem [shape: bf16[2,128,256], index: 2, kind: input, shape index: {}]
  %s3 = inlined_call_operand.vmem [shape: bf16[384,128], index: 3, kind: input, shape index: {}]
  %s4 = inlined_call_operand.vmem [shape: f32[384,1], index: 4, kind: input, shape index: {}]
  %s5 = inlined_call_operand.vmem [shape: bf16[384,128], index: 5, kind: input, shape index: {}]
  %s6 = inlined_call_operand.vmem [shape: f32[384,1], index: 6, kind: input, shape index: {}]
  %s7 = inlined_call_operand.vmem [shape: bf16[256,64], index: 7, kind: input, shape index: {}]
  %s8 = inlined_call_operand.vmem [shape: f32[1,64], index: 8, kind: input, shape index: {}]
  %s9 = inlined_call_operand.vmem [shape: bf16[64,256], index: 9, kind: input, shape index: {}]
  %s10 = inlined_call_operand.vmem [shape: f32[1,256], index: 10, kind: input, shape index: {}]
  %s11 = inlined_call_operand.vmem [shape: bf16[128,128], index: 11, kind: input, shape index: {}]
  %s12 = inlined_call_operand.vmem [shape: bf16[128,128], index: 12, kind: input, shape index: {}]
  %s13 = inlined_call_operand.vmem [shape: f32[128,1], index: 13, kind: input, shape index: {}]
  %s14 = inlined_call_operand.vmem [shape: f32[2,2,128,256], index: 14, kind: output, shape index: {}]
  %s15 = sld [smem:[#allocation0]]
  $region112: #{fgse_forward.1} parent=0
    _
  %s17 = ssub.s32 1, %s15
  %s18 = scalar_select 0, %s17, %s15
  $region1: #{fgse_forward.1} parent=0
    #allocation2 [shape = 'u8[512]{0}', space=smem, size = 0x200, scoped, tag = 'input window, operand 0, single buffered']
    #allocation3 [shape = 's32[2]{0}', space=sflag, size = 0x8, scoped, tag = 'scoped memory for fgse_forward.1']
    #allocation4 [shape = 'u8[524288]{0}', space=vmem, size = 0x80000, scoped, tag = 'output window, operand 0']
    %19 = vsyncpa [#allocation3], 0
    loop: start=0, step=1, limit=4
    $region2: #{fgse_forward.1} parent=1 // loop_pre_header
      _
    $region3: #{fgse_forward.1} parent=1 // loop_header
      %s21 = sphi 0, %s25
      %p22 = scmp.ge.s32.totalorder %s21, 4
      %s29 = sphi 0, %s29
      %s31 = sphi 0, %s29
      %s32 = sphi 0, %s31
      %s46 = sphi 0, %s32
      %s52 = sphi 0, %s54
      %s55 = sphi 0, %s52
      %s56 = sphi 0, %s55
      %s72 = sphi 0, %s56
      %s78 = sphi 0, %s80
      %s81 = sphi 0, %s78
      %s82 = sphi 0, %s81
      %s98 = sphi 0, %s82
      %s102 = sphi 0, %s102
      %s104 = sphi 0, %s102
      %s105 = sphi 0, %s104
      %s119 = sphi 0, %s105
      %s123 = sphi 0, %s123
      %s125 = sphi 0, %s123
      %s126 = sphi 0, %s125
      %s140 = sphi 0, %s126
      %s144 = sphi 0, %s144
      %s146 = sphi 0, %s144
      %s147 = sphi 0, %s146
      %s161 = sphi 0, %s147
      %s165 = sphi 0, %s165
      %s167 = sphi 0, %s165
      %s168 = sphi 0, %s167
      %s182 = sphi 0, %s168
      %s186 = sphi 0, %s186
      %s188 = sphi 0, %s186
      %s189 = sphi 0, %s188
      %s203 = sphi 0, %s189
      %s207 = sphi 0, %s207
      %s209 = sphi 0, %s207
      %s210 = sphi 0, %s209
      %s224 = sphi 0, %s210
      %s228 = sphi 0, %s228
      %s230 = sphi 0, %s228
      %s231 = sphi 0, %s230
      %s245 = sphi 0, %s231
      %s249 = sphi 0, %s249
      %s251 = sphi 0, %s249
      %s252 = sphi 0, %s251
      %s266 = sphi 0, %s252
      %s270 = sphi 0, %s270
      %s272 = sphi 0, %s270
      %s273 = sphi 0, %s272
      %s287 = sphi 0, %s273
      %s291 = sphi 0, %s291
      %s293 = sphi 0, %s291
      %s294 = sphi 0, %s293
      %s308 = sphi 0, %s294
      %s312 = sphi 0, %s312
      %s314 = sphi 0, %s312
      %s315 = sphi 0, %s314
      %s329 = sphi 0, %s315
      %s335 = sphi 0, %s337
      %s338 = sphi 0, %s335
      %s339 = sphi 0, %s338
      %s355 = sphi 0, %s339
    $region4: #{fgse_forward.1} parent=1 // loop_header_branch
      %24 = sbr.rel (%p22) target = $region8
    $region5: #{fgse_forward.1} parent=1 // loop_body
      %s26 = ssub.s32 %s21, 1
      %s27 = ssub.s32 %s21, 2
      %s28 = sadd.s32 %s21, 1
      %s30 = sadd.s32 %s29, 1
      %p33 = scmp.eq.s32.totalorder %s21, 1
      %p34 = scmp.ne.s32.totalorder %s29, %s31
      %p35 = scmp.eq.s32.totalorder %s21, 0
      %p36 = por %p34, %p35
      %p37 = scmp.ne.s32.totalorder %s29, %s31
      %p38 = scmp.eq.s32.totalorder %s26, 1
      %p39 = por %p37, %p38
      %p40 = scmp.ne.s32.totalorder %s31, %s32
      %p41 = scmp.eq.s32.totalorder %s26, 0
      %p42 = por %p40, %p41
      %p43 = scmp.ne.s32.totalorder %s31, %s32
      %p44 = scmp.eq.s32.totalorder %s27, 1
      %p45 = por %p43, %p44
      %p47 = scmp.ne.s32.totalorder %s32, %s46
      %p48 = scmp.eq.s32.totalorder %s27, 0
      %p49 = por %p47, %p48
      %s50 = ssub.s32 %s21, %s28
      %p51 = scmp.eq.s32.totalorder %s50, 0
      %s53 = sadd.s32 %s52, 1
      %s54 = scalar_select %p51, %s52, %s53
      %p57 = pneg %p51
      %p58 = scmp.eq.s32.totalorder %s21, 1
      %p59 = por %p57, %p58
      %p60 = scmp.ne.s32.totalorder %s52, %s55
      %p61 = scmp.eq.s32.totalorder %s21, 0
      %p62 = por %p60, %p61
      %p63 = scmp.ne.s32.totalorder %s52, %s55
      %p64 = scmp.eq.s32.totalorder %s26, 1
      %p65 = por %p63, %p64
      %p66 = scmp.ne.s32.totalorder %s55, %s56
      %p67 = scmp.eq.s32.totalorder %s26, 0
      %p68 = por %p66, %p67
      %p69 = scmp.ne.s32.totalorder %s55, %s56
      %p70 = scmp.eq.s32.totalorder %s27, 1
      %p71 = por %p69, %p70
      %p73 = scmp.ne.s32.totalorder %s56, %s72
      %p74 = scmp.eq.s32.totalorder %s27, 0
      %p75 = por %p73, %p74
      %s76 = ssub.s32 %s21, %s28
      %p77 = scmp.eq.s32.totalorder %s76, 0
      %s79 = sadd.s32 %s78, 1
      %s80 = scalar_select %p77, %s78, %s79
      %p83 = pneg %p77
      %p84 = scmp.eq.s32.totalorder %s21, 1
      %p85 = por %p83, %p84
      %p86 = scmp.ne.s32.totalorder %s78, %s81
      %p87 = scmp.eq.s32.totalorder %s21, 0
      %p88 = por %p86, %p87
      %p89 = scmp.ne.s32.totalorder %s78, %s81
      %p90 = scmp.eq.s32.totalorder %s26, 1
      %p91 = por %p89, %p90
      %p92 = scmp.ne.s32.totalorder %s81, %s82
      %p93 = scmp.eq.s32.totalorder %s26, 0
      %p94 = por %p92, %p93
      %p95 = scmp.ne.s32.totalorder %s81, %s82
      %p96 = scmp.eq.s32.totalorder %s27, 1
      %p97 = por %p95, %p96
      %p99 = scmp.ne.s32.totalorder %s82, %s98
      %p100 = scmp.eq.s32.totalorder %s27, 0
      %p101 = por %p99, %p100
      %s103 = sadd.s32 %s102, 1
      %p106 = scmp.eq.s32.totalorder %s21, 1
      %p107 = scmp.ne.s32.totalorder %s102, %s104
      %p108 = scmp.eq.s32.totalorder %s21, 0
      %p109 = por %p107, %p108
      %p110 = scmp.ne.s32.totalorder %s102, %s104
      %p111 = scmp.eq.s32.totalorder %s26, 1
      %p112 = por %p110, %p111
      %p113 = scmp.ne.s32.totalorder %s104, %s105
      %p114 = scmp.eq.s32.totalorder %s26, 0
      %p115 = por %p113, %p114
      %p116 = scmp.ne.s32.totalorder %s104, %s105
      %p117 = scmp.eq.s32.totalorder %s27, 1
      %p118 = por %p116, %p117
      %p120 = scmp.ne.s32.totalorder %s105, %s119
      %p121 = scmp.eq.s32.totalorder %s27, 0
      %p122 = por %p120, %p121
      %s124 = sadd.s32 %s123, 1
      %p127 = scmp.eq.s32.totalorder %s21, 1
      %p128 = scmp.ne.s32.totalorder %s123, %s125
      %p129 = scmp.eq.s32.totalorder %s21, 0
      %p130 = por %p128, %p129
      %p131 = scmp.ne.s32.totalorder %s123, %s125
      %p132 = scmp.eq.s32.totalorder %s26, 1
      %p133 = por %p131, %p132
      %p134 = scmp.ne.s32.totalorder %s125, %s126
      %p135 = scmp.eq.s32.totalorder %s26, 0
      %p136 = por %p134, %p135
      %p137 = scmp.ne.s32.totalorder %s125, %s126
      %p138 = scmp.eq.s32.totalorder %s27, 1
      %p139 = por %p137, %p138
      %p141 = scmp.ne.s32.totalorder %s126, %s140
      %p142 = scmp.eq.s32.totalorder %s27, 0
      %p143 = por %p141, %p142
      %s145 = sadd.s32 %s144, 1
      %p148 = scmp.eq.s32.totalorder %s21, 1
      %p149 = scmp.ne.s32.totalorder %s144, %s146
      %p150 = scmp.eq.s32.totalorder %s21, 0
      %p151 = por %p149, %p150
      %p152 = scmp.ne.s32.totalorder %s144, %s146
      %p153 = scmp.eq.s32.totalorder %s26, 1
      %p154 = por %p152, %p153
      %p155 = scmp.ne.s32.totalorder %s146, %s147
      %p156 = scmp.eq.s32.totalorder %s26, 0
      %p157 = por %p155, %p156
      %p158 = scmp.ne.s32.totalorder %s146, %s147
      %p159 = scmp.eq.s32.totalorder %s27, 1
      %p160 = por %p158, %p159
      %p162 = scmp.ne.s32.totalorder %s147, %s161
      %p163 = scmp.eq.s32.totalorder %s27, 0
      %p164 = por %p162, %p163
      %s166 = sadd.s32 %s165, 1
      %p169 = scmp.eq.s32.totalorder %s21, 1
      %p170 = scmp.ne.s32.totalorder %s165, %s167
      %p171 = scmp.eq.s32.totalorder %s21, 0
      %p172 = por %p170, %p171
      %p173 = scmp.ne.s32.totalorder %s165, %s167
      %p174 = scmp.eq.s32.totalorder %s26, 1
      %p175 = por %p173, %p174
      %p176 = scmp.ne.s32.totalorder %s167, %s168
      %p177 = scmp.eq.s32.totalorder %s26, 0
      %p178 = por %p176, %p177
      %p179 = scmp.ne.s32.totalorder %s167, %s168
      %p180 = scmp.eq.s32.totalorder %s27, 1
      %p181 = por %p179, %p180
      %p183 = scmp.ne.s32.totalorder %s168, %s182
      %p184 = scmp.eq.s32.totalorder %s27, 0
      %p185 = por %p183, %p184
      %s187 = sadd.s32 %s186, 1
      %p190 = scmp.eq.s32.totalorder %s21, 1
      %p191 = scmp.ne.s32.totalorder %s186, %s188
      %p192 = scmp.eq.s32.totalorder %s21, 0
      %p193 = por %p191, %p192
      %p194 = scmp.ne.s32.totalorder %s186, %s188
      %p195 = scmp.eq.s32.totalorder %s26, 1
      %p196 = por %p194, %p195
      %p197 = scmp.ne.s32.totalorder %s188, %s189
      %p198 = scmp.eq.s32.totalorder %s26, 0
      %p199 = por %p197, %p198
      %p200 = scmp.ne.s32.totalorder %s188, %s189
      %p201 = scmp.eq.s32.totalorder %s27, 1
      %p202 = por %p200, %p201
      %p204 = scmp.ne.s32.totalorder %s189, %s203
      %p205 = scmp.eq.s32.totalorder %s27, 0
      %p206 = por %p204, %p205
      %s208 = sadd.s32 %s207, 1
      %p211 = scmp.eq.s32.totalorder %s21, 1
      %p212 = scmp.ne.s32.totalorder %s207, %s209
      %p213 = scmp.eq.s32.totalorder %s21, 0
      %p214 = por %p212, %p213
      %p215 = scmp.ne.s32.totalorder %s207, %s209
      %p216 = scmp.eq.s32.totalorder %s26, 1
      %p217 = por %p215, %p216
      %p218 = scmp.ne.s32.totalorder %s209, %s210
      %p219 = scmp.eq.s32.totalorder %s26, 0
      %p220 = por %p218, %p219
      %p221 = scmp.ne.s32.totalorder %s209, %s210
      %p222 = scmp.eq.s32.totalorder %s27, 1
      %p223 = por %p221, %p222
      %p225 = scmp.ne.s32.totalorder %s210, %s224
      %p226 = scmp.eq.s32.totalorder %s27, 0
      %p227 = por %p225, %p226
      %s229 = sadd.s32 %s228, 1
      %p232 = scmp.eq.s32.totalorder %s21, 1
      %p233 = scmp.ne.s32.totalorder %s228, %s230
      %p234 = scmp.eq.s32.totalorder %s21, 0
      %p235 = por %p233, %p234
      %p236 = scmp.ne.s32.totalorder %s228, %s230
      %p237 = scmp.eq.s32.totalorder %s26, 1
      %p238 = por %p236, %p237
      %p239 = scmp.ne.s32.totalorder %s230, %s231
      %p240 = scmp.eq.s32.totalorder %s26, 0
      %p241 = por %p239, %p240
      %p242 = scmp.ne.s32.totalorder %s230, %s231
      %p243 = scmp.eq.s32.totalorder %s27, 1
      %p244 = por %p242, %p243
      %p246 = scmp.ne.s32.totalorder %s231, %s245
      %p247 = scmp.eq.s32.totalorder %s27, 0
      %p248 = por %p246, %p247
      %s250 = sadd.s32 %s249, 1
      %p253 = scmp.eq.s32.totalorder %s21, 1
      %p254 = scmp.ne.s32.totalorder %s249, %s251
      %p255 = scmp.eq.s32.totalorder %s21, 0
      %p256 = por %p254, %p255
      %p257 = scmp.ne.s32.totalorder %s249, %s251
      %p258 = scmp.eq.s32.totalorder %s26, 1
      %p259 = por %p257, %p258
      %p260 = scmp.ne.s32.totalorder %s251, %s252
      %p261 = scmp.eq.s32.totalorder %s26, 0
      %p262 = por %p260, %p261
      %p263 = scmp.ne.s32.totalorder %s251, %s252
      %p264 = scmp.eq.s32.totalorder %s27, 1
      %p265 = por %p263, %p264
      %p267 = scmp.ne.s32.totalorder %s252, %s266
      %p268 = scmp.eq.s32.totalorder %s27, 0
      %p269 = por %p267, %p268
      %s271 = sadd.s32 %s270, 1
      %p274 = scmp.eq.s32.totalorder %s21, 1
      %p275 = scmp.ne.s32.totalorder %s270, %s272
      %p276 = scmp.eq.s32.totalorder %s21, 0
      %p277 = por %p275, %p276
      %p278 = scmp.ne.s32.totalorder %s270, %s272
      %p279 = scmp.eq.s32.totalorder %s26, 1
      %p280 = por %p278, %p279
      %p281 = scmp.ne.s32.totalorder %s272, %s273
      %p282 = scmp.eq.s32.totalorder %s26, 0
      %p283 = por %p281, %p282
      %p284 = scmp.ne.s32.totalorder %s272, %s273
      %p285 = scmp.eq.s32.totalorder %s27, 1
      %p286 = por %p284, %p285
      %p288 = scmp.ne.s32.totalorder %s273, %s287
      %p289 = scmp.eq.s32.totalorder %s27, 0
      %p290 = por %p288, %p289
      %s292 = sadd.s32 %s291, 1
      %p295 = scmp.eq.s32.totalorder %s21, 1
      %p296 = scmp.ne.s32.totalorder %s291, %s293
      %p297 = scmp.eq.s32.totalorder %s21, 0
      %p298 = por %p296, %p297
      %p299 = scmp.ne.s32.totalorder %s291, %s293
      %p300 = scmp.eq.s32.totalorder %s26, 1
      %p301 = por %p299, %p300
      %p302 = scmp.ne.s32.totalorder %s293, %s294
      %p303 = scmp.eq.s32.totalorder %s26, 0
      %p304 = por %p302, %p303
      %p305 = scmp.ne.s32.totalorder %s293, %s294
      %p306 = scmp.eq.s32.totalorder %s27, 1
      %p307 = por %p305, %p306
      %p309 = scmp.ne.s32.totalorder %s294, %s308
      %p310 = scmp.eq.s32.totalorder %s27, 0
      %p311 = por %p309, %p310
      %s313 = sadd.s32 %s312, 1
      %p316 = scmp.eq.s32.totalorder %s21, 1
      %p317 = scmp.ne.s32.totalorder %s312, %s314
      %p318 = scmp.eq.s32.totalorder %s21, 0
      %p319 = por %p317, %p318
      %p320 = scmp.ne.s32.totalorder %s312, %s314
      %p321 = scmp.eq.s32.totalorder %s26, 1
      %p322 = por %p320, %p321
      %p323 = scmp.ne.s32.totalorder %s314, %s315
      %p324 = scmp.eq.s32.totalorder %s26, 0
      %p325 = por %p323, %p324
      %p326 = scmp.ne.s32.totalorder %s314, %s315
      %p327 = scmp.eq.s32.totalorder %s27, 1
      %p328 = por %p326, %p327
      %p330 = scmp.ne.s32.totalorder %s315, %s329
      %p331 = scmp.eq.s32.totalorder %s27, 0
      %p332 = por %p330, %p331
      %s333 = ssub.s32 %s21, %s28
      %p334 = scmp.eq.s32.totalorder %s333, 0
      %s336 = sadd.s32 %s335, 1
      %s337 = scalar_select %p334, %s335, %s336
      %p340 = pneg %p334
      %p341 = scmp.eq.s32.totalorder %s21, 1
      %p342 = por %p340, %p341
      %p343 = scmp.ne.s32.totalorder %s335, %s338
      %p344 = scmp.eq.s32.totalorder %s21, 0
      %p345 = por %p343, %p344
      %p346 = scmp.ne.s32.totalorder %s335, %s338
      %p347 = scmp.eq.s32.totalorder %s26, 1
      %p348 = por %p346, %p347
      %p349 = scmp.ne.s32.totalorder %s338, %s339
      %p350 = scmp.eq.s32.totalorder %s26, 0
      %p351 = por %p349, %p350
      %p352 = scmp.ne.s32.totalorder %s338, %s339
      %p353 = scmp.eq.s32.totalorder %s27, 1
      %p354 = por %p352, %p353
      %p356 = scmp.ne.s32.totalorder %s339, %s355
      %p357 = scmp.eq.s32.totalorder %s27, 0
      %p358 = por %p356, %p357
      %p359 = scmp.le.s32.totalorder 1, %s21
      %p360 = scmp.lt.s32.totalorder %s21, 3
      %p361 = pnand %p359, %p360
      %p362 = pneg %p361
      // Predicated region
      $region9: #{fgse_forward.1} parent=5 // pred_check
        _
      $region10: #{fgse_forward.1} parent=5 // pred_check_branch
        %364 = sbr.rel (%p361) target = $region12
      $region11: #{fgse_forward.1} parent=5 // pred_region
        %s365 = ssub.s32 %s21, 1
        // Predicated region
        $region13: #{fgse_forward.1} parent=11 // pred_check
          %p366 = pneg %p42
        $region14: #{fgse_forward.1} parent=11 // pred_check_branch
          %368 = sbr.rel (%p366) target = $region16
        $region15: #{fgse_forward.1} parent=11 // pred_region
          %s370 = ssub.s32 16, 16
          %371 = vsyncadd [#allocation3], %s370
          %s373 = sshll.u32 %s0, 4
          %s374 = int_to_ptr.vmem [resolvable:$true] %s373
          %376 = dma.vmem_to_smem %s374, 16, [#allocation2], [#allocation3]
        $region16: #{fgse_forward.1} parent=11 // pred_fallthru
          _
        // Predicated region
        $region17: #{fgse_forward.1} parent=11 // pred_check
          %p377 = pneg %p115
        $region18: #{fgse_forward.1} parent=11 // pred_check_branch
          %379 = sbr.rel (%p377) target = $region20
        $region19: #{fgse_forward.1} parent=11 // pred_region
          _
        $region20: #{fgse_forward.1} parent=11 // pred_fallthru
          _
        // Predicated region
        $region21: #{fgse_forward.1} parent=11 // pred_check
          %p380 = pneg %p136
        $region22: #{fgse_forward.1} parent=11 // pred_check_branch
          %382 = sbr.rel (%p380) target = $region24
        $region23: #{fgse_forward.1} parent=11 // pred_region
          _
        $region24: #{fgse_forward.1} parent=11 // pred_fallthru
          _
        // Predicated region
        $region25: #{fgse_forward.1} parent=11 // pred_check
          %p383 = pneg %p157
        $region26: #{fgse_forward.1} parent=11 // pred_check_branch
          %385 = sbr.rel (%p383) target = $region28
        $region27: #{fgse_forward.1} parent=11 // pred_region
          _
        $region28: #{fgse_forward.1} parent=11 // pred_fallthru
          _
        // Predicated region
        $region29: #{fgse_forward.1} parent=11 // pred_check
          %p386 = pneg %p178
        $region30: #{fgse_forward.1} parent=11 // pred_check_branch
          %388 = sbr.rel (%p386) target = $region32
        $region31: #{fgse_forward.1} parent=11 // pred_region
          _
        $region32: #{fgse_forward.1} parent=11 // pred_fallthru
          _
        // Predicated region
        $region33: #{fgse_forward.1} parent=11 // pred_check
          %p389 = pneg %p199
        $region34: #{fgse_forward.1} parent=11 // pred_check_branch
          %391 = sbr.rel (%p389) target = $region36
        $region35: #{fgse_forward.1} parent=11 // pred_region
          _
        $region36: #{fgse_forward.1} parent=11 // pred_fallthru
          _
        // Predicated region
        $region37: #{fgse_forward.1} parent=11 // pred_check
          %p392 = pneg %p220
        $region38: #{fgse_forward.1} parent=11 // pred_check_branch
          %394 = sbr.rel (%p392) target = $region40
        $region39: #{fgse_forward.1} parent=11 // pred_region
          _
        $region40: #{fgse_forward.1} parent=11 // pred_fallthru
          _
        // Predicated region
        $region41: #{fgse_forward.1} parent=11 // pred_check
          %p395 = pneg %p241
        $region42: #{fgse_forward.1} parent=11 // pred_check_branch
          %397 = sbr.rel (%p395) target = $region44
        $region43: #{fgse_forward.1} parent=11 // pred_region
          _
        $region44: #{fgse_forward.1} parent=11 // pred_fallthru
          _
        // Predicated region
        $region45: #{fgse_forward.1} parent=11 // pred_check
          %p398 = pneg %p262
        $region46: #{fgse_forward.1} parent=11 // pred_check_branch
          %400 = sbr.rel (%p398) target = $region48
        $region47: #{fgse_forward.1} parent=11 // pred_region
          _
        $region48: #{fgse_forward.1} parent=11 // pred_fallthru
          _
        // Predicated region
        $region49: #{fgse_forward.1} parent=11 // pred_check
          %p401 = pneg %p283
        $region50: #{fgse_forward.1} parent=11 // pred_check_branch
          %403 = sbr.rel (%p401) target = $region52
        $region51: #{fgse_forward.1} parent=11 // pred_region
          _
        $region52: #{fgse_forward.1} parent=11 // pred_fallthru
          _
        // Predicated region
        $region53: #{fgse_forward.1} parent=11 // pred_check
          %p404 = pneg %p304
        $region54: #{fgse_forward.1} parent=11 // pred_check_branch
          %406 = sbr.rel (%p404) target = $region56
        $region55: #{fgse_forward.1} parent=11 // pred_region
          _
        $region56: #{fgse_forward.1} parent=11 // pred_fallthru
          _
        // Predicated region
        $region57: #{fgse_forward.1} parent=11 // pred_check
          %p407 = pneg %p325
        $region58: #{fgse_forward.1} parent=11 // pred_check_branch
          %409 = sbr.rel (%p407) target = $region60
        $region59: #{fgse_forward.1} parent=11 // pred_region
          _
        $region60: #{fgse_forward.1} parent=11 // pred_fallthru
          _
      $region12: #{fgse_forward.1} parent=5 // pred_fallthru
        _
      %p410 = scmp.lt.s32.totalorder %s21, 2
      // Predicated region
      $region61: #{fgse_forward.1} parent=5 // pred_check
        %p411 = pneg %p410
      $region62: #{fgse_forward.1} parent=5 // pred_check_branch
        %413 = sbr.rel (%p411) target = $region64
      $region63: #{fgse_forward.1} parent=5 // pred_region
        // Predicated region
        $region65: #{fgse_forward.1} parent=63 // pred_check
          %p414 = pneg %p62
        $region66: #{fgse_forward.1} parent=63 // pred_check_branch
          %416 = sbr.rel (%p414) target = $region68
        $region67: #{fgse_forward.1} parent=63 // pred_region
          %p417 = scmp.lt.s32.totalorder %s21, 1
          %s418 = scalar_select %p417, %s21, 1
          %s419 = smul.addr %s418, 32
          %s420 = smul.addr %s419, 4
          %s421 = scalar_lea.vmem %s1, %s420
        $region68: #{fgse_forward.1} parent=63 // pred_fallthru
          _
        // Predicated region
        $region69: #{fgse_forward.1} parent=63 // pred_check
          %p422 = pneg %p88
        $region70: #{fgse_forward.1} parent=63 // pred_check_branch
          %424 = sbr.rel (%p422) target = $region72
        $region71: #{fgse_forward.1} parent=63 // pred_region
          %p425 = scmp.lt.s32.totalorder %s21, 1
          %s426 = scalar_select %p425, %s21, 1
          %s427 = smul.addr %s426, 32
          %s428 = smul.addr %s427, 4
          %s429 = scalar_lea.vmem %s2, %s428
        $region72: #{fgse_forward.1} parent=63 // pred_fallthru
          _
      $region64: #{fgse_forward.1} parent=5 // pred_fallthru
        _
      %p430 = scmp.le.s32.totalorder 1, %s21
      %p431 = scmp.lt.s32.totalorder %s21, 3
      %p432 = pnand %p430, %p431
      %p433 = pneg %p432
      // Predicated region
      $region73: #{fgse_forward.1} parent=5 // pred_check
        _
      $region74: #{fgse_forward.1} parent=5 // pred_check_branch
        %435 = sbr.rel (%p432) target = $region76
      $region75: #{fgse_forward.1} parent=5 // pred_region
        %s436 = ssub.s32 %s21, 1
        // Predicated region
        $region77: #{fgse_forward.1} parent=75 // pred_check
          %p437 = pneg %p42
        $region78: #{fgse_forward.1} parent=75 // pred_check_branch
          %439 = sbr.rel (%p437) target = $region80
        $region79: #{fgse_forward.1} parent=75 // pred_region
          %440 = dma.done [#allocation3], 16
        $region80: #{fgse_forward.1} parent=75 // pred_fallthru
          _
        %441 = sfence
        %p442 = pneg %p42
        %p443 = pneg %p39
        %p444 = scmp.lt.s32.totalorder %s26, 1
        %s445 = scalar_select %p444, %s26, 1
        %s446 = smul.addr %s445, 32
        %s447 = smul.addr %s446, 4
        %s448 = scalar_lea.vmem %s1, %s447
        %p449 = pneg %p68
        %p450 = pneg %p65
        %p451 = scmp.lt.s32.totalorder %s26, 1
        %s452 = scalar_select %p451, %s26, 1
        %s453 = smul.addr %s452, 32
        %s454 = smul.addr %s453, 4
        %s455 = scalar_lea.vmem %s2, %s454
        %p456 = pneg %p94
        %p457 = pneg %p91
        %p458 = pneg %p115
        %p459 = pneg %p112
        %p460 = pneg %p136
        %p461 = pneg %p133
        %p462 = pneg %p157
        %p463 = pneg %p154
        %p464 = pneg %p178
        %p465 = pneg %p175
        %p466 = pneg %p199
        %p467 = pneg %p196
        %p468 = pneg %p220
        %p469 = pneg %p217
        %p470 = pneg %p241
        %p471 = pneg %p238
        %p472 = pneg %p262
        %p473 = pneg %p259
        %p474 = pneg %p283
        %p475 = pneg %p280
        %p476 = pneg %p304
        %p477 = pneg %p301
        %p478 = pneg %p325
        %p479 = pneg %p322
        %p480 = pneg %p351
        %p481 = pneg %p348
        %s482 = sand.u32 %s338, 1
        %s483 = sand.u32 %s338, 1
        %s484 = smul.addr %s483, 512
        %s485 = scalar_lea.vmem [#allocation4], %s484
        %p486 = scmp.lt.s32.totalorder %s26, 1
        %s487 = scalar_select %p486, %s26, 1
        %s488 = smul.addr %s487, 32
        %s489 = smul.addr %s488, 4
        %s490 = scalar_lea.vmem %s1, %s489
        %p491 = scmp.lt.s32.totalorder %s26, 1
        %s492 = scalar_select %p491, %s26, 1
        %s493 = smul.addr %s492, 32
        %s494 = smul.addr %s493, 4
        %s495 = scalar_lea.vmem %s2, %s494
        %v498 = vld [vmem:[%s490] sm:$0xff]
        %v499 = vld [vmem:[%s490 + $0x8] sm:$0xff]
        %v500 = vld [vmem:[%s490 + $0x10] sm:$0xff]
        %v501 = vld [vmem:[%s490 + $0x18] sm:$0xff]
        %v502 = vld [vmem:[%s490 + $0x20] sm:$0xff]
        %v503 = vld [vmem:[%s490 + $0x28] sm:$0xff]
        %v504 = vld [vmem:[%s490 + $0x30] sm:$0xff]
        %v505 = vld [vmem:[%s490 + $0x38] sm:$0xff]
        %v506 = vld [vmem:[%s490 + $0x40] sm:$0xff]
        %v507 = vld [vmem:[%s490 + $0x48] sm:$0xff]
        %v508 = vld [vmem:[%s490 + $0x50] sm:$0xff]
        %v509 = vld [vmem:[%s490 + $0x58] sm:$0xff]
        %v510 = vld [vmem:[%s490 + $0x60] sm:$0xff]
        %v511 = vld [vmem:[%s490 + $0x68] sm:$0xff]
        %v512 = vld [vmem:[%s490 + $0x70] sm:$0xff]
        %v513 = vld [vmem:[%s490 + $0x78] sm:$0xff]
        %v514 = vld [vmem:[%s495] sm:$0xff]
        %v515 = vld [vmem:[%s495 + $0x8] sm:$0xff]
        %v516 = vld [vmem:[%s495 + $0x10] sm:$0xff]
        %v517 = vld [vmem:[%s495 + $0x18] sm:$0xff]
        %v518 = vld [vmem:[%s495 + $0x20] sm:$0xff]
        %v519 = vld [vmem:[%s495 + $0x28] sm:$0xff]
        %v520 = vld [vmem:[%s495 + $0x30] sm:$0xff]
        %v521 = vld [vmem:[%s495 + $0x38] sm:$0xff]
        %v522 = vld [vmem:[%s495 + $0x40] sm:$0xff]
        %v523 = vld [vmem:[%s495 + $0x48] sm:$0xff]
        %v524 = vld [vmem:[%s495 + $0x50] sm:$0xff]
        %v525 = vld [vmem:[%s495 + $0x58] sm:$0xff]
        %v526 = vld [vmem:[%s495 + $0x60] sm:$0xff]
        %v527 = vld [vmem:[%s495 + $0x68] sm:$0xff]
        %v528 = vld [vmem:[%s495 + $0x70] sm:$0xff]
        %v529 = vld [vmem:[%s495 + $0x78] sm:$0xff]
        %v530 = vunpack.c.l.bf16 %v498
        %v531 = vunpack.c.h.bf16 %v498
        %v532 = vunpack.c.l.bf16 %v499
        %v533 = vunpack.c.h.bf16 %v499
        %v534 = vunpack.c.l.bf16 %v500
        %v535 = vunpack.c.h.bf16 %v500
        %v536 = vunpack.c.l.bf16 %v501
        %v537 = vunpack.c.h.bf16 %v501
        %v538 = vunpack.c.l.bf16 %v502
        %v539 = vunpack.c.h.bf16 %v502
        %v540 = vunpack.c.l.bf16 %v503
        %v541 = vunpack.c.h.bf16 %v503
        %v542 = vunpack.c.l.bf16 %v504
        %v543 = vunpack.c.h.bf16 %v504
        %v544 = vunpack.c.l.bf16 %v505
        %v545 = vunpack.c.h.bf16 %v505
        %v546 = vunpack.c.l.bf16 %v506
        %v547 = vunpack.c.h.bf16 %v506
        %v548 = vunpack.c.l.bf16 %v507
        %v549 = vunpack.c.h.bf16 %v507
        %v550 = vunpack.c.l.bf16 %v508
        %v551 = vunpack.c.h.bf16 %v508
        %v552 = vunpack.c.l.bf16 %v509
        %v553 = vunpack.c.h.bf16 %v509
        %v554 = vunpack.c.l.bf16 %v510
        %v555 = vunpack.c.h.bf16 %v510
        %v556 = vunpack.c.l.bf16 %v511
        %v557 = vunpack.c.h.bf16 %v511
        %v558 = vunpack.c.l.bf16 %v512
        %v559 = vunpack.c.h.bf16 %v512
        %v560 = vunpack.c.l.bf16 %v513
        %v561 = vunpack.c.h.bf16 %v513
        %v562 = vunpack.c.l.bf16 %v514
        %v563 = vunpack.c.h.bf16 %v514
        %v564 = vunpack.c.l.bf16 %v515
        %v565 = vunpack.c.h.bf16 %v515
        %v566 = vunpack.c.l.bf16 %v516
        %v567 = vunpack.c.h.bf16 %v516
        %v568 = vunpack.c.l.bf16 %v517
        %v569 = vunpack.c.h.bf16 %v517
        %v570 = vunpack.c.l.bf16 %v518
        %v571 = vunpack.c.h.bf16 %v518
        %v572 = vunpack.c.l.bf16 %v519
        %v573 = vunpack.c.h.bf16 %v519
        %v574 = vunpack.c.l.bf16 %v520
        %v575 = vunpack.c.h.bf16 %v520
        %v576 = vunpack.c.l.bf16 %v521
        %v577 = vunpack.c.h.bf16 %v521
        %v578 = vunpack.c.l.bf16 %v522
        %v579 = vunpack.c.h.bf16 %v522
        %v580 = vunpack.c.l.bf16 %v523
        %v581 = vunpack.c.h.bf16 %v523
        %v582 = vunpack.c.l.bf16 %v524
        %v583 = vunpack.c.h.bf16 %v524
        %v584 = vunpack.c.l.bf16 %v525
        %v585 = vunpack.c.h.bf16 %v525
        %v586 = vunpack.c.l.bf16 %v526
        %v587 = vunpack.c.h.bf16 %v526
        %v588 = vunpack.c.l.bf16 %v527
        %v589 = vunpack.c.h.bf16 %v527
        %v590 = vunpack.c.l.bf16 %v528
        %v591 = vunpack.c.h.bf16 %v528
        %v592 = vunpack.c.l.bf16 %v529
        %v593 = vunpack.c.h.bf16 %v529
        %v594 = vld [vmem:[%s3] sm:$0xf]
        %v595 = vld [vmem:[%s3 + $0x4] sm:$0xf]
        %v596 = vld [vmem:[%s3 + $0x8] sm:$0xf]
        %v597 = vld [vmem:[%s3 + $0xc] sm:$0xf]
        %v598 = vld [vmem:[%s3 + $0x10] sm:$0xf]
        %v599 = vld [vmem:[%s3 + $0x14] sm:$0xf]
        %v600 = vld [vmem:[%s3 + $0x18] sm:$0xf]
        %v601 = vld [vmem:[%s3 + $0x1c] sm:$0xf]
        %v602 = vld [vmem:[%s3 + $0x20] sm:$0xf]
        %v603 = vld [vmem:[%s3 + $0x24] sm:$0xf]
        %v604 = vld [vmem:[%s3 + $0x28] sm:$0xf]
        %v605 = vld [vmem:[%s3 + $0x2c] sm:$0xf]
        %v606 = vld [vmem:[%s3 + $0x30] sm:$0xf]
        %v607 = vld [vmem:[%s3 + $0x34] sm:$0xf]
        %v608 = vld [vmem:[%s3 + $0x38] sm:$0xf]
        %v609 = vld [vmem:[%s3 + $0x3c] sm:$0xf]
        %v610 = vld [vmem:[%s3 + $0x40] sm:$0xf]
        %v611 = vld [vmem:[%s3 + $0x44] sm:$0xf]
        %v612 = vld [vmem:[%s3 + $0x48] sm:$0xf]
        %v613 = vld [vmem:[%s3 + $0x4c] sm:$0xf]
        %v614 = vld [vmem:[%s3 + $0x50] sm:$0xf]
        %v615 = vld [vmem:[%s3 + $0x54] sm:$0xf]
        %v616 = vld [vmem:[%s3 + $0x58] sm:$0xf]
        %v617 = vld [vmem:[%s3 + $0x5c] sm:$0xf]
        %v618 = vld [vmem:[%s3 + $0x60] sm:$0xf]
        %v619 = vld [vmem:[%s3 + $0x64] sm:$0xf]
        %v620 = vld [vmem:[%s3 + $0x68] sm:$0xf]
        %v621 = vld [vmem:[%s3 + $0x6c] sm:$0xf]
        %v622 = vld [vmem:[%s3 + $0x70] sm:$0xf]
        %v623 = vld [vmem:[%s3 + $0x74] sm:$0xf]
        %v624 = vld [vmem:[%s3 + $0x78] sm:$0xf]
        %v625 = vld [vmem:[%s3 + $0x7c] sm:$0xf]
        %v626 = vld [vmem:[%s3 + $0x80] sm:$0xf]
        %v627 = vld [vmem:[%s3 + $0x84] sm:$0xf]
        %v628 = vld [vmem:[%s3 + $0x88] sm:$0xf]
        %v629 = vld [vmem:[%s3 + $0x8c] sm:$0xf]
        %v630 = vld [vmem:[%s3 + $0x90] sm:$0xf]
        %v631 = vld [vmem:[%s3 + $0x94] sm:$0xf]
        %v632 = vld [vmem:[%s3 + $0x98] sm:$0xf]
        %v633 = vld [vmem:[%s3 + $0x9c] sm:$0xf]
        %v634 = vld [vmem:[%s3 + $0xa0] sm:$0xf]
        %v635 = vld [vmem:[%s3 + $0xa4] sm:$0xf]
        %v636 = vld [vmem:[%s3 + $0xa8] sm:$0xf]
        %v637 = vld [vmem:[%s3 + $0xac] sm:$0xf]
        %v638 = vld [vmem:[%s3 + $0xb0] sm:$0xf]
        %v639 = vld [vmem:[%s3 + $0xb4] sm:$0xf]
        %v640 = vld [vmem:[%s3 + $0xb8] sm:$0xf]
        %v641 = vld [vmem:[%s3 + $0xbc] sm:$0xf]
        %v642 = vld [vmem:[%s4] sm:$0xff]
        %v643 = vld [vmem:[%s4 + $0x8] sm:$0xff]
        %v644 = vld [vmem:[%s4 + $0x10] sm:$0xff]
        %v645 = vld [vmem:[%s4 + $0x18] sm:$0xff]
        %v646 = vld [vmem:[%s4 + $0x20] sm:$0xff]
        %v647 = vld [vmem:[%s4 + $0x28] sm:$0xff]
        %v648 = vld [vmem:[%s4 + $0x30] sm:$0xff]
        %v649 = vld [vmem:[%s4 + $0x38] sm:$0xff]
        %v650 = vld [vmem:[%s4 + $0x40] sm:$0xff]
        %v651 = vld [vmem:[%s4 + $0x48] sm:$0xff]
        %v652 = vld [vmem:[%s4 + $0x50] sm:$0xff]
        %v653 = vld [vmem:[%s4 + $0x58] sm:$0xff]
        %v654 = vld [vmem:[%s4 + $0x60] sm:$0xff]
        %v655 = vld [vmem:[%s4 + $0x68] sm:$0xff]
        %v656 = vld [vmem:[%s4 + $0x70] sm:$0xff]
        %v657 = vld [vmem:[%s4 + $0x78] sm:$0xff]
        %v658 = vld [vmem:[%s4 + $0x80] sm:$0xff]
        %v659 = vld [vmem:[%s4 + $0x88] sm:$0xff]
        %v660 = vld [vmem:[%s4 + $0x90] sm:$0xff]
        %v661 = vld [vmem:[%s4 + $0x98] sm:$0xff]
        %v662 = vld [vmem:[%s4 + $0xa0] sm:$0xff]
        %v663 = vld [vmem:[%s4 + $0xa8] sm:$0xff]
        %v664 = vld [vmem:[%s4 + $0xb0] sm:$0xff]
        %v665 = vld [vmem:[%s4 + $0xb8] sm:$0xff]
        %v666 = vld [vmem:[%s4 + $0xc0] sm:$0xff]
        %v667 = vld [vmem:[%s4 + $0xc8] sm:$0xff]
        %v668 = vld [vmem:[%s4 + $0xd0] sm:$0xff]
        %v669 = vld [vmem:[%s4 + $0xd8] sm:$0xff]
        %v670 = vld [vmem:[%s4 + $0xe0] sm:$0xff]
        %v671 = vld [vmem:[%s4 + $0xe8] sm:$0xff]
        %v672 = vld [vmem:[%s4 + $0xf0] sm:$0xff]
        %v673 = vld [vmem:[%s4 + $0xf8] sm:$0xff]
        %v674 = vld [vmem:[%s4 + $0x100] sm:$0xff]
        %v675 = vld [vmem:[%s4 + $0x108] sm:$0xff]
        %v676 = vld [vmem:[%s4 + $0x110] sm:$0xff]
        %v677 = vld [vmem:[%s4 + $0x118] sm:$0xff]
        %v678 = vld [vmem:[%s4 + $0x120] sm:$0xff]
        %v679 = vld [vmem:[%s4 + $0x128] sm:$0xff]
        %v680 = vld [vmem:[%s4 + $0x130] sm:$0xff]
        %v681 = vld [vmem:[%s4 + $0x138] sm:$0xff]
        %v682 = vld [vmem:[%s4 + $0x140] sm:$0xff]
        %v683 = vld [vmem:[%s4 + $0x148] sm:$0xff]
        %v684 = vld [vmem:[%s4 + $0x150] sm:$0xff]
        %v685 = vld [vmem:[%s4 + $0x158] sm:$0xff]
        %v686 = vld [vmem:[%s4 + $0x160] sm:$0xff]
        %v687 = vld [vmem:[%s4 + $0x168] sm:$0xff]
        %v688 = vld [vmem:[%s4 + $0x170] sm:$0xff]
        %v689 = vld [vmem:[%s4 + $0x178] sm:$0xff]
        %691 = vset.pattern.permute.xlu0 0
        %692 = vperm.xlu0 %691, %v642
        %v693 = vpop.permute.xlu0 %692
        %696 = vset.pattern.permute.xlu0 0
        %697 = vperm.xlu0 %696, %v643
        %v698 = vpop.permute.xlu0 %697
        %701 = vset.pattern.permute.xlu0 0
        %702 = vperm.xlu0 %701, %v644
        %v703 = vpop.permute.xlu0 %702
        %706 = vset.pattern.permute.xlu0 0
        %707 = vperm.xlu0 %706, %v645
        %v708 = vpop.permute.xlu0 %707
        %711 = vset.pattern.permute.xlu0 0
        %712 = vperm.xlu0 %711, %v646
        %v713 = vpop.permute.xlu0 %712
        %716 = vset.pattern.permute.xlu0 0
        %717 = vperm.xlu0 %716, %v647
        %v718 = vpop.permute.xlu0 %717
        %721 = vset.pattern.permute.xlu0 0
        %722 = vperm.xlu0 %721, %v648
        %v723 = vpop.permute.xlu0 %722
        %726 = vset.pattern.permute.xlu0 0
        %727 = vperm.xlu0 %726, %v649
        %v728 = vpop.permute.xlu0 %727
        %731 = vset.pattern.permute.xlu0 0
        %732 = vperm.xlu0 %731, %v650
        %v733 = vpop.permute.xlu0 %732
        %736 = vset.pattern.permute.xlu0 0
        %737 = vperm.xlu0 %736, %v651
        %v738 = vpop.permute.xlu0 %737
        %741 = vset.pattern.permute.xlu0 0
        %742 = vperm.xlu0 %741, %v652
        %v743 = vpop.permute.xlu0 %742
        %746 = vset.pattern.permute.xlu0 0
        %747 = vperm.xlu0 %746, %v653
        %v748 = vpop.permute.xlu0 %747
        %751 = vset.pattern.permute.xlu0 0
        %752 = vperm.xlu0 %751, %v654
        %v753 = vpop.permute.xlu0 %752
        %756 = vset.pattern.permute.xlu0 0
        %757 = vperm.xlu0 %756, %v655
        %v758 = vpop.permute.xlu0 %757
        %761 = vset.pattern.permute.xlu0 0
        %762 = vperm.xlu0 %761, %v656
        %v763 = vpop.permute.xlu0 %762
        %766 = vset.pattern.permute.xlu0 0
        %767 = vperm.xlu0 %766, %v657
        %v768 = vpop.permute.xlu0 %767
        %771 = vset.pattern.permute.xlu0 0
        %772 = vperm.xlu0 %771, %v658
        %v773 = vpop.permute.xlu0 %772
        %776 = vset.pattern.permute.xlu0 0
        %777 = vperm.xlu0 %776, %v659
        %v778 = vpop.permute.xlu0 %777
        %781 = vset.pattern.permute.xlu0 0
        %782 = vperm.xlu0 %781, %v660
        %v783 = vpop.permute.xlu0 %782
        %786 = vset.pattern.permute.xlu0 0
        %787 = vperm.xlu0 %786, %v661
        %v788 = vpop.permute.xlu0 %787
        %791 = vset.pattern.permute.xlu0 0
        %792 = vperm.xlu0 %791, %v662
        %v793 = vpop.permute.xlu0 %792
        %796 = vset.pattern.permute.xlu0 0
        %797 = vperm.xlu0 %796, %v663
        %v798 = vpop.permute.xlu0 %797
        %801 = vset.pattern.permute.xlu0 0
        %802 = vperm.xlu0 %801, %v664
        %v803 = vpop.permute.xlu0 %802
        %806 = vset.pattern.permute.xlu0 0
        %807 = vperm.xlu0 %806, %v665
        %v808 = vpop.permute.xlu0 %807
        %811 = vset.pattern.permute.xlu0 0
        %812 = vperm.xlu0 %811, %v666
        %v813 = vpop.permute.xlu0 %812
        %816 = vset.pattern.permute.xlu0 0
        %817 = vperm.xlu0 %816, %v667
        %v818 = vpop.permute.xlu0 %817
        %821 = vset.pattern.permute.xlu0 0
        %822 = vperm.xlu0 %821, %v668
        %v823 = vpop.permute.xlu0 %822
        %826 = vset.pattern.permute.xlu0 0
        %827 = vperm.xlu0 %826, %v669
        %v828 = vpop.permute.xlu0 %827
        %831 = vset.pattern.permute.xlu0 0
        %832 = vperm.xlu0 %831, %v670
        %v833 = vpop.permute.xlu0 %832
        %836 = vset.pattern.permute.xlu0 0
        %837 = vperm.xlu0 %836, %v671
        %v838 = vpop.permute.xlu0 %837
        %841 = vset.pattern.permute.xlu0 0
        %842 = vperm.xlu0 %841, %v672
        %v843 = vpop.permute.xlu0 %842
        %846 = vset.pattern.permute.xlu0 0
        %847 = vperm.xlu0 %846, %v673
        %v848 = vpop.permute.xlu0 %847
        %851 = vset.pattern.permute.xlu0 0
        %852 = vperm.xlu0 %851, %v674
        %v853 = vpop.permute.xlu0 %852
        %856 = vset.pattern.permute.xlu0 0
        %857 = vperm.xlu0 %856, %v675
        %v858 = vpop.permute.xlu0 %857
        %861 = vset.pattern.permute.xlu0 0
        %862 = vperm.xlu0 %861, %v676
        %v863 = vpop.permute.xlu0 %862
        %866 = vset.pattern.permute.xlu0 0
        %867 = vperm.xlu0 %866, %v677
        %v868 = vpop.permute.xlu0 %867
        %871 = vset.pattern.permute.xlu0 0
        %872 = vperm.xlu0 %871, %v678
        %v873 = vpop.permute.xlu0 %872
        %876 = vset.pattern.permute.xlu0 0
        %877 = vperm.xlu0 %876, %v679
        %v878 = vpop.permute.xlu0 %877
        %881 = vset.pattern.permute.xlu0 0
        %882 = vperm.xlu0 %881, %v680
        %v883 = vpop.permute.xlu0 %882
        %886 = vset.pattern.permute.xlu0 0
        %887 = vperm.xlu0 %886, %v681
        %v888 = vpop.permute.xlu0 %887
        %891 = vset.pattern.permute.xlu0 0
        %892 = vperm.xlu0 %891, %v682
        %v893 = vpop.permute.xlu0 %892
        %896 = vset.pattern.permute.xlu0 0
        %897 = vperm.xlu0 %896, %v683
        %v898 = vpop.permute.xlu0 %897
        %901 = vset.pattern.permute.xlu0 0
        %902 = vperm.xlu0 %901, %v684
        %v903 = vpop.permute.xlu0 %902
        %906 = vset.pattern.permute.xlu0 0
        %907 = vperm.xlu0 %906, %v685
        %v908 = vpop.permute.xlu0 %907
        %911 = vset.pattern.permute.xlu0 0
        %912 = vperm.xlu0 %911, %v686
        %v913 = vpop.permute.xlu0 %912
        %916 = vset.pattern.permute.xlu0 0
        %917 = vperm.xlu0 %916, %v687
        %v918 = vpop.permute.xlu0 %917
        %921 = vset.pattern.permute.xlu0 0
        %922 = vperm.xlu0 %921, %v688
        %v923 = vpop.permute.xlu0 %922
        %926 = vset.pattern.permute.xlu0 0
        %927 = vperm.xlu0 %926, %v689
        %v928 = vpop.permute.xlu0 %927
        %v978 = vunpack.c.l.b16 %v594
        %v979 = vunpack.c.l.b16 %v595
        %v980 = vunpack.c.l.b16 %v596
        %v981 = vunpack.c.l.b16 %v597
        %v982 = vunpack.c.l.b16 %v598
        %v983 = vunpack.c.l.b16 %v599
        %v984 = vunpack.c.l.b16 %v600
        %v985 = vunpack.c.l.b16 %v601
        %v986 = vunpack.c.l.b16 %v602
        %v987 = vunpack.c.l.b16 %v603
        %v988 = vunpack.c.l.b16 %v604
        %v989 = vunpack.c.l.b16 %v605
        %v990 = vunpack.c.l.b16 %v606
        %v991 = vunpack.c.l.b16 %v607
        %v992 = vunpack.c.l.b16 %v608
        %v993 = vunpack.c.l.b16 %v609
        %v994 = vunpack.c.l.b16 %v610
        %v995 = vunpack.c.l.b16 %v611
        %v996 = vunpack.c.l.b16 %v612
        %v997 = vunpack.c.l.b16 %v613
        %v998 = vunpack.c.l.b16 %v614
        %v999 = vunpack.c.l.b16 %v615
        %v1000 = vunpack.c.l.b16 %v616
        %v1001 = vunpack.c.l.b16 %v617
        %v1002 = vunpack.c.l.b16 %v618
        %v1003 = vunpack.c.l.b16 %v619
        %v1004 = vunpack.c.l.b16 %v620
        %v1005 = vunpack.c.l.b16 %v621
        %v1006 = vunpack.c.l.b16 %v622
        %v1007 = vunpack.c.l.b16 %v623
        %v1008 = vunpack.c.l.b16 %v624
        %v1009 = vunpack.c.l.b16 %v625
        %v1010 = vunpack.c.l.b16 %v626
        %v1011 = vunpack.c.l.b16 %v627
        %v1012 = vunpack.c.l.b16 %v628
        %v1013 = vunpack.c.l.b16 %v629
        %v1014 = vunpack.c.l.b16 %v630
        %v1015 = vunpack.c.l.b16 %v631
        %v1016 = vunpack.c.l.b16 %v632
        %v1017 = vunpack.c.l.b16 %v633
        %v1018 = vunpack.c.l.b16 %v634
        %v1019 = vunpack.c.l.b16 %v635
        %v1020 = vunpack.c.l.b16 %v636
        %v1021 = vunpack.c.l.b16 %v637
        %v1022 = vunpack.c.l.b16 %v638
        %v1023 = vunpack.c.l.b16 %v639
        %v1024 = vunpack.c.l.b16 %v640
        %v1025 = vunpack.c.l.b16 %v641
        %v1026 = vpack.c.b16 %v979, %v978
        %v1027 = vpack.c.b16 %v981, %v980
        %v1028 = vpack.c.b16 %v983, %v982
        %v1029 = vpack.c.b16 %v985, %v984
        %v1030 = vpack.c.b16 %v987, %v986
        %v1031 = vpack.c.b16 %v989, %v988
        %v1032 = vpack.c.b16 %v991, %v990
        %v1033 = vpack.c.b16 %v993, %v992
        %v1034 = vpack.c.b16 %v995, %v994
        %v1035 = vpack.c.b16 %v997, %v996
        %v1036 = vpack.c.b16 %v999, %v998
        %v1037 = vpack.c.b16 %v1001, %v1000
        %v1038 = vpack.c.b16 %v1003, %v1002
        %v1039 = vpack.c.b16 %v1005, %v1004
        %v1040 = vpack.c.b16 %v1007, %v1006
        %v1041 = vpack.c.b16 %v1009, %v1008
        %v1042 = vpack.c.b16 %v1011, %v1010
        %v1043 = vpack.c.b16 %v1013, %v1012
        %v1044 = vpack.c.b16 %v1015, %v1014
        %v1045 = vpack.c.b16 %v1017, %v1016
        %v1046 = vpack.c.b16 %v1019, %v1018
        %v1047 = vpack.c.b16 %v1021, %v1020
        %v1048 = vpack.c.b16 %v1023, %v1022
        %v1049 = vpack.c.b16 %v1025, %v1024
        %v1090 = vunpack.c.l.b16 %v498
        %v1091 = vunpack.c.h.b16 %v498
        %v1092 = vunpack.c.l.b16 %v499
        %v1093 = vunpack.c.h.b16 %v499
        %v1094 = vunpack.c.l.b16 %v500
        %v1095 = vunpack.c.h.b16 %v500
        %v1096 = vunpack.c.l.b16 %v501
        %v1097 = vunpack.c.h.b16 %v501
        %v1098 = vunpack.c.l.b16 %v502
        %v1099 = vunpack.c.h.b16 %v502
        %v1100 = vunpack.c.l.b16 %v503
        %v1101 = vunpack.c.h.b16 %v503
        %v1102 = vunpack.c.l.b16 %v504
        %v1103 = vunpack.c.h.b16 %v504
        %v1104 = vunpack.c.l.b16 %v505
        %v1105 = vunpack.c.h.b16 %v505
        %v1106 = vunpack.c.l.b16 %v506
        %v1107 = vunpack.c.h.b16 %v506
        %v1108 = vunpack.c.l.b16 %v507
        %v1109 = vunpack.c.h.b16 %v507
        %v1110 = vunpack.c.l.b16 %v508
        %v1111 = vunpack.c.h.b16 %v508
        %v1112 = vunpack.c.l.b16 %v509
        %v1113 = vunpack.c.h.b16 %v509
        %v1114 = vunpack.c.l.b16 %v510
        %v1115 = vunpack.c.h.b16 %v510
        %v1116 = vunpack.c.l.b16 %v511
        %v1117 = vunpack.c.h.b16 %v511
        %v1118 = vunpack.c.l.b16 %v512
        %v1119 = vunpack.c.h.b16 %v512
        %v1120 = vunpack.c.l.b16 %v513
        %v1121 = vunpack.c.h.b16 %v513
        %v1122 = vpack.c.b16 %v1092, %v1090
        %v1123 = vpack.c.b16 %v1093, %v1091
        %v1124 = vpack.c.b16 %v1096, %v1094
        %v1125 = vpack.c.b16 %v1097, %v1095
        %v1126 = vpack.c.b16 %v1100, %v1098
        %v1127 = vpack.c.b16 %v1101, %v1099
        %v1128 = vpack.c.b16 %v1104, %v1102
        %v1129 = vpack.c.b16 %v1105, %v1103
        %v1130 = vpack.c.b16 %v1108, %v1106
        %v1131 = vpack.c.b16 %v1109, %v1107
        %v1132 = vpack.c.b16 %v1112, %v1110
        %v1133 = vpack.c.b16 %v1113, %v1111
        %v1134 = vpack.c.b16 %v1116, %v1114
        %v1135 = vpack.c.b16 %v1117, %v1115
        %v1136 = vpack.c.b16 %v1120, %v1118
        %v1137 = vpack.c.b16 %v1121, %v1119
        %1154 = vmatprep.subr.bf16.mxu0 %v1123
        %1155 = vmatpush1.bf16.msra.mxu0 %v1122
        %1156 = vmatprep.subr.bf16.mxu0 %v1125
        %1157 = vmatpush1.bf16.msra.mxu0 %v1124
        %1158 = vmatprep.subr.bf16.mxu0 %v1127
        %1159 = vmatpush1.bf16.msra.mxu0 %v1126
        %1160 = vmatprep.subr.bf16.mxu0 %v1129
        %1161 = vmatpush1.bf16.msra.mxu0 %v1128
        %1162 = vmatprep.subr.bf16.mxu0 %v1131
        %1163 = vmatpush1.bf16.msra.mxu0 %v1130
        %1164 = vmatprep.subr.bf16.mxu0 %v1133
        %1165 = vmatpush1.bf16.msra.mxu0 %v1132
        %1166 = vmatprep.subr.bf16.mxu0 %v1135
        %1167 = vmatpush1.bf16.msra.mxu0 %v1134
        %1168 = vmatprep.subr.bf16.mxu0 %v1137
        %1169 = vmatpush1.bf16.msra.mxu0 %v1136
        %1170 = vmatprep.subr.bf16.mxu0 0
        %1171 = vmatpush1.bf16.msra.mxu0 0
        %1172 = vmatprep.subr.bf16.mxu0 0
        %1173 = vmatpush1.bf16.msra.mxu0 0
        %1174 = vmatprep.subr.bf16.mxu0 0
        %1175 = vmatpush1.bf16.msra.mxu0 0
        %1176 = vmatprep.subr.bf16.mxu0 0
        %1177 = vmatpush1.bf16.msra.mxu0 0
        %1178 = vmatprep.subr.bf16.mxu0 0
        %1179 = vmatpush1.bf16.msra.mxu0 0
        %1180 = vmatprep.subr.bf16.mxu0 0
        %1181 = vmatpush1.bf16.msra.mxu0 0
        %1182 = vmatprep.subr.bf16.mxu0 0
        %1183 = vmatpush1.bf16.msra.mxu0 0
        %1184 = vmatprep.subr.bf16.mxu0 0
        %1185 = vmatpush1.bf16.msra.mxu0 0
        %1186 = vmatprep.mubr.bf16.mxu0 0
        %1187 = vmatmul.mubr.bf16.gmra.mrb[0].mxu0 %v1026
        %v1188 = vpop.f32.mrb[0].mxu0
        %v1189 = vadd.f32 %v693, %v1188
        %v1190 = vpop.f32.mrb[0].mxu0
        %v1191 = vadd.f32 %v693, %v1190
        %v1192 = vpop.f32.mrb[0].mxu0
        %v1193 = vadd.f32 %v698, %v1192
        %v1194 = vpop.f32.mrb[0].mxu0
        %v1195 = vadd.f32 %v698, %v1194
        %1196 = vmatprep.mubr.bf16.mxu0 0
        %1197 = vmatmul.mubr.bf16.gmra.mrb[0].mxu0 %v1027
        %v1198 = vpop.f32.mrb[0].mxu0
        %v1199 = vadd.f32 %v703, %v1198
        %v1200 = vpop.f32.mrb[0].mxu0
        %v1201 = vadd.f32 %v703, %v1200
        %v1202 = vpop.f32.mrb[0].mxu0
        %v1203 = vadd.f32 %v708, %v1202
        %v1204 = vpop.f32.mrb[0].mxu0
        %v1205 = vadd.f32 %v708, %v1204
        %1206 = vmatprep.mubr.bf16.mxu0 0
        %1207 = vmatmul.mubr.bf16.gmra.mrb[0].mxu0 %v1028
        %v1208 = vpop.f32.mrb[0].mxu0
        %v1209 = vadd.f32 %v713, %v1208
        %v1210 = vpop.f32.mrb[0].mxu0
        %v1211 = vadd.f32 %v713, %v1210
        %v1212 = vpop.f32.mrb[0].mxu0
        %v1213 = vadd.f32 %v718, %v1212
        %v1214 = vpop.f32.mrb[0].mxu0
        %v1215 = vadd.f32 %v718, %v1214
        %1216 = vmatprep.mubr.bf16.mxu0 0
        %1217 = vmatmul.mubr.bf16.gmra.mrb[0].mxu0 %v1029
        %v1218 = vpop.f32.mrb[0].mxu0
        %v1219 = vadd.f32 %v723, %v1218
        %v1220 = vpop.f32.mrb[0].mxu0
        %v1221 = vadd.f32 %v723, %v1220
        %v1222 = vpop.f32.mrb[0].mxu0
        %v1223 = vadd.f32 %v728, %v1222
        %v1224 = vpop.f32.mrb[0].mxu0
        %v1225 = vadd.f32 %v728, %v1224
        %1226 = vmatprep.mubr.bf16.mxu0 0
        %1227 = vmatmul.mubr.bf16.gmra.mrb[0].mxu0 %v1030
        %v1228 = vpop.f32.mrb[0].mxu0
        %v1229 = vadd.f32 %v733, %v1228
        %v1230 = vpop.f32.mrb[0].mxu0
        %v1231 = vadd.f32 %v733, %v1230
        %v1232 = vpop.f32.mrb[0].mxu0
        %v1233 = vadd.f32 %v738, %v1232
        %v1234 = vpop.f32.mrb[0].mxu0
        %v1235 = vadd.f32 %v738, %v1234
        %1236 = vmatprep.mubr.bf16.mxu0 0
        %1237 = vmatmul.mubr.bf16.gmra.mrb[0].mxu0 %v1031
        %v1238 = vpop.f32.mrb[0].mxu0
        %v1239 = vadd.f32 %v743, %v1238
        %v1240 = vpop.f32.mrb[0].mxu0
        %v1241 = vadd.f32 %v743, %v1240
        %v1242 = vpop.f32.mrb[0].mxu0
        %v1243 = vadd.f32 %v748, %v1242
        %v1244 = vpop.f32.mrb[0].mxu0
        %v1245 = vadd.f32 %v748, %v1244
        %1246 = vmatprep.mubr.bf16.mxu0 0
        %1247 = vmatmul.mubr.bf16.gmra.mrb[0].mxu0 %v1032
        %v1248 = vpop.f32.mrb[0].mxu0
        %v1249 = vadd.f32 %v753, %v1248
        %v1250 = vpop.f32.mrb[0].mxu0
        %v1251 = vadd.f32 %v753, %v1250
        %v1252 = vpop.f32.mrb[0].mxu0
        %v1253 = vadd.f32 %v758, %v1252
        %v1254 = vpop.f32.mrb[0].mxu0
        %v1255 = vadd.f32 %v758, %v1254
        %1256 = vmatprep.mubr.bf16.mxu0 0
        %1257 = vmatmul.mubr.bf16.gmra.mrb[0].mxu0 %v1033
        %v1258 = vpop.f32.mrb[0].mxu0
        %v1259 = vadd.f32 %v763, %v1258
        %v1260 = vpop.f32.mrb[0].mxu0
        %v1261 = vadd.f32 %v763, %v1260
        %v1262 = vpop.f32.mrb[0].mxu0
        %v1263 = vadd.f32 %v768, %v1262
        %v1264 = vpop.f32.mrb[0].mxu0
        %v1265 = vadd.f32 %v768, %v1264
        %1266 = vmatprep.mubr.bf16.mxu0 0
        %1267 = vmatmul.mubr.bf16.gmra.mrb[0].mxu0 %v1034
        %v1268 = vpop.f32.mrb[0].mxu0
        %v1269 = vadd.f32 %v773, %v1268
        %v1270 = vpop.f32.mrb[0].mxu0
        %v1271 = vadd.f32 %v773, %v1270
        %v1272 = vpop.f32.mrb[0].mxu0
        %v1273 = vadd.f32 %v778, %v1272
        %v1274 = vpop.f32.mrb[0].mxu0
        %v1275 = vadd.f32 %v778, %v1274
        %1276 = vmatprep.mubr.bf16.mxu0 0
        %1277 = vmatmul.mubr.bf16.gmra.mrb[0].mxu0 %v1035
        %v1278 = vpop.f32.mrb[0].mxu0
        %v1279 = vadd.f32 %v783, %v1278
        %v1280 = vpop.f32.mrb[0].mxu0
        %v1281 = vadd.f32 %v783, %v1280
        %v1282 = vpop.f32.mrb[0].mxu0
        %v1283 = vadd.f32 %v788, %v1282
        %v1284 = vpop.f32.mrb[0].mxu0
        %v1285 = vadd.f32 %v788, %v1284
        %1286 = vmatprep.mubr.bf16.mxu0 0
        %1287 = vmatmul.mubr.bf16.gmra.mrb[0].mxu0 %v1036
        %v1288 = vpop.f32.mrb[0].mxu0
        %v1289 = vadd.f32 %v793, %v1288
        %v1290 = vpop.f32.mrb[0].mxu0
        %v1291 = vadd.f32 %v793, %v1290
        %v1292 = vpop.f32.mrb[0].mxu0
        %v1293 = vadd.f32 %v798, %v1292
        %v1294 = vpop.f32.mrb[0].mxu0
        %v1295 = vadd.f32 %v798, %v1294
        %1296 = vmatprep.mubr.bf16.mxu0 0
        %1297 = vmatmul.mubr.bf16.gmra.mrb[0].mxu0 %v1037
        %v1298 = vpop.f32.mrb[0].mxu0
        %v1299 = vadd.f32 %v803, %v1298
        %v1300 = vpop.f32.mrb[0].mxu0
        %v1301 = vadd.f32 %v803, %v1300
        %v1302 = vpop.f32.mrb[0].mxu0
        %v1303 = vadd.f32 %v808, %v1302
        %v1304 = vpop.f32.mrb[0].mxu0
        %v1305 = vadd.f32 %v808, %v1304
        %1306 = vmatprep.mubr.bf16.mxu0 0
        %1307 = vmatmul.mubr.bf16.gmra.mrb[0].mxu0 %v1038
        %v1308 = vpop.f32.mrb[0].mxu0
        %v1309 = vadd.f32 %v813, %v1308
        %v1310 = vpop.f32.mrb[0].mxu0
        %v1311 = vadd.f32 %v813, %v1310
        %v1312 = vpop.f32.mrb[0].mxu0
        %v1313 = vadd.f32 %v818, %v1312
        %v1314 = vpop.f32.mrb[0].mxu0
        %v1315 = vadd.f32 %v818, %v1314
        %1316 = vmatprep.mubr.bf16.mxu0 0
        %1317 = vmatmul.mubr.bf16.gmra.mrb[0].mxu0 %v1039
        %v1318 = vpop.f32.mrb[0].mxu0
        %v1319 = vadd.f32 %v823, %v1318
        %v1320 = vpop.f32.mrb[0].mxu0
        %v1321 = vadd.f32 %v823, %v1320
        %v1322 = vpop.f32.mrb[0].mxu0
        %v1323 = vadd.f32 %v828, %v1322
        %v1324 = vpop.f32.mrb[0].mxu0
        %v1325 = vadd.f32 %v828, %v1324
        %1326 = vmatprep.mubr.bf16.mxu0 0
        %1327 = vmatmul.mubr.bf16.gmra.mrb[0].mxu0 %v1040
        %v1328 = vpop.f32.mrb[0].mxu0
        %v1329 = vadd.f32 %v833, %v1328
        %v1330 = vpop.f32.mrb[0].mxu0
        %v1331 = vadd.f32 %v833, %v1330
        %v1332 = vpop.f32.mrb[0].mxu0
        %v1333 = vadd.f32 %v838, %v1332
        %v1334 = vpop.f32.mrb[0].mxu0
        %v1335 = vadd.f32 %v838, %v1334
        %1336 = vmatprep.mubr.bf16.mxu0 0
        %1337 = vmatmul.mubr.bf16.gmra.mrb[0].mxu0 %v1041
        %v1338 = vpop.f32.mrb[0].mxu0
        %v1339 = vadd.f32 %v843, %v1338
        %v1340 = vpop.f32.mrb[0].mxu0
        %v1341 = vadd.f32 %v843, %v1340
        %v1342 = vpop.f32.mrb[0].mxu0
        %v1343 = vadd.f32 %v848, %v1342
        %v1344 = vpop.f32.mrb[0].mxu0
        %v1345 = vadd.f32 %v848, %v1344
        %1346 = vmatprep.mubr.bf16.mxu0 0
        %1347 = vmatmul.mubr.bf16.gmra.mrb[0].mxu0 %v1042
        %v1348 = vpop.f32.mrb[0].mxu0
        %v1349 = vadd.f32 %v853, %v1348
        %v1350 = vpop.f32.mrb[0].mxu0
        %v1351 = vadd.f32 %v853, %v1350
        %v1352 = vpop.f32.mrb[0].mxu0
        %v1353 = vadd.f32 %v858, %v1352
        %v1354 = vpop.f32.mrb[0].mxu0
        %v1355 = vadd.f32 %v858, %v1354
        %1356 = vmatprep.mubr.bf16.mxu0 0
        %1357 = vmatmul.mubr.bf16.gmra.mrb[0].mxu0 %v1043
        %v1358 = vpop.f32.mrb[0].mxu0
        %v1359 = vadd.f32 %v863, %v1358
        %v1360 = vpop.f32.mrb[0].mxu0
        %v1361 = vadd.f32 %v863, %v1360
        %v1362 = vpop.f32.mrb[0].mxu0
        %v1363 = vadd.f32 %v868, %v1362
        %v1364 = vpop.f32.mrb[0].mxu0
        %v1365 = vadd.f32 %v868, %v1364
        %1366 = vmatprep.mubr.bf16.mxu0 0
        %1367 = vmatmul.mubr.bf16.gmra.mrb[0].mxu0 %v1044
        %v1368 = vpop.f32.mrb[0].mxu0
        %v1369 = vadd.f32 %v873, %v1368
        %v1370 = vpop.f32.mrb[0].mxu0
        %v1371 = vadd.f32 %v873, %v1370
        %v1372 = vpop.f32.mrb[0].mxu0
        %v1373 = vadd.f32 %v878, %v1372
        %v1374 = vpop.f32.mrb[0].mxu0
        %v1375 = vadd.f32 %v878, %v1374
        %1376 = vmatprep.mubr.bf16.mxu0 0
        %1377 = vmatmul.mubr.bf16.gmra.mrb[0].mxu0 %v1045
        %v1378 = vpop.f32.mrb[0].mxu0
        %v1379 = vadd.f32 %v883, %v1378
        %v1380 = vpop.f32.mrb[0].mxu0
        %v1381 = vadd.f32 %v883, %v1380
        %v1382 = vpop.f32.mrb[0].mxu0
        %v1383 = vadd.f32 %v888, %v1382
        %v1384 = vpop.f32.mrb[0].mxu0
        %v1385 = vadd.f32 %v888, %v1384
        %1386 = vmatprep.mubr.bf16.mxu0 0
        %1387 = vmatmul.mubr.bf16.gmra.mrb[0].mxu0 %v1046
        %v1388 = vpop.f32.mrb[0].mxu0
        %v1389 = vadd.f32 %v893, %v1388
        %v1390 = vpop.f32.mrb[0].mxu0
        %v1391 = vadd.f32 %v893, %v1390
        %v1392 = vpop.f32.mrb[0].mxu0
        %v1393 = vadd.f32 %v898, %v1392
        %v1394 = vpop.f32.mrb[0].mxu0
        %v1395 = vadd.f32 %v898, %v1394
        %1396 = vmatprep.mubr.bf16.mxu0 0
        %1397 = vmatmul.mubr.bf16.gmra.mrb[0].mxu0 %v1047
        %v1398 = vpop.f32.mrb[0].mxu0
        %v1399 = vadd.f32 %v903, %v1398
        %v1400 = vpop.f32.mrb[0].mxu0
        %v1401 = vadd.f32 %v903, %v1400
        %v1402 = vpop.f32.mrb[0].mxu0
        %v1403 = vadd.f32 %v908, %v1402
        %v1404 = vpop.f32.mrb[0].mxu0
        %v1405 = vadd.f32 %v908, %v1404
        %1406 = vmatprep.mubr.bf16.mxu0 0
        %1407 = vmatmul.mubr.bf16.gmra.mrb[0].mxu0 %v1048
        %v1408 = vpop.f32.mrb[0].mxu0
        %v1409 = vadd.f32 %v913, %v1408
        %v1410 = vpop.f32.mrb[0].mxu0
        %v1411 = vadd.f32 %v913, %v1410
        %v1412 = vpop.f32.mrb[0].mxu0
        %v1413 = vadd.f32 %v918, %v1412
        %v1414 = vpop.f32.mrb[0].mxu0
        %v1415 = vadd.f32 %v918, %v1414
        %1416 = vmatprep.mubr.bf16.mxu0 0
        %1417 = vmatmul.mubr.bf16.gmra.mrb[0].mxu0 %v1049
        %v1418 = vpop.f32.mrb[0].mxu0
        %v1419 = vadd.f32 %v923, %v1418
        %v1420 = vpop.f32.mrb[0].mxu0
        %v1421 = vadd.f32 %v923, %v1420
        %v1422 = vpop.f32.mrb[0].mxu0
        %v1423 = vadd.f32 %v928, %v1422
        %v1424 = vpop.f32.mrb[0].mxu0
        %v1425 = vadd.f32 %v928, %v1424
        %1426 = vdwg.mxu0
        %v1427 = vld [vmem:[%s5] sm:$0xf]
        %v1428 = vld [vmem:[%s5 + $0x4] sm:$0xf]
        %v1429 = vld [vmem:[%s5 + $0x8] sm:$0xf]
        %v1430 = vld [vmem:[%s5 + $0xc] sm:$0xf]
        %v1431 = vld [vmem:[%s5 + $0x10] sm:$0xf]
        %v1432 = vld [vmem:[%s5 + $0x14] sm:$0xf]
        %v1433 = vld [vmem:[%s5 + $0x18] sm:$0xf]
        %v1434 = vld [vmem:[%s5 + $0x1c] sm:$0xf]
        %v1435 = vld [vmem:[%s5 + $0x20] sm:$0xf]
        %v1436 = vld [vmem:[%s5 + $0x24] sm:$0xf]
        %v1437 = vld [vmem:[%s5 + $0x28] sm:$0xf]
        %v1438 = vld [vmem:[%s5 + $0x2c] sm:$0xf]
        %v1439 = vld [vmem:[%s5 + $0x30] sm:$0xf]
        %v1440 = vld [vmem:[%s5 + $0x34] sm:$0xf]
        %v1441 = vld [vmem:[%s5 + $0x38] sm:$0xf]
        %v1442 = vld [vmem:[%s5 + $0x3c] sm:$0xf]
        %v1443 = vld [vmem:[%s5 + $0x40] sm:$0xf]
        %v1444 = vld [vmem:[%s5 + $0x44] sm:$0xf]
        %v1445 = vld [vmem:[%s5 + $0x48] sm:$0xf]
        %v1446 = vld [vmem:[%s5 + $0x4c] sm:$0xf]
        %v1447 = vld [vmem:[%s5 + $0x50] sm:$0xf]
        %v1448 = vld [vmem:[%s5 + $0x54] sm:$0xf]
        %v1449 = vld [vmem:[%s5 + $0x58] sm:$0xf]
        %v1450 = vld [vmem:[%s5 + $0x5c] sm:$0xf]
        %v1451 = vld [vmem:[%s5 + $0x60] sm:$0xf]
        %v1452 = vld [vmem:[%s5 + $0x64] sm:$0xf]
        %v1453 = vld [vmem:[%s5 + $0x68] sm:$0xf]
        %v1454 = vld [vmem:[%s5 + $0x6c] sm:$0xf]
        %v1455 = vld [vmem:[%s5 + $0x70] sm:$0xf]
        %v1456 = vld [vmem:[%s5 + $0x74] sm:$0xf]
        %v1457 = vld [vmem:[%s5 + $0x78] sm:$0xf]
        %v1458 = vld [vmem:[%s5 + $0x7c] sm:$0xf]
        %v1459 = vld [vmem:[%s5 + $0x80] sm:$0xf]
        %v1460 = vld [vmem:[%s5 + $0x84] sm:$0xf]
        %v1461 = vld [vmem:[%s5 + $0x88] sm:$0xf]
        %v1462 = vld [vmem:[%s5 + $0x8c] sm:$0xf]
        %v1463 = vld [vmem:[%s5 + $0x90] sm:$0xf]
        %v1464 = vld [vmem:[%s5 + $0x94] sm:$0xf]
        %v1465 = vld [vmem:[%s5 + $0x98] sm:$0xf]
        %v1466 = vld [vmem:[%s5 + $0x9c] sm:$0xf]
        %v1467 = vld [vmem:[%s5 + $0xa0] sm:$0xf]
        %v1468 = vld [vmem:[%s5 + $0xa4] sm:$0xf]
        %v1469 = vld [vmem:[%s5 + $0xa8] sm:$0xf]
        %v1470 = vld [vmem:[%s5 + $0xac] sm:$0xf]
        %v1471 = vld [vmem:[%s5 + $0xb0] sm:$0xf]
        %v1472 = vld [vmem:[%s5 + $0xb4] sm:$0xf]
        %v1473 = vld [vmem:[%s5 + $0xb8] sm:$0xf]
        %v1474 = vld [vmem:[%s5 + $0xbc] sm:$0xf]
        %v1475 = vld [vmem:[%s6] sm:$0xff]
        %v1476 = vld [vmem:[%s6 + $0x8] sm:$0xff]
        %v1477 = vld [vmem:[%s6 + $0x10] sm:$0xff]
        %v1478 = vld [vmem:[%s6 + $0x18] sm:$0xff]
        %v1479 = vld [vmem:[%s6 + $0x20] sm:$0xff]
        %v1480 = vld [vmem:[%s6 + $0x28] sm:$0xff]
        %v1481 = vld [vmem:[%s6 + $0x30] sm:$0xff]
        %v1482 = vld [vmem:[%s6 + $0x38] sm:$0xff]
        %v1483 = vld [vmem:[%s6 + $0x40] sm:$0xff]
        %v1484 = vld [vmem:[%s6 + $0x48] sm:$0xff]
        %v1485 = vld [vmem:[%s6 + $0x50] sm:$0xff]
        %v1486 = vld [vmem:[%s6 + $0x58] sm:$0xff]
        %v1487 = vld [vmem:[%s6 + $0x60] sm:$0xff]
        %v1488 = vld [vmem:[%s6 + $0x68] sm:$0xff]
        %v1489 = vld [vmem:[%s6 + $0x70] sm:$0xff]
        %v1490 = vld [vmem:[%s6 + $0x78] sm:$0xff]
        %v1491 = vld [vmem:[%s6 + $0x80] sm:$0xff]
        %v1492 = vld [vmem:[%s6 + $0x88] sm:$0xff]
        %v1493 = vld [vmem:[%s6 + $0x90] sm:$0xff]
        %v1494 = vld [vmem:[%s6 + $0x98] sm:$0xff]
        %v1495 = vld [vmem:[%s6 + $0xa0] sm:$0xff]
        %v1496 = vld [vmem:[%s6 + $0xa8] sm:$0xff]
        %v1497 = vld [vmem:[%s6 + $0xb0] sm:$0xff]
        %v1498 = vld [vmem:[%s6 + $0xb8] sm:$0xff]
        %v1499 = vld [vmem:[%s6 + $0xc0] sm:$0xff]
        %v1500 = vld [vmem:[%s6 + $0xc8] sm:$0xff]
        %v1501 = vld [vmem:[%s6 + $0xd0] sm:$0xff]
        %v1502 = vld [vmem:[%s6 + $0xd8] sm:$0xff]
        %v1503 = vld [vmem:[%s6 + $0xe0] sm:$0xff]
        %v1504 = vld [vmem:[%s6 + $0xe8] sm:$0xff]
        %v1505 = vld [vmem:[%s6 + $0xf0] sm:$0xff]
        %v1506 = vld [vmem:[%s6 + $0xf8] sm:$0xff]
        %v1507 = vld [vmem:[%s6 + $0x100] sm:$0xff]
        %v1508 = vld [vmem:[%s6 + $0x108] sm:$0xff]
        %v1509 = vld [vmem:[%s6 + $0x110] sm:$0xff]
        %v1510 = vld [vmem:[%s6 + $0x118] sm:$0xff]
        %v1511 = vld [vmem:[%s6 + $0x120] sm:$0xff]
        %v1512 = vld [vmem:[%s6 + $0x128] sm:$0xff]
        %v1513 = vld [vmem:[%s6 + $0x130] sm:$0xff]
        %v1514 = vld [vmem:[%s6 + $0x138] sm:$0xff]
        %v1515 = vld [vmem:[%s6 + $0x140] sm:$0xff]
        %v1516 = vld [vmem:[%s6 + $0x148] sm:$0xff]
        %v1517 = vld [vmem:[%s6 + $0x150] sm:$0xff]
        %v1518 = vld [vmem:[%s6 + $0x158] sm:$0xff]
        %v1519 = vld [vmem:[%s6 + $0x160] sm:$0xff]
        %v1520 = vld [vmem:[%s6 + $0x168] sm:$0xff]
        %v1521 = vld [vmem:[%s6 + $0x170] sm:$0xff]
        %v1522 = vld [vmem:[%s6 + $0x178] sm:$0xff]
        %1524 = vset.pattern.permute.xlu0 0
        %1525 = vperm.xlu0 %1524, %v1475
        %v1526 = vpop.permute.xlu0 %1525
        %1529 = vset.pattern.permute.xlu0 0
        %1530 = vperm.xlu0 %1529, %v1476
        %v1531 = vpop.permute.xlu0 %1530
        %1534 = vset.pattern.permute.xlu0 0
        %1535 = vperm.xlu0 %1534, %v1477
        %v1536 = vpop.permute.xlu0 %1535
        %1539 = vset.pattern.permute.xlu0 0
        %1540 = vperm.xlu0 %1539, %v1478
        %v1541 = vpop.permute.xlu0 %1540
        %1544 = vset.pattern.permute.xlu0 0
        %1545 = vperm.xlu0 %1544, %v1479
        %v1546 = vpop.permute.xlu0 %1545
        %1549 = vset.pattern.permute.xlu0 0
        %1550 = vperm.xlu0 %1549, %v1480
        %v1551 = vpop.permute.xlu0 %1550
        %1554 = vset.pattern.permute.xlu0 0
        %1555 = vperm.xlu0 %1554, %v1481
        %v1556 = vpop.permute.xlu0 %1555
        %1559 = vset.pattern.permute.xlu0 0
        %1560 = vperm.xlu0 %1559, %v1482
        %v1561 = vpop.permute.xlu0 %1560
        %1564 = vset.pattern.permute.xlu0 0
        %1565 = vperm.xlu0 %1564, %v1483
        %v1566 = vpop.permute.xlu0 %1565
        %1569 = vset.pattern.permute.xlu0 0
        %1570 = vperm.xlu0 %1569, %v1484
        %v1571 = vpop.permute.xlu0 %1570
        %1574 = vset.pattern.permute.xlu0 0
        %1575 = vperm.xlu0 %1574, %v1485
        %v1576 = vpop.permute.xlu0 %1575
        %1579 = vset.pattern.permute.xlu0 0
        %1580 = vperm.xlu0 %1579, %v1486
        %v1581 = vpop.permute.xlu0 %1580
        %1584 = vset.pattern.permute.xlu0 0
        %1585 = vperm.xlu0 %1584, %v1487
        %v1586 = vpop.permute.xlu0 %1585
        %1589 = vset.pattern.permute.xlu0 0
        %1590 = vperm.xlu0 %1589, %v1488
        %v1591 = vpop.permute.xlu0 %1590
        %1594 = vset.pattern.permute.xlu0 0
        %1595 = vperm.xlu0 %1594, %v1489
        %v1596 = vpop.permute.xlu0 %1595
        %1599 = vset.pattern.permute.xlu0 0
        %1600 = vperm.xlu0 %1599, %v1490
        %v1601 = vpop.permute.xlu0 %1600
        %1604 = vset.pattern.permute.xlu0 0
        %1605 = vperm.xlu0 %1604, %v1491
        %v1606 = vpop.permute.xlu0 %1605
        %1609 = vset.pattern.permute.xlu0 0
        %1610 = vperm.xlu0 %1609, %v1492
        %v1611 = vpop.permute.xlu0 %1610
        %1614 = vset.pattern.permute.xlu0 0
        %1615 = vperm.xlu0 %1614, %v1493
        %v1616 = vpop.permute.xlu0 %1615
        %1619 = vset.pattern.permute.xlu0 0
        %1620 = vperm.xlu0 %1619, %v1494
        %v1621 = vpop.permute.xlu0 %1620
        %1624 = vset.pattern.permute.xlu0 0
        %1625 = vperm.xlu0 %1624, %v1495
        %v1626 = vpop.permute.xlu0 %1625
        %1629 = vset.pattern.permute.xlu0 0
        %1630 = vperm.xlu0 %1629, %v1496
        %v1631 = vpop.permute.xlu0 %1630
        %1634 = vset.pattern.permute.xlu0 0
        %1635 = vperm.xlu0 %1634, %v1497
        %v1636 = vpop.permute.xlu0 %1635
        %1639 = vset.pattern.permute.xlu0 0
        %1640 = vperm.xlu0 %1639, %v1498
        %v1641 = vpop.permute.xlu0 %1640
        %1644 = vset.pattern.permute.xlu0 0
        %1645 = vperm.xlu0 %1644, %v1499
        %v1646 = vpop.permute.xlu0 %1645
        %1649 = vset.pattern.permute.xlu0 0
        %1650 = vperm.xlu0 %1649, %v1500
        %v1651 = vpop.permute.xlu0 %1650
        %1654 = vset.pattern.permute.xlu0 0
        %1655 = vperm.xlu0 %1654, %v1501
        %v1656 = vpop.permute.xlu0 %1655
        %1659 = vset.pattern.permute.xlu0 0
        %1660 = vperm.xlu0 %1659, %v1502
        %v1661 = vpop.permute.xlu0 %1660
        %1664 = vset.pattern.permute.xlu0 0
        %1665 = vperm.xlu0 %1664, %v1503
        %v1666 = vpop.permute.xlu0 %1665
        %1669 = vset.pattern.permute.xlu0 0
        %1670 = vperm.xlu0 %1669, %v1504
        %v1671 = vpop.permute.xlu0 %1670
        %1674 = vset.pattern.permute.xlu0 0
        %1675 = vperm.xlu0 %1674, %v1505
        %v1676 = vpop.permute.xlu0 %1675
        %1679 = vset.pattern.permute.xlu0 0
        %1680 = vperm.xlu0 %1679, %v1506
        %v1681 = vpop.permute.xlu0 %1680
        %1684 = vset.pattern.permute.xlu0 0
        %1685 = vperm.xlu0 %1684, %v1507
        %v1686 = vpop.permute.xlu0 %1685
        %1689 = vset.pattern.permute.xlu0 0
        %1690 = vperm.xlu0 %1689, %v1508
        %v1691 = vpop.permute.xlu0 %1690
        %1694 = vset.pattern.permute.xlu0 0
        %1695 = vperm.xlu0 %1694, %v1509
        %v1696 = vpop.permute.xlu0 %1695
        %1699 = vset.pattern.permute.xlu0 0
        %1700 = vperm.xlu0 %1699, %v1510
        %v1701 = vpop.permute.xlu0 %1700
        %1704 = vset.pattern.permute.xlu0 0
        %1705 = vperm.xlu0 %1704, %v1511
        %v1706 = vpop.permute.xlu0 %1705
        %1709 = vset.pattern.permute.xlu0 0
        %1710 = vperm.xlu0 %1709, %v1512
        %v1711 = vpop.permute.xlu0 %1710
        %1714 = vset.pattern.permute.xlu0 0
        %1715 = vperm.xlu0 %1714, %v1513
        %v1716 = vpop.permute.xlu0 %1715
        %1719 = vset.pattern.permute.xlu0 0
        %1720 = vperm.xlu0 %1719, %v1514
        %v1721 = vpop.permute.xlu0 %1720
        %1724 = vset.pattern.permute.xlu0 0
        %1725 = vperm.xlu0 %1724, %v1515
        %v1726 = vpop.permute.xlu0 %1725
        %1729 = vset.pattern.permute.xlu0 0
        %1730 = vperm.xlu0 %1729, %v1516
        %v1731 = vpop.permute.xlu0 %1730
        %1734 = vset.pattern.permute.xlu0 0
        %1735 = vperm.xlu0 %1734, %v1517
        %v1736 = vpop.permute.xlu0 %1735
        %1739 = vset.pattern.permute.xlu0 0
        %1740 = vperm.xlu0 %1739, %v1518
        %v1741 = vpop.permute.xlu0 %1740
        %1744 = vset.pattern.permute.xlu0 0
        %1745 = vperm.xlu0 %1744, %v1519
        %v1746 = vpop.permute.xlu0 %1745
        %1749 = vset.pattern.permute.xlu0 0
        %1750 = vperm.xlu0 %1749, %v1520
        %v1751 = vpop.permute.xlu0 %1750
        %1754 = vset.pattern.permute.xlu0 0
        %1755 = vperm.xlu0 %1754, %v1521
        %v1756 = vpop.permute.xlu0 %1755
        %1759 = vset.pattern.permute.xlu0 0
        %1760 = vperm.xlu0 %1759, %v1522
        %v1761 = vpop.permute.xlu0 %1760
        %v1811 = vunpack.c.l.b16 %v1427
        %v1812 = vunpack.c.l.b16 %v1428
        %v1813 = vunpack.c.l.b16 %v1429
        %v1814 = vunpack.c.l.b16 %v1430
        %v1815 = vunpack.c.l.b16 %v1431
        %v1816 = vunpack.c.l.b16 %v1432
        %v1817 = vunpack.c.l.b16 %v1433
        %v1818 = vunpack.c.l.b16 %v1434
        %v1819 = vunpack.c.l.b16 %v1435
        %v1820 = vunpack.c.l.b16 %v1436
        %v1821 = vunpack.c.l.b16 %v1437
        %v1822 = vunpack.c.l.b16 %v1438
        %v1823 = vunpack.c.l.b16 %v1439
        %v1824 = vunpack.c.l.b16 %v1440
        %v1825 = vunpack.c.l.b16 %v1441
        %v1826 = vunpack.c.l.b16 %v1442
        %v1827 = vunpack.c.l.b16 %v1443
        %v1828 = vunpack.c.l.b16 %v1444
        %v1829 = vunpack.c.l.b16 %v1445
        %v1830 = vunpack.c.l.b16 %v1446
        %v1831 = vunpack.c.l.b16 %v1447
        %v1832 = vunpack.c.l.b16 %v1448
        %v1833 = vunpack.c.l.b16 %v1449
        %v1834 = vunpack.c.l.b16 %v1450
        %v1835 = vunpack.c.l.b16 %v1451
        %v1836 = vunpack.c.l.b16 %v1452
        %v1837 = vunpack.c.l.b16 %v1453
        %v1838 = vunpack.c.l.b16 %v1454
        %v1839 = vunpack.c.l.b16 %v1455
        %v1840 = vunpack.c.l.b16 %v1456
        %v1841 = vunpack.c.l.b16 %v1457
        %v1842 = vunpack.c.l.b16 %v1458
        %v1843 = vunpack.c.l.b16 %v1459
        %v1844 = vunpack.c.l.b16 %v1460
        %v1845 = vunpack.c.l.b16 %v1461
        %v1846 = vunpack.c.l.b16 %v1462
        %v1847 = vunpack.c.l.b16 %v1463
        %v1848 = vunpack.c.l.b16 %v1464
        %v1849 = vunpack.c.l.b16 %v1465
        %v1850 = vunpack.c.l.b16 %v1466
        %v1851 = vunpack.c.l.b16 %v1467
        %v1852 = vunpack.c.l.b16 %v1468
        %v1853 = vunpack.c.l.b16 %v1469
        %v1854 = vunpack.c.l.b16 %v1470
        %v1855 = vunpack.c.l.b16 %v1471
        %v1856 = vunpack.c.l.b16 %v1472
        %v1857 = vunpack.c.l.b16 %v1473
        %v1858 = vunpack.c.l.b16 %v1474
        %v1859 = vpack.c.b16 %v1812, %v1811
        %v1860 = vpack.c.b16 %v1814, %v1813
        %v1861 = vpack.c.b16 %v1816, %v1815
        %v1862 = vpack.c.b16 %v1818, %v1817
        %v1863 = vpack.c.b16 %v1820, %v1819
        %v1864 = vpack.c.b16 %v1822, %v1821
        %v1865 = vpack.c.b16 %v1824, %v1823
        %v1866 = vpack.c.b16 %v1826, %v1825
        %v1867 = vpack.c.b16 %v1828, %v1827
        %v1868 = vpack.c.b16 %v1830, %v1829
        %v1869 = vpack.c.b16 %v1832, %v1831
        %v1870 = vpack.c.b16 %v1834, %v1833
        %v1871 = vpack.c.b16 %v1836, %v1835
        %v1872 = vpack.c.b16 %v1838, %v1837
        %v1873 = vpack.c.b16 %v1840, %v1839
        %v1874 = vpack.c.b16 %v1842, %v1841
        %v1875 = vpack.c.b16 %v1844, %v1843
        %v1876 = vpack.c.b16 %v1846, %v1845
        %v1877 = vpack.c.b16 %v1848, %v1847
        %v1878 = vpack.c.b16 %v1850, %v1849
        %v1879 = vpack.c.b16 %v1852, %v1851
        %v1880 = vpack.c.b16 %v1854, %v1853
        %v1881 = vpack.c.b16 %v1856, %v1855
        %v1882 = vpack.c.b16 %v1858, %v1857
        %v1923 = vunpack.c.l.b16 %v514
        %v1924 = vunpack.c.h.b16 %v514
        %v1925 = vunpack.c.l.b16 %v515
        %v1926 = vunpack.c.h.b16 %v515
        %v1927 = vunpack.c.l.b16 %v516
        %v1928 = vunpack.c.h.b16 %v516
        %v1929 = vunpack.c.l.b16 %v517
        %v1930 = vunpack.c.h.b16 %v517
        %v1931 = vunpack.c.l.b16 %v518
        %v1932 = vunpack.c.h.b16 %v518
        %v1933 = vunpack.c.l.b16 %v519
        %v1934 = vunpack.c.h.b16 %v519
        %v1935 = vunpack.c.l.b16 %v520
        %v1936 = vunpack.c.h.b16 %v520
        %v1937 = vunpack.c.l.b16 %v521
        %v1938 = vunpack.c.h.b16 %v521
        %v1939 = vunpack.c.l.b16 %v522
        %v1940 = vunpack.c.h.b16 %v522
        %v1941 = vunpack.c.l.b16 %v523
        %v1942 = vunpack.c.h.b16 %v523
        %v1943 = vunpack.c.l.b16 %v524
        %v1944 = vunpack.c.h.b16 %v524
        %v1945 = vunpack.c.l.b16 %v525
        %v1946 = vunpack.c.h.b16 %v525
        %v1947 = vunpack.c.l.b16 %v526
        %v1948 = vunpack.c.h.b16 %v526
        %v1949 = vunpack.c.l.b16 %v527
        %v1950 = vunpack.c.h.b16 %v527
        %v1951 = vunpack.c.l.b16 %v528
        %v1952 = vunpack.c.h.b16 %v528
        %v1953 = vunpack.c.l.b16 %v529
        %v1954 = vunpack.c.h.b16 %v529
        %v1955 = vpack.c.b16 %v1925, %v1923
        %v1956 = vpack.c.b16 %v1926, %v1924
        %v1957 = vpack.c.b16 %v1929, %v1927
        %v1958 = vpack.c.b16 %v1930, %v1928
        %v1959 = vpack.c.b16 %v1933, %v1931
        %v1960 = vpack.c.b16 %v1934, %v1932
        %v1961 = vpack.c.b16 %v1937, %v1935
        %v1962 = vpack.c.b16 %v1938, %v1936
        %v1963 = vpack.c.b16 %v1941, %v1939
        %v1964 = vpack.c.b16 %v1942, %v1940
        %v1965 = vpack.c.b16 %v1945, %v1943
        %v1966 = vpack.c.b16 %v1946, %v1944
        %v1967 = vpack.c.b16 %v1949, %v1947
        %v1968 = vpack.c.b16 %v1950, %v1948
        %v1969 = vpack.c.b16 %v1953, %v1951
        %v1970 = vpack.c.b16 %v1954, %v1952
        %1987 = vmatprep.subr.bf16.mxu0 %v1956
        %1988 = vmatpush1.bf16.msra.mxu0 %v1955
        %1989 = vmatprep.subr.bf16.mxu0 %v1958
        %1990 = vmatpush1.bf16.msra.mxu0 %v1957
        %1991 = vmatprep.subr.bf16.mxu0 %v1960
        %1992 = vmatpush1.bf16.msra.mxu0 %v1959
        %1993 = vmatprep.subr.bf16.mxu0 %v1962
        %1994 = vmatpush1.bf16.msra.mxu0 %v1961
        %1995 = vmatprep.subr.bf16.mxu0 %v1964
        %1996 = vmatpush1.bf16.msra.mxu0 %v1963
        %1997 = vmatprep.subr.bf16.mxu0 %v1966
        %1998 = vmatpush1.bf16.msra.mxu0 %v1965
        %1999 = vmatprep.subr.bf16.mxu0 %v1968
        %2000 = vmatpush1.bf16.msra.mxu0 %v1967
        %2001 = vmatprep.subr.bf16.mxu0 %v1970
        %2002 = vmatpush1.bf16.msra.mxu0 %v1969
        %2003 = vmatprep.subr.bf16.mxu0 0
        %2004 = vmatpush1.bf16.msra.mxu0 0
        %2005 = vmatprep.subr.bf16.mxu0 0
        %2006 = vmatpush1.bf16.msra.mxu0 0
        %2007 = vmatprep.subr.bf16.mxu0 0
        %2008 = vmatpush1.bf16.msra.mxu0 0
        %2009 = vmatprep.subr.bf16.mxu0 0
        %2010 = vmatpush1.bf16.msra.mxu0 0
        %2011 = vmatprep.subr.bf16.mxu0 0
        %2012 = vmatpush1.bf16.msra.mxu0 0
        %2013 = vmatprep.subr.bf16.mxu0 0
        %2014 = vmatpush1.bf16.msra.mxu0 0
        %2015 = vmatprep.subr.bf16.mxu0 0
        %2016 = vmatpush1.bf16.msra.mxu0 0
        %2017 = vmatprep.subr.bf16.mxu0 0
        %2018 = vmatpush1.bf16.msra.mxu0 0
        %2019 = vmatprep.mubr.bf16.mxu0 0
        %2020 = vmatmul.mubr.bf16.gmra.mrb[0].mxu0 %v1859
        %v2021 = vpop.f32.mrb[0].mxu0
        %v2022 = vadd.f32 %v1526, %v2021
        %v2023 = vpop.f32.mrb[0].mxu0
        %v2024 = vadd.f32 %v1526, %v2023
        %v2025 = vpop.f32.mrb[0].mxu0
        %v2026 = vadd.f32 %v1531, %v2025
        %v2027 = vpop.f32.mrb[0].mxu0
        %v2028 = vadd.f32 %v1531, %v2027
        %2029 = vmatprep.mubr.bf16.mxu0 0
        %2030 = vmatmul.mubr.bf16.gmra.mrb[0].mxu0 %v1860
        %v2031 = vpop.f32.mrb[0].mxu0
        %v2032 = vadd.f32 %v1536, %v2031
        %v2033 = vpop.f32.mrb[0].mxu0
        %v2034 = vadd.f32 %v1536, %v2033
        %v2035 = vpop.f32.mrb[0].mxu0
        %v2036 = vadd.f32 %v1541, %v2035
        %v2037 = vpop.f32.mrb[0].mxu0
        %v2038 = vadd.f32 %v1541, %v2037
        %2039 = vmatprep.mubr.bf16.mxu0 0
        %2040 = vmatmul.mubr.bf16.gmra.mrb[0].mxu0 %v1861
        %v2041 = vpop.f32.mrb[0].mxu0
        %v2042 = vadd.f32 %v1546, %v2041
        %v2043 = vpop.f32.mrb[0].mxu0
        %v2044 = vadd.f32 %v1546, %v2043
        %v2045 = vpop.f32.mrb[0].mxu0
        %v2046 = vadd.f32 %v1551, %v2045
        %v2047 = vpop.f32.mrb[0].mxu0
        %v2048 = vadd.f32 %v1551, %v2047
        %2049 = vmatprep.mubr.bf16.mxu0 0
        %2050 = vmatmul.mubr.bf16.gmra.mrb[0].mxu0 %v1862
        %v2051 = vpop.f32.mrb[0].mxu0
        %v2052 = vadd.f32 %v1556, %v2051
        %v2053 = vpop.f32.mrb[0].mxu0
        %v2054 = vadd.f32 %v1556, %v2053
        %v2055 = vpop.f32.mrb[0].mxu0
        %v2056 = vadd.f32 %v1561, %v2055
        %v2057 = vpop.f32.mrb[0].mxu0
        %v2058 = vadd.f32 %v1561, %v2057
        %2059 = vmatprep.mubr.bf16.mxu0 0
        %2060 = vmatmul.mubr.bf16.gmra.mrb[0].mxu0 %v1863
        %v2061 = vpop.f32.mrb[0].mxu0
        %v2062 = vadd.f32 %v1566, %v2061
        %v2063 = vpop.f32.mrb[0].mxu0
        %v2064 = vadd.f32 %v1566, %v2063
        %v2065 = vpop.f32.mrb[0].mxu0
        %v2066 = vadd.f32 %v1571, %v2065
        %v2067 = vpop.f32.mrb[0].mxu0
        %v2068 = vadd.f32 %v1571, %v2067
        %2069 = vmatprep.mubr.bf16.mxu0 0
        %2070 = vmatmul.mubr.bf16.gmra.mrb[0].mxu0 %v1864
        %v2071 = vpop.f32.mrb[0].mxu0
        %v2072 = vadd.f32 %v1576, %v2071
        %v2073 = vpop.f32.mrb[0].mxu0
        %v2074 = vadd.f32 %v1576, %v2073
        %v2075 = vpop.f32.mrb[0].mxu0
        %v2076 = vadd.f32 %v1581, %v2075
        %v2077 = vpop.f32.mrb[0].mxu0
        %v2078 = vadd.f32 %v1581, %v2077
        %2079 = vmatprep.mubr.bf16.mxu0 0
        %2080 = vmatmul.mubr.bf16.gmra.mrb[0].mxu0 %v1865
        %v2081 = vpop.f32.mrb[0].mxu0
        %v2082 = vadd.f32 %v1586, %v2081
        %v2083 = vpop.f32.mrb[0].mxu0
        %v2084 = vadd.f32 %v1586, %v2083
        %v2085 = vpop.f32.mrb[0].mxu0
        %v2086 = vadd.f32 %v1591, %v2085
        %v2087 = vpop.f32.mrb[0].mxu0
        %v2088 = vadd.f32 %v1591, %v2087
        %2089 = vmatprep.mubr.bf16.mxu0 0
        %2090 = vmatmul.mubr.bf16.gmra.mrb[0].mxu0 %v1866
        %v2091 = vpop.f32.mrb[0].mxu0
        %v2092 = vadd.f32 %v1596, %v2091
        %v2093 = vpop.f32.mrb[0].mxu0
        %v2094 = vadd.f32 %v1596, %v2093
        %v2095 = vpop.f32.mrb[0].mxu0
        %v2096 = vadd.f32 %v1601, %v2095
        %v2097 = vpop.f32.mrb[0].mxu0
        %v2098 = vadd.f32 %v1601, %v2097
        %2099 = vmatprep.mubr.bf16.mxu0 0
        %2100 = vmatmul.mubr.bf16.gmra.mrb[0].mxu0 %v1867
        %v2101 = vpop.f32.mrb[0].mxu0
        %v2102 = vadd.f32 %v1606, %v2101
        %v2103 = vpop.f32.mrb[0].mxu0
        %v2104 = vadd.f32 %v1606, %v2103
        %v2105 = vpop.f32.mrb[0].mxu0
        %v2106 = vadd.f32 %v1611, %v2105
        %v2107 = vpop.f32.mrb[0].mxu0
        %v2108 = vadd.f32 %v1611, %v2107
        %2109 = vmatprep.mubr.bf16.mxu0 0
        %2110 = vmatmul.mubr.bf16.gmra.mrb[0].mxu0 %v1868
        %v2111 = vpop.f32.mrb[0].mxu0
        %v2112 = vadd.f32 %v1616, %v2111
        %v2113 = vpop.f32.mrb[0].mxu0
        %v2114 = vadd.f32 %v1616, %v2113
        %v2115 = vpop.f32.mrb[0].mxu0
        %v2116 = vadd.f32 %v1621, %v2115
        %v2117 = vpop.f32.mrb[0].mxu0
        %v2118 = vadd.f32 %v1621, %v2117
        %2119 = vmatprep.mubr.bf16.mxu0 0
        %2120 = vmatmul.mubr.bf16.gmra.mrb[0].mxu0 %v1869
        %v2121 = vpop.f32.mrb[0].mxu0
        %v2122 = vadd.f32 %v1626, %v2121
        %v2123 = vpop.f32.mrb[0].mxu0
        %v2124 = vadd.f32 %v1626, %v2123
        %v2125 = vpop.f32.mrb[0].mxu0
        %v2126 = vadd.f32 %v1631, %v2125
        %v2127 = vpop.f32.mrb[0].mxu0
        %v2128 = vadd.f32 %v1631, %v2127
        %2129 = vmatprep.mubr.bf16.mxu0 0
        %2130 = vmatmul.mubr.bf16.gmra.mrb[0].mxu0 %v1870
        %v2131 = vpop.f32.mrb[0].mxu0
        %v2132 = vadd.f32 %v1636, %v2131
        %v2133 = vpop.f32.mrb[0].mxu0
        %v2134 = vadd.f32 %v1636, %v2133
        %v2135 = vpop.f32.mrb[0].mxu0
        %v2136 = vadd.f32 %v1641, %v2135
        %v2137 = vpop.f32.mrb[0].mxu0
        %v2138 = vadd.f32 %v1641, %v2137
        %2139 = vmatprep.mubr.bf16.mxu0 0
        %2140 = vmatmul.mubr.bf16.gmra.mrb[0].mxu0 %v1871
        %v2141 = vpop.f32.mrb[0].mxu0
        %v2142 = vadd.f32 %v1646, %v2141
        %v2143 = vpop.f32.mrb[0].mxu0
        %v2144 = vadd.f32 %v1646, %v2143
        %v2145 = vpop.f32.mrb[0].mxu0
        %v2146 = vadd.f32 %v1651, %v2145
        %v2147 = vpop.f32.mrb[0].mxu0
        %v2148 = vadd.f32 %v1651, %v2147
        %2149 = vmatprep.mubr.bf16.mxu0 0
        %2150 = vmatmul.mubr.bf16.gmra.mrb[0].mxu0 %v1872
        %v2151 = vpop.f32.mrb[0].mxu0
        %v2152 = vadd.f32 %v1656, %v2151
        %v2153 = vpop.f32.mrb[0].mxu0
        %v2154 = vadd.f32 %v1656, %v2153
        %v2155 = vpop.f32.mrb[0].mxu0
        %v2156 = vadd.f32 %v1661, %v2155
        %v2157 = vpop.f32.mrb[0].mxu0
        %v2158 = vadd.f32 %v1661, %v2157
        %2159 = vmatprep.mubr.bf16.mxu0 0
        %2160 = vmatmul.mubr.bf16.gmra.mrb[0].mxu0 %v1873
        %v2161 = vpop.f32.mrb[0].mxu0
        %v2162 = vadd.f32 %v1666, %v2161
        %v2163 = vpop.f32.mrb[0].mxu0
        %v2164 = vadd.f32 %v1666, %v2163
        %v2165 = vpop.f32.mrb[0].mxu0
        %v2166 = vadd.f32 %v1671, %v2165
        %v2167 = vpop.f32.mrb[0].mxu0
        %v2168 = vadd.f32 %v1671, %v2167
        %2169 = vmatprep.mubr.bf16.mxu0 0
        %2170 = vmatmul.mubr.bf16.gmra.mrb[0].mxu0 %v1874
        %v2171 = vpop.f32.mrb[0].mxu0
        %v2172 = vadd.f32 %v1676, %v2171
        %v2173 = vpop.f32.mrb[0].mxu0
        %v2174 = vadd.f32 %v1676, %v2173
        %v2175 = vpop.f32.mrb[0].mxu0
        %v2176 = vadd.f32 %v1681, %v2175
        %v2177 = vpop.f32.mrb[0].mxu0
        %v2178 = vadd.f32 %v1681, %v2177
        %2179 = vmatprep.mubr.bf16.mxu0 0
        %2180 = vmatmul.mubr.bf16.gmra.mrb[0].mxu0 %v1875
        %v2181 = vpop.f32.mrb[0].mxu0
        %v2182 = vadd.f32 %v1686, %v2181
        %v2183 = vpop.f32.mrb[0].mxu0
        %v2184 = vadd.f32 %v1686, %v2183
        %v2185 = vpop.f32.mrb[0].mxu0
        %v2186 = vadd.f32 %v1691, %v2185
        %v2187 = vpop.f32.mrb[0].mxu0
        %v2188 = vadd.f32 %v1691, %v2187
        %2189 = vmatprep.mubr.bf16.mxu0 0
        %2190 = vmatmul.mubr.bf16.gmra.mrb[0].mxu0 %v1876
        %v2191 = vpop.f32.mrb[0].mxu0
        %v2192 = vadd.f32 %v1696, %v2191
        %v2193 = vpop.f32.mrb[0].mxu0
        %v2194 = vadd.f32 %v1696, %v2193
        %v2195 = vpop.f32.mrb[0].mxu0
        %v2196 = vadd.f32 %v1701, %v2195
        %v2197 = vpop.f32.mrb[0].mxu0
        %v2198 = vadd.f32 %v1701, %v2197
        %2199 = vmatprep.mubr.bf16.mxu0 0
        %2200 = vmatmul.mubr.bf16.gmra.mrb[0].mxu0 %v1877
        %v2201 = vpop.f32.mrb[0].mxu0
        %v2202 = vadd.f32 %v1706, %v2201
        %v2203 = vpop.f32.mrb[0].mxu0
        %v2204 = vadd.f32 %v1706, %v2203
        %v2205 = vpop.f32.mrb[0].mxu0
        %v2206 = vadd.f32 %v1711, %v2205
        %v2207 = vpop.f32.mrb[0].mxu0
        %v2208 = vadd.f32 %v1711, %v2207
        %2209 = vmatprep.mubr.bf16.mxu0 0
        %2210 = vmatmul.mubr.bf16.gmra.mrb[0].mxu0 %v1878
        %v2211 = vpop.f32.mrb[0].mxu0
        %v2212 = vadd.f32 %v1716, %v2211
        %v2213 = vpop.f32.mrb[0].mxu0
        %v2214 = vadd.f32 %v1716, %v2213
        %v2215 = vpop.f32.mrb[0].mxu0
        %v2216 = vadd.f32 %v1721, %v2215
        %v2217 = vpop.f32.mrb[0].mxu0
        %v2218 = vadd.f32 %v1721, %v2217
        %2219 = vmatprep.mubr.bf16.mxu0 0
        %2220 = vmatmul.mubr.bf16.gmra.mrb[0].mxu0 %v1879
        %v2221 = vpop.f32.mrb[0].mxu0
        %v2222 = vadd.f32 %v1726, %v2221
        %v2223 = vpop.f32.mrb[0].mxu0
        %v2224 = vadd.f32 %v1726, %v2223
        %v2225 = vpop.f32.mrb[0].mxu0
        %v2226 = vadd.f32 %v1731, %v2225
        %v2227 = vpop.f32.mrb[0].mxu0
        %v2228 = vadd.f32 %v1731, %v2227
        %2229 = vmatprep.mubr.bf16.mxu0 0
        %2230 = vmatmul.mubr.bf16.gmra.mrb[0].mxu0 %v1880
        %v2231 = vpop.f32.mrb[0].mxu0
        %v2232 = vadd.f32 %v1736, %v2231
        %v2233 = vpop.f32.mrb[0].mxu0
        %v2234 = vadd.f32 %v1736, %v2233
        %v2235 = vpop.f32.mrb[0].mxu0
        %v2236 = vadd.f32 %v1741, %v2235
        %v2237 = vpop.f32.mrb[0].mxu0
        %v2238 = vadd.f32 %v1741, %v2237
        %2239 = vmatprep.mubr.bf16.mxu0 0
        %2240 = vmatmul.mubr.bf16.gmra.mrb[0].mxu0 %v1881
        %v2241 = vpop.f32.mrb[0].mxu0
        %v2242 = vadd.f32 %v1746, %v2241
        %v2243 = vpop.f32.mrb[0].mxu0
        %v2244 = vadd.f32 %v1746, %v2243
        %v2245 = vpop.f32.mrb[0].mxu0
        %v2246 = vadd.f32 %v1751, %v2245
        %v2247 = vpop.f32.mrb[0].mxu0
        %v2248 = vadd.f32 %v1751, %v2247
        %2249 = vmatprep.mubr.bf16.mxu0 0
        %2250 = vmatmul.mubr.bf16.gmra.mrb[0].mxu0 %v1882
        %v2251 = vpop.f32.mrb[0].mxu0
        %v2252 = vadd.f32 %v1756, %v2251
        %v2253 = vpop.f32.mrb[0].mxu0
        %v2254 = vadd.f32 %v1756, %v2253
        %v2255 = vpop.f32.mrb[0].mxu0
        %v2256 = vadd.f32 %v1761, %v2255
        %v2257 = vpop.f32.mrb[0].mxu0
        %v2258 = vadd.f32 %v1761, %v2257
        %2259 = vdwg.mxu0
        %s2260 = sld [smem:[#allocation2]]
        %2261 = vxpose.xlu0.b32.start [1/16] %v1189, 128
        %2262 = vxpose.xlu0.b32.cont [2/16] %v1193, 128
        %2263 = vxpose.xlu0.b32.cont [3/16] %v1199, 128
        %2264 = vxpose.xlu0.b32.cont [4/16] %v1203, 128
        %2265 = vxpose.xlu0.b32.cont [5/16] %v1209, 128
        %2266 = vxpose.xlu0.b32.cont [6/16] %v1213, 128
        %2267 = vxpose.xlu0.b32.cont [7/16] %v1219, 128
        %2268 = vxpose.xlu0.b32.cont [8/16] %v1223, 128
        %2269 = vxpose.xlu0.b32.cont [9/16] %v1229, 128
        %2270 = vxpose.xlu0.b32.cont [10/16] %v1233, 128
        %2271 = vxpose.xlu0.b32.cont [11/16] %v1239, 128
        %2272 = vxpose.xlu0.b32.cont [12/16] %v1243, 128
        %2273 = vxpose.xlu0.b32.cont [13/16] %v1249, 128
        %2274 = vxpose.xlu0.b32.cont [14/16] %v1253, 128
        %2275 = vxpose.xlu0.b32.cont [15/16] %v1259, 128
        %2276 = vxpose.xlu0.b32.end [16/16] %v1263, 128
        %v2277 = vpop.trf.xlu0
        %v2278 = vpop.trf.xlu0
        %v2279 = vpop.trf.xlu0
        %v2280 = vpop.trf.xlu0
        %v2281 = vpop.trf.xlu0
        %v2282 = vpop.trf.xlu0
        %v2283 = vpop.trf.xlu0
        %v2284 = vpop.trf.xlu0
        %v2285 = vpop.trf.xlu0
        %v2286 = vpop.trf.xlu0
        %v2287 = vpop.trf.xlu0
        %v2288 = vpop.trf.xlu0
        %v2289 = vpop.trf.xlu0
        %v2290 = vpop.trf.xlu0
        %v2291 = vpop.trf.xlu0
        %v2292 = vpop.trf.xlu0
        %2293 = vxpose.xlu0.b32.start [1/16] %v1191, 128
        %2294 = vxpose.xlu0.b32.cont [2/16] %v1195, 128
        %2295 = vxpose.xlu0.b32.cont [3/16] %v1201, 128
        %2296 = vxpose.xlu0.b32.cont [4/16] %v1205, 128
        %2297 = vxpose.xlu0.b32.cont [5/16] %v1211, 128
        %2298 = vxpose.xlu0.b32.cont [6/16] %v1215, 128
        %2299 = vxpose.xlu0.b32.cont [7/16] %v1221, 128
        %2300 = vxpose.xlu0.b32.cont [8/16] %v1225, 128
        %2301 = vxpose.xlu0.b32.cont [9/16] %v1231, 128
        %2302 = vxpose.xlu0.b32.cont [10/16] %v1235, 128
        %2303 = vxpose.xlu0.b32.cont [11/16] %v1241, 128
        %2304 = vxpose.xlu0.b32.cont [12/16] %v1245, 128
        %2305 = vxpose.xlu0.b32.cont [13/16] %v1251, 128
        %2306 = vxpose.xlu0.b32.cont [14/16] %v1255, 128
        %2307 = vxpose.xlu0.b32.cont [15/16] %v1261, 128
        %2308 = vxpose.xlu0.b32.end [16/16] %v1265, 128
        %v2309 = vpop.trf.xlu0
        %v2310 = vpop.trf.xlu0
        %v2311 = vpop.trf.xlu0
        %v2312 = vpop.trf.xlu0
        %v2313 = vpop.trf.xlu0
        %v2314 = vpop.trf.xlu0
        %v2315 = vpop.trf.xlu0
        %v2316 = vpop.trf.xlu0
        %v2317 = vpop.trf.xlu0
        %v2318 = vpop.trf.xlu0
        %v2319 = vpop.trf.xlu0
        %v2320 = vpop.trf.xlu0
        %v2321 = vpop.trf.xlu0
        %v2322 = vpop.trf.xlu0
        %v2323 = vpop.trf.xlu0
        %v2324 = vpop.trf.xlu0
        %v2325 = vpack.c.bf16 %v2278, %v2277
        %v2326 = vpack.c.bf16 %v2280, %v2279
        %v2327 = vpack.c.bf16 %v2282, %v2281
        %v2328 = vpack.c.bf16 %v2284, %v2283
        %v2329 = vpack.c.bf16 %v2286, %v2285
        %v2330 = vpack.c.bf16 %v2288, %v2287
        %v2331 = vpack.c.bf16 %v2290, %v2289
        %v2332 = vpack.c.bf16 %v2292, %v2291
        %v2333 = vpack.c.bf16 %v2310, %v2309
        %v2334 = vpack.c.bf16 %v2312, %v2311
        %v2335 = vpack.c.bf16 %v2314, %v2313
        %v2336 = vpack.c.bf16 %v2316, %v2315
        %v2337 = vpack.c.bf16 %v2318, %v2317
        %v2338 = vpack.c.bf16 %v2320, %v2319
        %v2339 = vpack.c.bf16 %v2322, %v2321
        %v2340 = vpack.c.bf16 %v2324, %v2323
        %v2341 = vpack.c.bf16 %v2026, %v2022
        %v2342 = vpack.c.bf16 %v2028, %v2024
        %v2343 = vpack.c.bf16 %v2036, %v2032
        %v2344 = vpack.c.bf16 %v2038, %v2034
        %v2345 = vpack.c.bf16 %v2046, %v2042
        %v2346 = vpack.c.bf16 %v2048, %v2044
        %v2347 = vpack.c.bf16 %v2056, %v2052
        %v2348 = vpack.c.bf16 %v2058, %v2054
        %v2349 = vpack.c.bf16 %v2066, %v2062
        %v2350 = vpack.c.bf16 %v2068, %v2064
        %v2351 = vpack.c.bf16 %v2076, %v2072
        %v2352 = vpack.c.bf16 %v2078, %v2074
        %v2353 = vpack.c.bf16 %v2086, %v2082
        %v2354 = vpack.c.bf16 %v2088, %v2084
        %v2355 = vpack.c.bf16 %v2096, %v2092
        %v2356 = vpack.c.bf16 %v2098, %v2094
        %2357 = vmatprep.subr.bf16.mxu0 %v2342
        %2358 = vmatpush1.bf16.msra.mxu0 %v2341
        %2359 = vmatprep.subr.bf16.mxu0 %v2344
        %2360 = vmatpush1.bf16.msra.mxu0 %v2343
        %2361 = vmatprep.subr.bf16.mxu0 %v2346
        %2362 = vmatpush1.bf16.msra.mxu0 %v2345
        %2363 = vmatprep.subr.bf16.mxu0 %v2348
        %2364 = vmatpush1.bf16.msra.mxu0 %v2347
        %2365 = vmatprep.subr.bf16.mxu0 %v2350
        %2366 = vmatpush1.bf16.msra.mxu0 %v2349
        %2367 = vmatprep.subr.bf16.mxu0 %v2352
        %2368 = vmatpush1.bf16.msra.mxu0 %v2351
        %2369 = vmatprep.subr.bf16.mxu0 %v2354
        %2370 = vmatpush1.bf16.msra.mxu0 %v2353
        %2371 = vmatprep.subr.bf16.mxu0 %v2356
        %2372 = vmatpush1.bf16.msra.mxu0 %v2355
        %2373 = vmatprep.subr.bf16.mxu0 0
        %2374 = vmatpush1.bf16.msra.mxu0 0
        %2375 = vmatprep.subr.bf16.mxu0 0
        %2376 = vmatpush1.bf16.msra.mxu0 0
        %2377 = vmatprep.subr.bf16.mxu0 0
        %2378 = vmatpush1.bf16.msra.mxu0 0
        %2379 = vmatprep.subr.bf16.mxu0 0
        %2380 = vmatpush1.bf16.msra.mxu0 0
        %2381 = vmatprep.subr.bf16.mxu0 0
        %2382 = vmatpush1.bf16.msra.mxu0 0
        %2383 = vmatprep.subr.bf16.mxu0 0
        %2384 = vmatpush1.bf16.msra.mxu0 0
        %2385 = vmatprep.subr.bf16.mxu0 0
        %2386 = vmatpush1.bf16.msra.mxu0 0
        %2387 = vmatprep.subr.bf16.mxu0 0
        %2388 = vmatpush1.bf16.msra.mxu0 0
        %2389 = vmatprep.mubr.bf16.mxu0 0
        %2390 = vmatmul.mubr.bf16.gmra.mrb[0].mxu0 %v2325
        %v2391 = vpop.f32.mrb[0].mxu0
        %v2392 = vadd.f32 0.0, %v2391
        %v2393 = vpop.f32.mrb[0].mxu0
        %v2394 = vadd.f32 0.0, %v2393
        %v2395 = vpop.f32.mrb[0].mxu0
        %v2396 = vadd.f32 0.0, %v2395
        %v2397 = vpop.f32.mrb[0].mxu0
        %v2398 = vadd.f32 0.0, %v2397
        %2399 = vmatprep.mubr.bf16.mxu0 0
        %2400 = vmatmul.mubr.bf16.gmra.mrb[0].mxu0 %v2326
        %v2401 = vpop.f32.mrb[0].mxu0
        %v2402 = vadd.f32 0.0, %v2401
        %v2403 = vpop.f32.mrb[0].mxu0
        %v2404 = vadd.f32 0.0, %v2403
        %v2405 = vpop.f32.mrb[0].mxu0
        %v2406 = vadd.f32 0.0, %v2405
        %v2407 = vpop.f32.mrb[0].mxu0
        %v2408 = vadd.f32 0.0, %v2407
        %2409 = vmatprep.mubr.bf16.mxu0 0
        %2410 = vmatmul.mubr.bf16.gmra.mrb[0].mxu0 %v2327
        %v2411 = vpop.f32.mrb[0].mxu0
        %v2412 = vadd.f32 0.0, %v2411
        %v2413 = vpop.f32.mrb[0].mxu0
        %v2414 = vadd.f32 0.0, %v2413
        %v2415 = vpop.f32.mrb[0].mxu0
        %v2416 = vadd.f32 0.0, %v2415
        %v2417 = vpop.f32.mrb[0].mxu0
        %v2418 = vadd.f32 0.0, %v2417
        %2419 = vmatprep.mubr.bf16.mxu0 0
        %2420 = vmatmul.mubr.bf16.gmra.mrb[0].mxu0 %v2328
        %v2421 = vpop.f32.mrb[0].mxu0
        %v2422 = vadd.f32 0.0, %v2421
        %v2423 = vpop.f32.mrb[0].mxu0
        %v2424 = vadd.f32 0.0, %v2423
        %v2425 = vpop.f32.mrb[0].mxu0
        %v2426 = vadd.f32 0.0, %v2425
        %v2427 = vpop.f32.mrb[0].mxu0
        %v2428 = vadd.f32 0.0, %v2427
        %2429 = vmatprep.mubr.bf16.mxu0 0
        %2430 = vmatmul.mubr.bf16.gmra.mrb[0].mxu0 %v2329
        %v2431 = vpop.f32.mrb[0].mxu0
        %v2432 = vadd.f32 0.0, %v2431
        %v2433 = vpop.f32.mrb[0].mxu0
        %v2434 = vadd.f32 0.0, %v2433
        %v2435 = vpop.f32.mrb[0].mxu0
        %v2436 = vadd.f32 0.0, %v2435
        %v2437 = vpop.f32.mrb[0].mxu0
        %v2438 = vadd.f32 0.0, %v2437
        %2439 = vmatprep.mubr.bf16.mxu0 0
        %2440 = vmatmul.mubr.bf16.gmra.mrb[0].mxu0 %v2330
        %v2441 = vpop.f32.mrb[0].mxu0
        %v2442 = vadd.f32 0.0, %v2441
        %v2443 = vpop.f32.mrb[0].mxu0
        %v2444 = vadd.f32 0.0, %v2443
        %v2445 = vpop.f32.mrb[0].mxu0
        %v2446 = vadd.f32 0.0, %v2445
        %v2447 = vpop.f32.mrb[0].mxu0
        %v2448 = vadd.f32 0.0, %v2447
        %2449 = vmatprep.mubr.bf16.mxu0 0
        %2450 = vmatmul.mubr.bf16.gmra.mrb[0].mxu0 %v2331
        %v2451 = vpop.f32.mrb[0].mxu0
        %v2452 = vadd.f32 0.0, %v2451
        %v2453 = vpop.f32.mrb[0].mxu0
        %v2454 = vadd.f32 0.0, %v2453
        %v2455 = vpop.f32.mrb[0].mxu0
        %v2456 = vadd.f32 0.0, %v2455
        %v2457 = vpop.f32.mrb[0].mxu0
        %v2458 = vadd.f32 0.0, %v2457
        %2459 = vmatprep.mubr.bf16.mxu0 0
        %2460 = vmatmul.mubr.bf16.gmra.mrb[0].mxu0 %v2332
        %v2461 = vpop.f32.mrb[0].mxu0
        %v2462 = vadd.f32 0.0, %v2461
        %v2463 = vpop.f32.mrb[0].mxu0
        %v2464 = vadd.f32 0.0, %v2463
        %v2465 = vpop.f32.mrb[0].mxu0
        %v2466 = vadd.f32 0.0, %v2465
        %v2467 = vpop.f32.mrb[0].mxu0
        %v2468 = vadd.f32 0.0, %v2467
        %2469 = vmatprep.mubr.bf16.mxu0 0
        %2470 = vmatmul.mubr.bf16.gmra.mrb[0].mxu0 %v2333
        %v2471 = vpop.f32.mrb[0].mxu0
        %v2472 = vadd.f32 0.0, %v2471
        %v2473 = vpop.f32.mrb[0].mxu0
        %v2474 = vadd.f32 0.0, %v2473
        %v2475 = vpop.f32.mrb[0].mxu0
        %v2476 = vadd.f32 0.0, %v2475
        %v2477 = vpop.f32.mrb[0].mxu0
        %v2478 = vadd.f32 0.0, %v2477
        %2479 = vmatprep.mubr.bf16.mxu0 0
        %2480 = vmatmul.mubr.bf16.gmra.mrb[0].mxu0 %v2334
        %v2481 = vpop.f32.mrb[0].mxu0
        %v2482 = vadd.f32 0.0, %v2481
        %v2483 = vpop.f32.mrb[0].mxu0
        %v2484 = vadd.f32 0.0, %v2483
        %v2485 = vpop.f32.mrb[0].mxu0
        %v2486 = vadd.f32 0.0, %v2485
        %v2487 = vpop.f32.mrb[0].mxu0
        %v2488 = vadd.f32 0.0, %v2487
        %2489 = vmatprep.mubr.bf16.mxu0 0
        %2490 = vmatmul.mubr.bf16.gmra.mrb[0].mxu0 %v2335
        %v2491 = vpop.f32.mrb[0].mxu0
        %v2492 = vadd.f32 0.0, %v2491
        %v2493 = vpop.f32.mrb[0].mxu0
        %v2494 = vadd.f32 0.0, %v2493
        %v2495 = vpop.f32.mrb[0].mxu0
        %v2496 = vadd.f32 0.0, %v2495
        %v2497 = vpop.f32.mrb[0].mxu0
        %v2498 = vadd.f32 0.0, %v2497
        %2499 = vmatprep.mubr.bf16.mxu0 0
        %2500 = vmatmul.mubr.bf16.gmra.mrb[0].mxu0 %v2336
        %v2501 = vpop.f32.mrb[0].mxu0
        %v2502 = vadd.f32 0.0, %v2501
        %v2503 = vpop.f32.mrb[0].mxu0
        %v2504 = vadd.f32 0.0, %v2503
        %v2505 = vpop.f32.mrb[0].mxu0
        %v2506 = vadd.f32 0.0, %v2505
        %v2507 = vpop.f32.mrb[0].mxu0
        %v2508 = vadd.f32 0.0, %v2507
        %2509 = vmatprep.mubr.bf16.mxu0 0
        %2510 = vmatmul.mubr.bf16.gmra.mrb[0].mxu0 %v2337
        %v2511 = vpop.f32.mrb[0].mxu0
        %v2512 = vadd.f32 0.0, %v2511
        %v2513 = vpop.f32.mrb[0].mxu0
        %v2514 = vadd.f32 0.0, %v2513
        %v2515 = vpop.f32.mrb[0].mxu0
        %v2516 = vadd.f32 0.0, %v2515
        %v2517 = vpop.f32.mrb[0].mxu0
        %v2518 = vadd.f32 0.0, %v2517
        %2519 = vmatprep.mubr.bf16.mxu0 0
        %2520 = vmatmul.mubr.bf16.gmra.mrb[0].mxu0 %v2338
        %v2521 = vpop.f32.mrb[0].mxu0
        %v2522 = vadd.f32 0.0, %v2521
        %v2523 = vpop.f32.mrb[0].mxu0
        %v2524 = vadd.f32 0.0, %v2523
        %v2525 = vpop.f32.mrb[0].mxu0
        %v2526 = vadd.f32 0.0, %v2525
        %v2527 = vpop.f32.mrb[0].mxu0
        %v2528 = vadd.f32 0.0, %v2527
        %2529 = vmatprep.mubr.bf16.mxu0 0
        %2530 = vmatmul.mubr.bf16.gmra.mrb[0].mxu0 %v2339
        %v2531 = vpop.f32.mrb[0].mxu0
        %v2532 = vadd.f32 0.0, %v2531
        %v2533 = vpop.f32.mrb[0].mxu0
        %v2534 = vadd.f32 0.0, %v2533
        %v2535 = vpop.f32.mrb[0].mxu0
        %v2536 = vadd.f32 0.0, %v2535
        %v2537 = vpop.f32.mrb[0].mxu0
        %v2538 = vadd.f32 0.0, %v2537
        %2539 = vmatprep.mubr.bf16.mxu0 0
        %2540 = vmatmul.mubr.bf16.gmra.mrb[0].mxu0 %v2340
        %v2541 = vpop.f32.mrb[0].mxu0
        %v2542 = vadd.f32 0.0, %v2541
        %v2543 = vpop.f32.mrb[0].mxu0
        %v2544 = vadd.f32 0.0, %v2543
        %v2545 = vpop.f32.mrb[0].mxu0
        %v2546 = vadd.f32 0.0, %v2545
        %v2547 = vpop.f32.mrb[0].mxu0
        %v2548 = vadd.f32 0.0, %v2547
        %2549 = vdwg.mxu0
        %v2550 = vmax.f32 %v2392, %v2402
        %v2551 = vmax.f32 %v2396, %v2406
        %v2552 = vmax.f32 %v2550, %v2412
        %v2553 = vmax.f32 %v2551, %v2416
        %v2554 = vmax.f32 %v2552, %v2422
        %v2555 = vmax.f32 %v2553, %v2426
        %v2556 = vmax.f32 %v2554, %v2432
        %v2557 = vmax.f32 %v2555, %v2436
        %v2558 = vmax.f32 %v2556, %v2442
        %v2559 = vmax.f32 %v2557, %v2446
        %v2560 = vmax.f32 %v2558, %v2452
        %v2561 = vmax.f32 %v2559, %v2456
        %v2562 = vmax.f32 %v2560, %v2462
        %v2563 = vmax.f32 %v2561, %v2466
        %v2564 = vmax.f32 %v2562, %v2472
        %v2565 = vmax.f32 %v2563, %v2476
        %v2566 = vmax.f32 %v2564, %v2482
        %v2567 = vmax.f32 %v2565, %v2486
        %v2568 = vmax.f32 %v2566, %v2492
        %v2569 = vmax.f32 %v2567, %v2496
        %v2570 = vmax.f32 %v2568, %v2502
        %v2571 = vmax.f32 %v2569, %v2506
        %v2572 = vmax.f32 %v2570, %v2512
        %v2573 = vmax.f32 %v2571, %v2516
        %v2574 = vmax.f32 %v2572, %v2522
        %v2575 = vmax.f32 %v2573, %v2526
        %v2576 = vmax.f32 %v2574, %v2532
        %v2577 = vmax.f32 %v2575, %v2536
        %v2578 = vmax.f32 %v2576, %v2542
        %v2579 = vmax.f32 %v2577, %v2546
        %v2580 = vmax.f32 %v2578, %v2579
        %v2581 = vrot.slane %v2580, 4
        %v2582 = vmax.f32 %v2580, %v2581
        %v2583 = vrot.slane %v2582, 2
        %v2584 = vmax.f32 %v2582, %v2583
        %v2585 = vrot.slane %v2584, 1
        %v2586 = vmax.f32 %v2584, %v2585
        %v2587 = vmax.f32 %v2394, %v2404
        %v2588 = vmax.f32 %v2398, %v2408
        %v2589 = vmax.f32 %v2587, %v2414
        %v2590 = vmax.f32 %v2588, %v2418
        %v2591 = vmax.f32 %v2589, %v2424
        %v2592 = vmax.f32 %v2590, %v2428
        %v2593 = vmax.f32 %v2591, %v2434
        %v2594 = vmax.f32 %v2592, %v2438
        %v2595 = vmax.f32 %v2593, %v2444
        %v2596 = vmax.f32 %v2594, %v2448
        %v2597 = vmax.f32 %v2595, %v2454
        %v2598 = vmax.f32 %v2596, %v2458
        %v2599 = vmax.f32 %v2597, %v2464
        %v2600 = vmax.f32 %v2598, %v2468
        %v2601 = vmax.f32 %v2599, %v2474
        %v2602 = vmax.f32 %v2600, %v2478
        %v2603 = vmax.f32 %v2601, %v2484
        %v2604 = vmax.f32 %v2602, %v2488
        %v2605 = vmax.f32 %v2603, %v2494
        %v2606 = vmax.f32 %v2604, %v2498
        %v2607 = vmax.f32 %v2605, %v2504
        %v2608 = vmax.f32 %v2606, %v2508
        %v2609 = vmax.f32 %v2607, %v2514
        %v2610 = vmax.f32 %v2608, %v2518
        %v2611 = vmax.f32 %v2609, %v2524
        %v2612 = vmax.f32 %v2610, %v2528
        %v2613 = vmax.f32 %v2611, %v2534
        %v2614 = vmax.f32 %v2612, %v2538
        %v2615 = vmax.f32 %v2613, %v2544
        %v2616 = vmax.f32 %v2614, %v2548
        %v2617 = vmax.f32 %v2615, %v2616
        %v2618 = vrot.slane %v2617, 4
        %v2619 = vmax.f32 %v2617, %v2618
        %v2620 = vrot.slane %v2619, 2
        %v2621 = vmax.f32 %v2619, %v2620
        %v2622 = vrot.slane %v2621, 1
        %v2623 = vmax.f32 %v2621, %v2622
        %v2624 = vsub.f32 %v2392, %v2586
        %v2625 = vsub.f32 %v2394, %v2623
        %v2626 = vsub.f32 %v2396, %v2586
        %v2627 = vsub.f32 %v2398, %v2623
        %v2628 = vsub.f32 %v2402, %v2586
        %v2629 = vsub.f32 %v2404, %v2623
        %v2630 = vsub.f32 %v2406, %v2586
        %v2631 = vsub.f32 %v2408, %v2623
        %v2632 = vsub.f32 %v2412, %v2586
        %v2633 = vsub.f32 %v2414, %v2623
        %v2634 = vsub.f32 %v2416, %v2586
        %v2635 = vsub.f32 %v2418, %v2623
        %v2636 = vsub.f32 %v2422, %v2586
        %v2637 = vsub.f32 %v2424, %v2623
        %v2638 = vsub.f32 %v2426, %v2586
        %v2639 = vsub.f32 %v2428, %v2623
        %v2640 = vsub.f32 %v2432, %v2586
        %v2641 = vsub.f32 %v2434, %v2623
        %v2642 = vsub.f32 %v2436, %v2586
        %v2643 = vsub.f32 %v2438, %v2623
        %v2644 = vsub.f32 %v2442, %v2586
        %v2645 = vsub.f32 %v2444, %v2623
        %v2646 = vsub.f32 %v2446, %v2586
        %v2647 = vsub.f32 %v2448, %v2623
        %v2648 = vsub.f32 %v2452, %v2586
        %v2649 = vsub.f32 %v2454, %v2623
        %v2650 = vsub.f32 %v2456, %v2586
        %v2651 = vsub.f32 %v2458, %v2623
        %v2652 = vsub.f32 %v2462, %v2586
        %v2653 = vsub.f32 %v2464, %v2623
        %v2654 = vsub.f32 %v2466, %v2586
        %v2655 = vsub.f32 %v2468, %v2623
        %v2656 = vsub.f32 %v2472, %v2586
        %v2657 = vsub.f32 %v2474, %v2623
        %v2658 = vsub.f32 %v2476, %v2586
        %v2659 = vsub.f32 %v2478, %v2623
        %v2660 = vsub.f32 %v2482, %v2586
        %v2661 = vsub.f32 %v2484, %v2623
        %v2662 = vsub.f32 %v2486, %v2586
        %v2663 = vsub.f32 %v2488, %v2623
        %v2664 = vsub.f32 %v2492, %v2586
        %v2665 = vsub.f32 %v2494, %v2623
        %v2666 = vsub.f32 %v2496, %v2586
        %v2667 = vsub.f32 %v2498, %v2623
        %v2668 = vsub.f32 %v2502, %v2586
        %v2669 = vsub.f32 %v2504, %v2623
        %v2670 = vsub.f32 %v2506, %v2586
        %v2671 = vsub.f32 %v2508, %v2623
        %v2672 = vsub.f32 %v2512, %v2586
        %v2673 = vsub.f32 %v2514, %v2623
        %v2674 = vsub.f32 %v2516, %v2586
        %v2675 = vsub.f32 %v2518, %v2623
        %v2676 = vsub.f32 %v2522, %v2586
        %v2677 = vsub.f32 %v2524, %v2623
        %v2678 = vsub.f32 %v2526, %v2586
        %v2679 = vsub.f32 %v2528, %v2623
        %v2680 = vsub.f32 %v2532, %v2586
        %v2681 = vsub.f32 %v2534, %v2623
        %v2682 = vsub.f32 %v2536, %v2586
        %v2683 = vsub.f32 %v2538, %v2623
        %v2684 = vsub.f32 %v2542, %v2586
        %v2685 = vsub.f32 %v2544, %v2623
        %v2686 = vsub.f32 %v2546, %v2586
        %v2687 = vsub.f32 %v2548, %v2623
        %v2688 = vmul.f32 %v2624, 1.442695
        %v2689 = vpow.pop %v2688
        %v2690 = vmul.f32 %v2625, 1.442695
        %v2691 = vpow.pop %v2690
        %v2692 = vmul.f32 %v2626, 1.442695
        %v2693 = vpow.pop %v2692
        %v2694 = vmul.f32 %v2627, 1.442695
        %v2695 = vpow.pop %v2694
        %v2696 = vmul.f32 %v2628, 1.442695
        %v2697 = vpow.pop %v2696
        %v2698 = vmul.f32 %v2629, 1.442695
        %v2699 = vpow.pop %v2698
        %v2700 = vmul.f32 %v2630, 1.442695
        %v2701 = vpow.pop %v2700
        %v2702 = vmul.f32 %v2631, 1.442695
        %v2703 = vpow.pop %v2702
        %v2704 = vmul.f32 %v2632, 1.442695
        %v2705 = vpow.pop %v2704
        %v2706 = vmul.f32 %v2633, 1.442695
        %v2707 = vpow.pop %v2706
        %v2708 = vmul.f32 %v2634, 1.442695
        %v2709 = vpow.pop %v2708
        %v2710 = vmul.f32 %v2635, 1.442695
        %v2711 = vpow.pop %v2710
        %v2712 = vmul.f32 %v2636, 1.442695
        %v2713 = vpow.pop %v2712
        %v2714 = vmul.f32 %v2637, 1.442695
        %v2715 = vpow.pop %v2714
        %v2716 = vmul.f32 %v2638, 1.442695
        %v2717 = vpow.pop %v2716
        %v2718 = vmul.f32 %v2639, 1.442695
        %v2719 = vpow.pop %v2718
        %v2720 = vmul.f32 %v2640, 1.442695
        %v2721 = vpow.pop %v2720
        %v2722 = vmul.f32 %v2641, 1.442695
        %v2723 = vpow.pop %v2722
        %v2724 = vmul.f32 %v2642, 1.442695
        %v2725 = vpow.pop %v2724
        %v2726 = vmul.f32 %v2643, 1.442695
        %v2727 = vpow.pop %v2726
        %v2728 = vmul.f32 %v2644, 1.442695
        %v2729 = vpow.pop %v2728
        %v2730 = vmul.f32 %v2645, 1.442695
        %v2731 = vpow.pop %v2730
        %v2732 = vmul.f32 %v2646, 1.442695
        %v2733 = vpow.pop %v2732
        %v2734 = vmul.f32 %v2647, 1.442695
        %v2735 = vpow.pop %v2734
        %v2736 = vmul.f32 %v2648, 1.442695
        %v2737 = vpow.pop %v2736
        %v2738 = vmul.f32 %v2649, 1.442695
        %v2739 = vpow.pop %v2738
        %v2740 = vmul.f32 %v2650, 1.442695
        %v2741 = vpow.pop %v2740
        %v2742 = vmul.f32 %v2651, 1.442695
        %v2743 = vpow.pop %v2742
        %v2744 = vmul.f32 %v2652, 1.442695
        %v2745 = vpow.pop %v2744
        %v2746 = vmul.f32 %v2653, 1.442695
        %v2747 = vpow.pop %v2746
        %v2748 = vmul.f32 %v2654, 1.442695
        %v2749 = vpow.pop %v2748
        %v2750 = vmul.f32 %v2655, 1.442695
        %v2751 = vpow.pop %v2750
        %v2752 = vmul.f32 %v2656, 1.442695
        %v2753 = vpow.pop %v2752
        %v2754 = vmul.f32 %v2657, 1.442695
        %v2755 = vpow.pop %v2754
        %v2756 = vmul.f32 %v2658, 1.442695
        %v2757 = vpow.pop %v2756
        %v2758 = vmul.f32 %v2659, 1.442695
        %v2759 = vpow.pop %v2758
        %v2760 = vmul.f32 %v2660, 1.442695
        %v2761 = vpow.pop %v2760
        %v2762 = vmul.f32 %v2661, 1.442695
        %v2763 = vpow.pop %v2762
        %v2764 = vmul.f32 %v2662, 1.442695
        %v2765 = vpow.pop %v2764
        %v2766 = vmul.f32 %v2663, 1.442695
        %v2767 = vpow.pop %v2766
        %v2768 = vmul.f32 %v2664, 1.442695
        %v2769 = vpow.pop %v2768
        %v2770 = vmul.f32 %v2665, 1.442695
        %v2771 = vpow.pop %v2770
        %v2772 = vmul.f32 %v2666, 1.442695
        %v2773 = vpow.pop %v2772
        %v2774 = vmul.f32 %v2667, 1.442695
        %v2775 = vpow.pop %v2774
        %v2776 = vmul.f32 %v2668, 1.442695
        %v2777 = vpow.pop %v2776
        %v2778 = vmul.f32 %v2669, 1.442695
        %v2779 = vpow.pop %v2778
        %v2780 = vmul.f32 %v2670, 1.442695
        %v2781 = vpow.pop %v2780
        %v2782 = vmul.f32 %v2671, 1.442695
        %v2783 = vpow.pop %v2782
        %v2784 = vmul.f32 %v2672, 1.442695
        %v2785 = vpow.pop %v2784
        %v2786 = vmul.f32 %v2673, 1.442695
        %v2787 = vpow.pop %v2786
        %v2788 = vmul.f32 %v2674, 1.442695
        %v2789 = vpow.pop %v2788
        %v2790 = vmul.f32 %v2675, 1.442695
        %v2791 = vpow.pop %v2790
        %v2792 = vmul.f32 %v2676, 1.442695
        %v2793 = vpow.pop %v2792
        %v2794 = vmul.f32 %v2677, 1.442695
        %v2795 = vpow.pop %v2794
        %v2796 = vmul.f32 %v2678, 1.442695
        %v2797 = vpow.pop %v2796
        %v2798 = vmul.f32 %v2679, 1.442695
        %v2799 = vpow.pop %v2798
        %v2800 = vmul.f32 %v2680, 1.442695
        %v2801 = vpow.pop %v2800
        %v2802 = vmul.f32 %v2681, 1.442695
        %v2803 = vpow.pop %v2802
        %v2804 = vmul.f32 %v2682, 1.442695
        %v2805 = vpow.pop %v2804
        %v2806 = vmul.f32 %v2683, 1.442695
        %v2807 = vpow.pop %v2806
        %v2808 = vmul.f32 %v2684, 1.442695
        %v2809 = vpow.pop %v2808
        %v2810 = vmul.f32 %v2685, 1.442695
        %v2811 = vpow.pop %v2810
        %v2812 = vmul.f32 %v2686, 1.442695
        %v2813 = vpow.pop %v2812
        %v2814 = vmul.f32 %v2687, 1.442695
        %v2815 = vpow.pop %v2814
        %v2816 = vadd.f32 %v2689, %v2693
        %v2817 = vadd.f32 %v2816, %v2697
        %v2818 = vadd.f32 %v2817, %v2701
        %v2819 = vadd.f32 %v2818, %v2705
        %v2820 = vadd.f32 %v2819, %v2709
        %v2821 = vadd.f32 %v2820, %v2713
        %v2822 = vadd.f32 %v2821, %v2717
        %v2823 = vadd.f32 %v2822, %v2721
        %v2824 = vadd.f32 %v2823, %v2725
        %v2825 = vadd.f32 %v2824, %v2729
        %v2826 = vadd.f32 %v2825, %v2733
        %v2827 = vadd.f32 %v2826, %v2737
        %v2828 = vadd.f32 %v2827, %v2741
        %v2829 = vadd.f32 %v2828, %v2745
        %v2830 = vadd.f32 %v2829, %v2749
        %v2831 = vadd.f32 %v2830, %v2753
        %v2832 = vadd.f32 %v2831, %v2757
        %v2833 = vadd.f32 %v2832, %v2761
        %v2834 = vadd.f32 %v2833, %v2765
        %v2835 = vadd.f32 %v2834, %v2769
        %v2836 = vadd.f32 %v2835, %v2773
        %v2837 = vadd.f32 %v2836, %v2777
        %v2838 = vadd.f32 %v2837, %v2781
        %v2839 = vadd.f32 %v2838, %v2785
        %v2840 = vadd.f32 %v2839, %v2789
        %v2841 = vadd.f32 %v2840, %v2793
        %v2842 = vadd.f32 %v2841, %v2797
        %v2843 = vadd.f32 %v2842, %v2801
        %v2844 = vadd.f32 %v2843, %v2805
        %v2845 = vadd.f32 %v2844, %v2809
        %v2846 = vadd.f32 %v2845, %v2813
        %v2847 = vrot.slane %v2846, 4
        %v2848 = vadd.f32 %v2846, %v2847
        %v2849 = vrot.slane %v2848, 2
        %v2850 = vadd.f32 %v2848, %v2849
        %v2851 = vrot.slane %v2850, 1
        %v2852 = vadd.f32 %v2850, %v2851
        %v2853 = vadd.f32 %v2691, %v2695
        %v2854 = vadd.f32 %v2853, %v2699
        %v2855 = vadd.f32 %v2854, %v2703
        %v2856 = vadd.f32 %v2855, %v2707
        %v2857 = vadd.f32 %v2856, %v2711
        %v2858 = vadd.f32 %v2857, %v2715
        %v2859 = vadd.f32 %v2858, %v2719
        %v2860 = vadd.f32 %v2859, %v2723
        %v2861 = vadd.f32 %v2860, %v2727
        %v2862 = vadd.f32 %v2861, %v2731
        %v2863 = vadd.f32 %v2862, %v2735
        %v2864 = vadd.f32 %v2863, %v2739
        %v2865 = vadd.f32 %v2864, %v2743
        %v2866 = vadd.f32 %v2865, %v2747
        %v2867 = vadd.f32 %v2866, %v2751
        %v2868 = vadd.f32 %v2867, %v2755
        %v2869 = vadd.f32 %v2868, %v2759
        %v2870 = vadd.f32 %v2869, %v2763
        %v2871 = vadd.f32 %v2870, %v2767
        %v2872 = vadd.f32 %v2871, %v2771
        %v2873 = vadd.f32 %v2872, %v2775
        %v2874 = vadd.f32 %v2873, %v2779
        %v2875 = vadd.f32 %v2874, %v2783
        %v2876 = vadd.f32 %v2875, %v2787
        %v2877 = vadd.f32 %v2876, %v2791
        %v2878 = vadd.f32 %v2877, %v2795
        %v2879 = vadd.f32 %v2878, %v2799
        %v2880 = vadd.f32 %v2879, %v2803
        %v2881 = vadd.f32 %v2880, %v2807
        %v2882 = vadd.f32 %v2881, %v2811
        %v2883 = vadd.f32 %v2882, %v2815
        %v2884 = vrot.slane %v2883, 4
        %v2885 = vadd.f32 %v2883, %v2884
        %v2886 = vrot.slane %v2885, 2
        %v2887 = vadd.f32 %v2885, %v2886
        %v2888 = vrot.slane %v2887, 1
        %v2889 = vadd.f32 %v2887, %v2888
        %v2890 = vrcp.pop %v2852
        %v2891 = vrcp.pop %v2889
        %v2892 = vstv %s2260
        %v2893 = vmul.f32 %v2890, %v2892
        %v2894 = vmul.f32 %v2891, %v2892
        %v2895 = vmul.f32 %v2102, %v2893
        %v2896 = vmul.f32 %v2104, %v2894
        %v2897 = vmul.f32 %v2106, %v2893
        %v2898 = vmul.f32 %v2108, %v2894
        %v2899 = vmul.f32 %v2112, %v2893
        %v2900 = vmul.f32 %v2114, %v2894
        %v2901 = vmul.f32 %v2116, %v2893
        %v2902 = vmul.f32 %v2118, %v2894
        %v2903 = vmul.f32 %v2122, %v2893
        %v2904 = vmul.f32 %v2124, %v2894
        %v2905 = vmul.f32 %v2126, %v2893
        %v2906 = vmul.f32 %v2128, %v2894
        %v2907 = vmul.f32 %v2132, %v2893
        %v2908 = vmul.f32 %v2134, %v2894
        %v2909 = vmul.f32 %v2136, %v2893
        %v2910 = vmul.f32 %v2138, %v2894
        %v2911 = vmul.f32 %v2142, %v2893
        %v2912 = vmul.f32 %v2144, %v2894
        %v2913 = vmul.f32 %v2146, %v2893
        %v2914 = vmul.f32 %v2148, %v2894
        %v2915 = vmul.f32 %v2152, %v2893
        %v2916 = vmul.f32 %v2154, %v2894
        %v2917 = vmul.f32 %v2156, %v2893
        %v2918 = vmul.f32 %v2158, %v2894
        %v2919 = vmul.f32 %v2162, %v2893
        %v2920 = vmul.f32 %v2164, %v2894
        %v2921 = vmul.f32 %v2166, %v2893
        %v2922 = vmul.f32 %v2168, %v2894
        %v2923 = vmul.f32 %v2172, %v2893
        %v2924 = vmul.f32 %v2174, %v2894
        %v2925 = vmul.f32 %v2176, %v2893
        %v2926 = vmul.f32 %v2178, %v2894
        %v2927 = vpack.c.bf16 %v2897, %v2895
        %v2928 = vpack.c.bf16 %v2898, %v2896
        %v2929 = vpack.c.bf16 %v2901, %v2899
        %v2930 = vpack.c.bf16 %v2902, %v2900
        %v2931 = vpack.c.bf16 %v2905, %v2903
        %v2932 = vpack.c.bf16 %v2906, %v2904
        %v2933 = vpack.c.bf16 %v2909, %v2907
        %v2934 = vpack.c.bf16 %v2910, %v2908
        %v2935 = vpack.c.bf16 %v2913, %v2911
        %v2936 = vpack.c.bf16 %v2914, %v2912
        %v2937 = vpack.c.bf16 %v2917, %v2915
        %v2938 = vpack.c.bf16 %v2918, %v2916
        %v2939 = vpack.c.bf16 %v2921, %v2919
        %v2940 = vpack.c.bf16 %v2922, %v2920
        %v2941 = vpack.c.bf16 %v2925, %v2923
        %v2942 = vpack.c.bf16 %v2926, %v2924
        %v2943 = vpack.c.bf16 %v2693, %v2689
        %v2944 = vpack.c.bf16 %v2695, %v2691
        %v2945 = vpack.c.bf16 %v2701, %v2697
        %v2946 = vpack.c.bf16 %v2703, %v2699
        %v2947 = vpack.c.bf16 %v2709, %v2705
        %v2948 = vpack.c.bf16 %v2711, %v2707
        %v2949 = vpack.c.bf16 %v2717, %v2713
        %v2950 = vpack.c.bf16 %v2719, %v2715
        %v2951 = vpack.c.bf16 %v2725, %v2721
        %v2952 = vpack.c.bf16 %v2727, %v2723
        %v2953 = vpack.c.bf16 %v2733, %v2729
        %v2954 = vpack.c.bf16 %v2735, %v2731
        %v2955 = vpack.c.bf16 %v2741, %v2737
        %v2956 = vpack.c.bf16 %v2743, %v2739
        %v2957 = vpack.c.bf16 %v2749, %v2745
        %v2958 = vpack.c.bf16 %v2751, %v2747
        %v2959 = vpack.c.bf16 %v2757, %v2753
        %v2960 = vpack.c.bf16 %v2759, %v2755
        %v2961 = vpack.c.bf16 %v2765, %v2761
        %v2962 = vpack.c.bf16 %v2767, %v2763
        %v2963 = vpack.c.bf16 %v2773, %v2769
        %v2964 = vpack.c.bf16 %v2775, %v2771
        %v2965 = vpack.c.bf16 %v2781, %v2777
        %v2966 = vpack.c.bf16 %v2783, %v2779
        %v2967 = vpack.c.bf16 %v2789, %v2785
        %v2968 = vpack.c.bf16 %v2791, %v2787
        %v2969 = vpack.c.bf16 %v2797, %v2793
        %v2970 = vpack.c.bf16 %v2799, %v2795
        %v2971 = vpack.c.bf16 %v2805, %v2801
        %v2972 = vpack.c.bf16 %v2807, %v2803
        %v2973 = vpack.c.bf16 %v2813, %v2809
        %v2974 = vpack.c.bf16 %v2815, %v2811
        %2975 = vmatprep.subr.bf16.mxu0 %v2944
        %2976 = vmatpush1.bf16.xpose.msra.mxu0 %v2943
        %2977 = vmatprep.subr.bf16.mxu0 %v2946
        %2978 = vmatpush1.bf16.xpose.msra.mxu0 %v2945
        %2979 = vmatprep.subr.bf16.mxu0 %v2948
        %2980 = vmatpush1.bf16.xpose.msra.mxu0 %v2947
        %2981 = vmatprep.subr.bf16.mxu0 %v2950
        %2982 = vmatpush1.bf16.xpose.msra.mxu0 %v2949
        %2983 = vmatprep.subr.bf16.mxu0 %v2952
        %2984 = vmatpush1.bf16.xpose.msra.mxu0 %v2951
        %2985 = vmatprep.subr.bf16.mxu0 %v2954
        %2986 = vmatpush1.bf16.xpose.msra.mxu0 %v2953
        %2987 = vmatprep.subr.bf16.mxu0 %v2956
        %2988 = vmatpush1.bf16.xpose.msra.mxu0 %v2955
        %2989 = vmatprep.subr.bf16.mxu0 %v2958
        %2990 = vmatpush1.bf16.xpose.msra.mxu0 %v2957
        %2991 = vmatprep.subr.bf16.mxu0 %v2960
        %2992 = vmatpush1.bf16.xpose.msra.mxu0 %v2959
        %2993 = vmatprep.subr.bf16.mxu0 %v2962
        %2994 = vmatpush1.bf16.xpose.msra.mxu0 %v2961
        %2995 = vmatprep.subr.bf16.mxu0 %v2964
        %2996 = vmatpush1.bf16.xpose.msra.mxu0 %v2963
        %2997 = vmatprep.subr.bf16.mxu0 %v2966
        %2998 = vmatpush1.bf16.xpose.msra.mxu0 %v2965
        %2999 = vmatprep.subr.bf16.mxu0 %v2968
        %3000 = vmatpush1.bf16.xpose.msra.mxu0 %v2967
        %3001 = vmatprep.subr.bf16.mxu0 %v2970
        %3002 = vmatpush1.bf16.xpose.msra.mxu0 %v2969
        %3003 = vmatprep.subr.bf16.mxu0 %v2972
        %3004 = vmatpush1.bf16.xpose.msra.mxu0 %v2971
        %3005 = vmatprep.subr.bf16.mxu0 %v2974
        %3006 = vmatpush1.bf16.xpose.msra.mxu0 %v2973
        %3007 = vmatprep.mubr.bf16.mxu0 %v2928
        %3008 = vmatmul.mubr.bf16.gmra.mrb[0].mxu0 %v2927
        %v3009 = vpop.f32.mrb[0].mxu0
        %v3010 = vadd.f32 %v530, %v3009
        %v3011 = vpop.f32.mrb[0].mxu0
        %v3012 = vadd.f32 %v531, %v3011
        %v3013 = vpop.f32.mrb[0].mxu0
        %v3014 = vadd.f32 %v532, %v3013
        %v3015 = vpop.f32.mrb[0].mxu0
        %v3016 = vadd.f32 %v533, %v3015
        %3017 = vmatprep.mubr.bf16.mxu0 %v2930
        %3018 = vmatmul.mubr.bf16.gmra.mrb[0].mxu0 %v2929
        %v3019 = vpop.f32.mrb[0].mxu0
        %v3020 = vadd.f32 %v534, %v3019
        %v3021 = vpop.f32.mrb[0].mxu0
        %v3022 = vadd.f32 %v535, %v3021
        %v3023 = vpop.f32.mrb[0].mxu0
        %v3024 = vadd.f32 %v536, %v3023
        %v3025 = vpop.f32.mrb[0].mxu0
        %v3026 = vadd.f32 %v537, %v3025
        %3027 = vmatprep.mubr.bf16.mxu0 %v2932
        %3028 = vmatmul.mubr.bf16.gmra.mrb[0].mxu0 %v2931
        %v3029 = vpop.f32.mrb[0].mxu0
        %v3030 = vadd.f32 %v538, %v3029
        %v3031 = vpop.f32.mrb[0].mxu0
        %v3032 = vadd.f32 %v539, %v3031
        %v3033 = vpop.f32.mrb[0].mxu0
        %v3034 = vadd.f32 %v540, %v3033
        %v3035 = vpop.f32.mrb[0].mxu0
        %v3036 = vadd.f32 %v541, %v3035
        %3037 = vmatprep.mubr.bf16.mxu0 %v2934
        %3038 = vmatmul.mubr.bf16.gmra.mrb[0].mxu0 %v2933
        %v3039 = vpop.f32.mrb[0].mxu0
        %v3040 = vadd.f32 %v542, %v3039
        %v3041 = vpop.f32.mrb[0].mxu0
        %v3042 = vadd.f32 %v543, %v3041
        %v3043 = vpop.f32.mrb[0].mxu0
        %v3044 = vadd.f32 %v544, %v3043
        %v3045 = vpop.f32.mrb[0].mxu0
        %v3046 = vadd.f32 %v545, %v3045
        %3047 = vmatprep.mubr.bf16.mxu0 %v2936
        %3048 = vmatmul.mubr.bf16.gmra.mrb[0].mxu0 %v2935
        %v3049 = vpop.f32.mrb[0].mxu0
        %v3050 = vadd.f32 %v546, %v3049
        %v3051 = vpop.f32.mrb[0].mxu0
        %v3052 = vadd.f32 %v547, %v3051
        %v3053 = vpop.f32.mrb[0].mxu0
        %v3054 = vadd.f32 %v548, %v3053
        %v3055 = vpop.f32.mrb[0].mxu0
        %v3056 = vadd.f32 %v549, %v3055
        %3057 = vmatprep.mubr.bf16.mxu0 %v2938
        %3058 = vmatmul.mubr.bf16.gmra.mrb[0].mxu0 %v2937
        %v3059 = vpop.f32.mrb[0].mxu0
        %v3060 = vadd.f32 %v550, %v3059
        %v3061 = vpop.f32.mrb[0].mxu0
        %v3062 = vadd.f32 %v551, %v3061
        %v3063 = vpop.f32.mrb[0].mxu0
        %v3064 = vadd.f32 %v552, %v3063
        %v3065 = vpop.f32.mrb[0].mxu0
        %v3066 = vadd.f32 %v553, %v3065
        %3067 = vmatprep.mubr.bf16.mxu0 %v2940
        %3068 = vmatmul.mubr.bf16.gmra.mrb[0].mxu0 %v2939
        %v3069 = vpop.f32.mrb[0].mxu0
        %v3070 = vadd.f32 %v554, %v3069
        %v3071 = vpop.f32.mrb[0].mxu0
        %v3072 = vadd.f32 %v555, %v3071
        %v3073 = vpop.f32.mrb[0].mxu0
        %v3074 = vadd.f32 %v556, %v3073
        %v3075 = vpop.f32.mrb[0].mxu0
        %v3076 = vadd.f32 %v557, %v3075
        %3077 = vmatprep.mubr.bf16.mxu0 %v2942
        %3078 = vmatmul.mubr.bf16.gmra.mrb[0].mxu0 %v2941
        %v3079 = vpop.f32.mrb[0].mxu0
        %v3080 = vadd.f32 %v558, %v3079
        %v3081 = vpop.f32.mrb[0].mxu0
        %v3082 = vadd.f32 %v559, %v3081
        %v3083 = vpop.f32.mrb[0].mxu0
        %v3084 = vadd.f32 %v560, %v3083
        %v3085 = vpop.f32.mrb[0].mxu0
        %v3086 = vadd.f32 %v561, %v3085
        %3087 = vdwg.mxu0
        %v3088 = vmax.f32 %v3010, 0.0
        %v3089 = vmax.f32 %v3012, 0.0
        %v3090 = vmax.f32 %v3014, 0.0
        %v3091 = vmax.f32 %v3016, 0.0
        %v3092 = vmax.f32 %v3020, 0.0
        %v3093 = vmax.f32 %v3022, 0.0
        %v3094 = vmax.f32 %v3024, 0.0
        %v3095 = vmax.f32 %v3026, 0.0
        %v3096 = vmax.f32 %v3030, 0.0
        %v3097 = vmax.f32 %v3032, 0.0
        %v3098 = vmax.f32 %v3034, 0.0
        %v3099 = vmax.f32 %v3036, 0.0
        %v3100 = vmax.f32 %v3040, 0.0
        %v3101 = vmax.f32 %v3042, 0.0
        %v3102 = vmax.f32 %v3044, 0.0
        %v3103 = vmax.f32 %v3046, 0.0
        %v3104 = vmax.f32 %v3050, 0.0
        %v3105 = vmax.f32 %v3052, 0.0
        %v3106 = vmax.f32 %v3054, 0.0
        %v3107 = vmax.f32 %v3056, 0.0
        %v3108 = vmax.f32 %v3060, 0.0
        %v3109 = vmax.f32 %v3062, 0.0
        %v3110 = vmax.f32 %v3064, 0.0
        %v3111 = vmax.f32 %v3066, 0.0
        %v3112 = vmax.f32 %v3070, 0.0
        %v3113 = vmax.f32 %v3072, 0.0
        %v3114 = vmax.f32 %v3074, 0.0
        %v3115 = vmax.f32 %v3076, 0.0
        %v3116 = vmax.f32 %v3080, 0.0
        %v3117 = vmax.f32 %v3082, 0.0
        %v3118 = vmax.f32 %v3084, 0.0
        %v3119 = vmax.f32 %v3086, 0.0
        %s3120 = sld [smem:[#allocation2 + $0x1]]
        %3121 = vxpose.xlu0.b32.start [1/16] %v2182, 128
        %3122 = vxpose.xlu0.b32.cont [2/16] %v2186, 128
        %3123 = vxpose.xlu0.b32.cont [3/16] %v2192, 128
        %3124 = vxpose.xlu0.b32.cont [4/16] %v2196, 128
        %3125 = vxpose.xlu0.b32.cont [5/16] %v2202, 128
        %3126 = vxpose.xlu0.b32.cont [6/16] %v2206, 128
        %3127 = vxpose.xlu0.b32.cont [7/16] %v2212, 128
        %3128 = vxpose.xlu0.b32.cont [8/16] %v2216, 128
        %3129 = vxpose.xlu0.b32.cont [9/16] %v2222, 128
        %3130 = vxpose.xlu0.b32.cont [10/16] %v2226, 128
        %3131 = vxpose.xlu0.b32.cont [11/16] %v2232, 128
        %3132 = vxpose.xlu0.b32.cont [12/16] %v2236, 128
        %3133 = vxpose.xlu0.b32.cont [13/16] %v2242, 128
        %3134 = vxpose.xlu0.b32.cont [14/16] %v2246, 128
        %3135 = vxpose.xlu0.b32.cont [15/16] %v2252, 128
        %3136 = vxpose.xlu0.b32.end [16/16] %v2256, 128
        %v3137 = vpop.trf.xlu0
        %v3138 = vpop.trf.xlu0
        %v3139 = vpop.trf.xlu0
        %v3140 = vpop.trf.xlu0
        %v3141 = vpop.trf.xlu0
        %v3142 = vpop.trf.xlu0
        %v3143 = vpop.trf.xlu0
        %v3144 = vpop.trf.xlu0
        %v3145 = vpop.trf.xlu0
        %v3146 = vpop.trf.xlu0
        %v3147 = vpop.trf.xlu0
        %v3148 = vpop.trf.xlu0
        %v3149 = vpop.trf.xlu0
        %v3150 = vpop.trf.xlu0
        %v3151 = vpop.trf.xlu0
        %v3152 = vpop.trf.xlu0
        %3153 = vxpose.xlu0.b32.start [1/16] %v2184, 128
        %3154 = vxpose.xlu0.b32.cont [2/16] %v2188, 128
        %3155 = vxpose.xlu0.b32.cont [3/16] %v2194, 128
        %3156 = vxpose.xlu0.b32.cont [4/16] %v2198, 128
        %3157 = vxpose.xlu0.b32.cont [5/16] %v2204, 128
        %3158 = vxpose.xlu0.b32.cont [6/16] %v2208, 128
        %3159 = vxpose.xlu0.b32.cont [7/16] %v2214, 128
        %3160 = vxpose.xlu0.b32.cont [8/16] %v2218, 128
        %3161 = vxpose.xlu0.b32.cont [9/16] %v2224, 128
        %3162 = vxpose.xlu0.b32.cont [10/16] %v2228, 128
        %3163 = vxpose.xlu0.b32.cont [11/16] %v2234, 128
        %3164 = vxpose.xlu0.b32.cont [12/16] %v2238, 128
        %3165 = vxpose.xlu0.b32.cont [13/16] %v2244, 128
        %3166 = vxpose.xlu0.b32.cont [14/16] %v2248, 128
        %3167 = vxpose.xlu0.b32.cont [15/16] %v2254, 128
        %3168 = vxpose.xlu0.b32.end [16/16] %v2258, 128
        %v3169 = vpop.trf.xlu0
        %v3170 = vpop.trf.xlu0
        %v3171 = vpop.trf.xlu0
        %v3172 = vpop.trf.xlu0
        %v3173 = vpop.trf.xlu0
        %v3174 = vpop.trf.xlu0
        %v3175 = vpop.trf.xlu0
        %v3176 = vpop.trf.xlu0
        %v3177 = vpop.trf.xlu0
        %v3178 = vpop.trf.xlu0
        %v3179 = vpop.trf.xlu0
        %v3180 = vpop.trf.xlu0
        %v3181 = vpop.trf.xlu0
        %v3182 = vpop.trf.xlu0
        %v3183 = vpop.trf.xlu0
        %v3184 = vpop.trf.xlu0
        %v3185 = vpack.c.bf16 %v3138, %v3137
        %v3186 = vpack.c.bf16 %v3140, %v3139
        %v3187 = vpack.c.bf16 %v3142, %v3141
        %v3188 = vpack.c.bf16 %v3144, %v3143
        %v3189 = vpack.c.bf16 %v3146, %v3145
        %v3190 = vpack.c.bf16 %v3148, %v3147
        %v3191 = vpack.c.bf16 %v3150, %v3149
        %v3192 = vpack.c.bf16 %v3152, %v3151
        %v3193 = vpack.c.bf16 %v3170, %v3169
        %v3194 = vpack.c.bf16 %v3172, %v3171
        %v3195 = vpack.c.bf16 %v3174, %v3173
        %v3196 = vpack.c.bf16 %v3176, %v3175
        %v3197 = vpack.c.bf16 %v3178, %v3177
        %v3198 = vpack.c.bf16 %v3180, %v3179
        %v3199 = vpack.c.bf16 %v3182, %v3181
        %v3200 = vpack.c.bf16 %v3184, %v3183
        %v3201 = vpack.c.bf16 %v1273, %v1269
        %v3202 = vpack.c.bf16 %v1275, %v1271
        %v3203 = vpack.c.bf16 %v1283, %v1279
        %v3204 = vpack.c.bf16 %v1285, %v1281
        %v3205 = vpack.c.bf16 %v1293, %v1289
        %v3206 = vpack.c.bf16 %v1295, %v1291
        %v3207 = vpack.c.bf16 %v1303, %v1299
        %v3208 = vpack.c.bf16 %v1305, %v1301
        %v3209 = vpack.c.bf16 %v1313, %v1309
        %v3210 = vpack.c.bf16 %v1315, %v1311
        %v3211 = vpack.c.bf16 %v1323, %v1319
        %v3212 = vpack.c.bf16 %v1325, %v1321
        %v3213 = vpack.c.bf16 %v1333, %v1329
        %v3214 = vpack.c.bf16 %v1335, %v1331
        %v3215 = vpack.c.bf16 %v1343, %v1339
        %v3216 = vpack.c.bf16 %v1345, %v1341
        %3217 = vmatprep.subr.bf16.mxu0 %v3202
        %3218 = vmatpush1.bf16.msra.mxu0 %v3201
        %3219 = vmatprep.subr.bf16.mxu0 %v3204
        %3220 = vmatpush1.bf16.msra.mxu0 %v3203
        %3221 = vmatprep.subr.bf16.mxu0 %v3206
        %3222 = vmatpush1.bf16.msra.mxu0 %v3205
        %3223 = vmatprep.subr.bf16.mxu0 %v3208
        %3224 = vmatpush1.bf16.msra.mxu0 %v3207
        %3225 = vmatprep.subr.bf16.mxu0 %v3210
        %3226 = vmatpush1.bf16.msra.mxu0 %v3209
        %3227 = vmatprep.subr.bf16.mxu0 %v3212
        %3228 = vmatpush1.bf16.msra.mxu0 %v3211
        %3229 = vmatprep.subr.bf16.mxu0 %v3214
        %3230 = vmatpush1.bf16.msra.mxu0 %v3213
        %3231 = vmatprep.subr.bf16.mxu0 %v3216
        %3232 = vmatpush1.bf16.msra.mxu0 %v3215
        %3233 = vmatprep.subr.bf16.mxu0 0
        %3234 = vmatpush1.bf16.msra.mxu0 0
        %3235 = vmatprep.subr.bf16.mxu0 0
        %3236 = vmatpush1.bf16.msra.mxu0 0
        %3237 = vmatprep.subr.bf16.mxu0 0
        %3238 = vmatpush1.bf16.msra.mxu0 0
        %3239 = vmatprep.subr.bf16.mxu0 0
        %3240 = vmatpush1.bf16.msra.mxu0 0
        %3241 = vmatprep.subr.bf16.mxu0 0
        %3242 = vmatpush1.bf16.msra.mxu0 0
        %3243 = vmatprep.subr.bf16.mxu0 0
        %3244 = vmatpush1.bf16.msra.mxu0 0
        %3245 = vmatprep.subr.bf16.mxu0 0
        %3246 = vmatpush1.bf16.msra.mxu0 0
        %3247 = vmatprep.subr.bf16.mxu0 0
        %3248 = vmatpush1.bf16.msra.mxu0 0
        %3249 = vmatprep.mubr.bf16.mxu0 0
        %3250 = vmatmul.mubr.bf16.gmra.mrb[0].mxu0 %v3185
        %v3251 = vpop.f32.mrb[0].mxu0
        %v3252 = vadd.f32 0.0, %v3251
        %v3253 = vpop.f32.mrb[0].mxu0
        %v3254 = vadd.f32 0.0, %v3253
        %v3255 = vpop.f32.mrb[0].mxu0
        %v3256 = vadd.f32 0.0, %v3255
        %v3257 = vpop.f32.mrb[0].mxu0
        %v3258 = vadd.f32 0.0, %v3257
        %3259 = vmatprep.mubr.bf16.mxu0 0
        %3260 = vmatmul.mubr.bf16.gmra.mrb[0].mxu0 %v3186
        %v3261 = vpop.f32.mrb[0].mxu0
        %v3262 = vadd.f32 0.0, %v3261
        %v3263 = vpop.f32.mrb[0].mxu0
        %v3264 = vadd.f32 0.0, %v3263
        %v3265 = vpop.f32.mrb[0].mxu0
        %v3266 = vadd.f32 0.0, %v3265
        %v3267 = vpop.f32.mrb[0].mxu0
        %v3268 = vadd.f32 0.0, %v3267
        %3269 = vmatprep.mubr.bf16.mxu0 0
        %3270 = vmatmul.mubr.bf16.gmra.mrb[0].mxu0 %v3187
        %v3271 = vpop.f32.mrb[0].mxu0
        %v3272 = vadd.f32 0.0, %v3271
        %v3273 = vpop.f32.mrb[0].mxu0
        %v3274 = vadd.f32 0.0, %v3273
        %v3275 = vpop.f32.mrb[0].mxu0
        %v3276 = vadd.f32 0.0, %v3275
        %v3277 = vpop.f32.mrb[0].mxu0
        %v3278 = vadd.f32 0.0, %v3277
        %3279 = vmatprep.mubr.bf16.mxu0 0
        %3280 = vmatmul.mubr.bf16.gmra.mrb[0].mxu0 %v3188
        %v3281 = vpop.f32.mrb[0].mxu0
        %v3282 = vadd.f32 0.0, %v3281
        %v3283 = vpop.f32.mrb[0].mxu0
        %v3284 = vadd.f32 0.0, %v3283
        %v3285 = vpop.f32.mrb[0].mxu0
        %v3286 = vadd.f32 0.0, %v3285
        %v3287 = vpop.f32.mrb[0].mxu0
        %v3288 = vadd.f32 0.0, %v3287
        %3289 = vmatprep.mubr.bf16.mxu0 0
        %3290 = vmatmul.mubr.bf16.gmra.mrb[0].mxu0 %v3189
        %v3291 = vpop.f32.mrb[0].mxu0
        %v3292 = vadd.f32 0.0, %v3291
        %v3293 = vpop.f32.mrb[0].mxu0
        %v3294 = vadd.f32 0.0, %v3293
        %v3295 = vpop.f32.mrb[0].mxu0
        %v3296 = vadd.f32 0.0, %v3295
        %v3297 = vpop.f32.mrb[0].mxu0
        %v3298 = vadd.f32 0.0, %v3297
        %3299 = vmatprep.mubr.bf16.mxu0 0
        %3300 = vmatmul.mubr.bf16.gmra.mrb[0].mxu0 %v3190
        %v3301 = vpop.f32.mrb[0].mxu0
        %v3302 = vadd.f32 0.0, %v3301
        %v3303 = vpop.f32.mrb[0].mxu0
        %v3304 = vadd.f32 0.0, %v3303
        %v3305 = vpop.f32.mrb[0].mxu0
        %v3306 = vadd.f32 0.0, %v3305
        %v3307 = vpop.f32.mrb[0].mxu0
        %v3308 = vadd.f32 0.0, %v3307
        %3309 = vmatprep.mubr.bf16.mxu0 0
        %3310 = vmatmul.mubr.bf16.gmra.mrb[0].mxu0 %v3191
        %v3311 = vpop.f32.mrb[0].mxu0
        %v3312 = vadd.f32 0.0, %v3311
        %v3313 = vpop.f32.mrb[0].mxu0
        %v3314 = vadd.f32 0.0, %v3313
        %v3315 = vpop.f32.mrb[0].mxu0
        %v3316 = vadd.f32 0.0, %v3315
        %v3317 = vpop.f32.mrb[0].mxu0
        %v3318 = vadd.f32 0.0, %v3317
        %3319 = vmatprep.mubr.bf16.mxu0 0
        %3320 = vmatmul.mubr.bf16.gmra.mrb[0].mxu0 %v3192
        %v3321 = vpop.f32.mrb[0].mxu0
        %v3322 = vadd.f32 0.0, %v3321
        %v3323 = vpop.f32.mrb[0].mxu0
        %v3324 = vadd.f32 0.0, %v3323
        %v3325 = vpop.f32.mrb[0].mxu0
        %v3326 = vadd.f32 0.0, %v3325
        %v3327 = vpop.f32.mrb[0].mxu0
        %v3328 = vadd.f32 0.0, %v3327
        %3329 = vmatprep.mubr.bf16.mxu0 0
        %3330 = vmatmul.mubr.bf16.gmra.mrb[0].mxu0 %v3193
        %v3331 = vpop.f32.mrb[0].mxu0
        %v3332 = vadd.f32 0.0, %v3331
        %v3333 = vpop.f32.mrb[0].mxu0
        %v3334 = vadd.f32 0.0, %v3333
        %v3335 = vpop.f32.mrb[0].mxu0
        %v3336 = vadd.f32 0.0, %v3335
        %v3337 = vpop.f32.mrb[0].mxu0
        %v3338 = vadd.f32 0.0, %v3337
        %3339 = vmatprep.mubr.bf16.mxu0 0
        %3340 = vmatmul.mubr.bf16.gmra.mrb[0].mxu0 %v3194
        %v3341 = vpop.f32.mrb[0].mxu0
        %v3342 = vadd.f32 0.0, %v3341
        %v3343 = vpop.f32.mrb[0].mxu0
        %v3344 = vadd.f32 0.0, %v3343
        %v3345 = vpop.f32.mrb[0].mxu0
        %v3346 = vadd.f32 0.0, %v3345
        %v3347 = vpop.f32.mrb[0].mxu0
        %v3348 = vadd.f32 0.0, %v3347
        %3349 = vmatprep.mubr.bf16.mxu0 0
        %3350 = vmatmul.mubr.bf16.gmra.mrb[0].mxu0 %v3195
        %v3351 = vpop.f32.mrb[0].mxu0
        %v3352 = vadd.f32 0.0, %v3351
        %v3353 = vpop.f32.mrb[0].mxu0
        %v3354 = vadd.f32 0.0, %v3353
        %v3355 = vpop.f32.mrb[0].mxu0
        %v3356 = vadd.f32 0.0, %v3355
        %v3357 = vpop.f32.mrb[0].mxu0
        %v3358 = vadd.f32 0.0, %v3357
        %3359 = vmatprep.mubr.bf16.mxu0 0
        %3360 = vmatmul.mubr.bf16.gmra.mrb[0].mxu0 %v3196
        %v3361 = vpop.f32.mrb[0].mxu0
        %v3362 = vadd.f32 0.0, %v3361
        %v3363 = vpop.f32.mrb[0].mxu0
        %v3364 = vadd.f32 0.0, %v3363
        %v3365 = vpop.f32.mrb[0].mxu0
        %v3366 = vadd.f32 0.0, %v3365
        %v3367 = vpop.f32.mrb[0].mxu0
        %v3368 = vadd.f32 0.0, %v3367
        %3369 = vmatprep.mubr.bf16.mxu0 0
        %3370 = vmatmul.mubr.bf16.gmra.mrb[0].mxu0 %v3197
        %v3371 = vpop.f32.mrb[0].mxu0
        %v3372 = vadd.f32 0.0, %v3371
        %v3373 = vpop.f32.mrb[0].mxu0
        %v3374 = vadd.f32 0.0, %v3373
        %v3375 = vpop.f32.mrb[0].mxu0
        %v3376 = vadd.f32 0.0, %v3375
        %v3377 = vpop.f32.mrb[0].mxu0
        %v3378 = vadd.f32 0.0, %v3377
        %3379 = vmatprep.mubr.bf16.mxu0 0
        %3380 = vmatmul.mubr.bf16.gmra.mrb[0].mxu0 %v3198
        %v3381 = vpop.f32.mrb[0].mxu0
        %v3382 = vadd.f32 0.0, %v3381
        %v3383 = vpop.f32.mrb[0].mxu0
        %v3384 = vadd.f32 0.0, %v3383
        %v3385 = vpop.f32.mrb[0].mxu0
        %v3386 = vadd.f32 0.0, %v3385
        %v3387 = vpop.f32.mrb[0].mxu0
        %v3388 = vadd.f32 0.0, %v3387
        %3389 = vmatprep.mubr.bf16.mxu0 0
        %3390 = vmatmul.mubr.bf16.gmra.mrb[0].mxu0 %v3199
        %v3391 = vpop.f32.mrb[0].mxu0
        %v3392 = vadd.f32 0.0, %v3391
        %v3393 = vpop.f32.mrb[0].mxu0
        %v3394 = vadd.f32 0.0, %v3393
        %v3395 = vpop.f32.mrb[0].mxu0
        %v3396 = vadd.f32 0.0, %v3395
        %v3397 = vpop.f32.mrb[0].mxu0
        %v3398 = vadd.f32 0.0, %v3397
        %3399 = vmatprep.mubr.bf16.mxu0 0
        %3400 = vmatmul.mubr.bf16.gmra.mrb[0].mxu0 %v3200
        %v3401 = vpop.f32.mrb[0].mxu0
        %v3402 = vadd.f32 0.0, %v3401
        %v3403 = vpop.f32.mrb[0].mxu0
        %v3404 = vadd.f32 0.0, %v3403
        %v3405 = vpop.f32.mrb[0].mxu0
        %v3406 = vadd.f32 0.0, %v3405
        %v3407 = vpop.f32.mrb[0].mxu0
        %v3408 = vadd.f32 0.0, %v3407
        %3409 = vdwg.mxu0
        %v3410 = vmax.f32 %v3252, %v3262
        %v3411 = vmax.f32 %v3256, %v3266
        %v3412 = vmax.f32 %v3410, %v3272
        %v3413 = vmax.f32 %v3411, %v3276
        %v3414 = vmax.f32 %v3412, %v3282
        %v3415 = vmax.f32 %v3413, %v3286
        %v3416 = vmax.f32 %v3414, %v3292
        %v3417 = vmax.f32 %v3415, %v3296
        %v3418 = vmax.f32 %v3416, %v3302
        %v3419 = vmax.f32 %v3417, %v3306
        %v3420 = vmax.f32 %v3418, %v3312
        %v3421 = vmax.f32 %v3419, %v3316
        %v3422 = vmax.f32 %v3420, %v3322
        %v3423 = vmax.f32 %v3421, %v3326
        %v3424 = vmax.f32 %v3422, %v3332
        %v3425 = vmax.f32 %v3423, %v3336
        %v3426 = vmax.f32 %v3424, %v3342
        %v3427 = vmax.f32 %v3425, %v3346
        %v3428 = vmax.f32 %v3426, %v3352
        %v3429 = vmax.f32 %v3427, %v3356
        %v3430 = vmax.f32 %v3428, %v3362
        %v3431 = vmax.f32 %v3429, %v3366
        %v3432 = vmax.f32 %v3430, %v3372
        %v3433 = vmax.f32 %v3431, %v3376
        %v3434 = vmax.f32 %v3432, %v3382
        %v3435 = vmax.f32 %v3433, %v3386
        %v3436 = vmax.f32 %v3434, %v3392
        %v3437 = vmax.f32 %v3435, %v3396
        %v3438 = vmax.f32 %v3436, %v3402
        %v3439 = vmax.f32 %v3437, %v3406
        %v3440 = vmax.f32 %v3438, %v3439
        %v3441 = vrot.slane %v3440, 4
        %v3442 = vmax.f32 %v3440, %v3441
        %v3443 = vrot.slane %v3442, 2
        %v3444 = vmax.f32 %v3442, %v3443
        %v3445 = vrot.slane %v3444, 1
        %v3446 = vmax.f32 %v3444, %v3445
        %v3447 = vmax.f32 %v3254, %v3264
        %v3448 = vmax.f32 %v3258, %v3268
        %v3449 = vmax.f32 %v3447, %v3274
        %v3450 = vmax.f32 %v3448, %v3278
        %v3451 = vmax.f32 %v3449, %v3284
        %v3452 = vmax.f32 %v3450, %v3288
        %v3453 = vmax.f32 %v3451, %v3294
        %v3454 = vmax.f32 %v3452, %v3298
        %v3455 = vmax.f32 %v3453, %v3304
        %v3456 = vmax.f32 %v3454, %v3308
        %v3457 = vmax.f32 %v3455, %v3314
        %v3458 = vmax.f32 %v3456, %v3318
        %v3459 = vmax.f32 %v3457, %v3324
        %v3460 = vmax.f32 %v3458, %v3328
        %v3461 = vmax.f32 %v3459, %v3334
        %v3462 = vmax.f32 %v3460, %v3338
        %v3463 = vmax.f32 %v3461, %v3344
        %v3464 = vmax.f32 %v3462, %v3348
        %v3465 = vmax.f32 %v3463, %v3354
        %v3466 = vmax.f32 %v3464, %v3358
        %v3467 = vmax.f32 %v3465, %v3364
        %v3468 = vmax.f32 %v3466, %v3368
        %v3469 = vmax.f32 %v3467, %v3374
        %v3470 = vmax.f32 %v3468, %v3378
        %v3471 = vmax.f32 %v3469, %v3384
        %v3472 = vmax.f32 %v3470, %v3388
        %v3473 = vmax.f32 %v3471, %v3394
        %v3474 = vmax.f32 %v3472, %v3398
        %v3475 = vmax.f32 %v3473, %v3404
        %v3476 = vmax.f32 %v3474, %v3408
        %v3477 = vmax.f32 %v3475, %v3476
        %v3478 = vrot.slane %v3477, 4
        %v3479 = vmax.f32 %v3477, %v3478
        %v3480 = vrot.slane %v3479, 2
        %v3481 = vmax.f32 %v3479, %v3480
        %v3482 = vrot.slane %v3481, 1
        %v3483 = vmax.f32 %v3481, %v3482
        %v3484 = vsub.f32 %v3252, %v3446
        %v3485 = vsub.f32 %v3254, %v3483
        %v3486 = vsub.f32 %v3256, %v3446
        %v3487 = vsub.f32 %v3258, %v3483
        %v3488 = vsub.f32 %v3262, %v3446
        %v3489 = vsub.f32 %v3264, %v3483
        %v3490 = vsub.f32 %v3266, %v3446
        %v3491 = vsub.f32 %v3268, %v3483
        %v3492 = vsub.f32 %v3272, %v3446
        %v3493 = vsub.f32 %v3274, %v3483
        %v3494 = vsub.f32 %v3276, %v3446
        %v3495 = vsub.f32 %v3278, %v3483
        %v3496 = vsub.f32 %v3282, %v3446
        %v3497 = vsub.f32 %v3284, %v3483
        %v3498 = vsub.f32 %v3286, %v3446
        %v3499 = vsub.f32 %v3288, %v3483
        %v3500 = vsub.f32 %v3292, %v3446
        %v3501 = vsub.f32 %v3294, %v3483
        %v3502 = vsub.f32 %v3296, %v3446
        %v3503 = vsub.f32 %v3298, %v3483
        %v3504 = vsub.f32 %v3302, %v3446
        %v3505 = vsub.f32 %v3304, %v3483
        %v3506 = vsub.f32 %v3306, %v3446
        %v3507 = vsub.f32 %v3308, %v3483
        %v3508 = vsub.f32 %v3312, %v3446
        %v3509 = vsub.f32 %v3314, %v3483
        %v3510 = vsub.f32 %v3316, %v3446
        %v3511 = vsub.f32 %v3318, %v3483
        %v3512 = vsub.f32 %v3322, %v3446
        %v3513 = vsub.f32 %v3324, %v3483
        %v3514 = vsub.f32 %v3326, %v3446
        %v3515 = vsub.f32 %v3328, %v3483
        %v3516 = vsub.f32 %v3332, %v3446
        %v3517 = vsub.f32 %v3334, %v3483
        %v3518 = vsub.f32 %v3336, %v3446
        %v3519 = vsub.f32 %v3338, %v3483
        %v3520 = vsub.f32 %v3342, %v3446
        %v3521 = vsub.f32 %v3344, %v3483
        %v3522 = vsub.f32 %v3346, %v3446
        %v3523 = vsub.f32 %v3348, %v3483
        %v3524 = vsub.f32 %v3352, %v3446
        %v3525 = vsub.f32 %v3354, %v3483
        %v3526 = vsub.f32 %v3356, %v3446
        %v3527 = vsub.f32 %v3358, %v3483
        %v3528 = vsub.f32 %v3362, %v3446
        %v3529 = vsub.f32 %v3364, %v3483
        %v3530 = vsub.f32 %v3366, %v3446
        %v3531 = vsub.f32 %v3368, %v3483
        %v3532 = vsub.f32 %v3372, %v3446
        %v3533 = vsub.f32 %v3374, %v3483
        %v3534 = vsub.f32 %v3376, %v3446
        %v3535 = vsub.f32 %v3378, %v3483
        %v3536 = vsub.f32 %v3382, %v3446
        %v3537 = vsub.f32 %v3384, %v3483
        %v3538 = vsub.f32 %v3386, %v3446
        %v3539 = vsub.f32 %v3388, %v3483
        %v3540 = vsub.f32 %v3392, %v3446
        %v3541 = vsub.f32 %v3394, %v3483
        %v3542 = vsub.f32 %v3396, %v3446
        %v3543 = vsub.f32 %v3398, %v3483
        %v3544 = vsub.f32 %v3402, %v3446
        %v3545 = vsub.f32 %v3404, %v3483
        %v3546 = vsub.f32 %v3406, %v3446
        %v3547 = vsub.f32 %v3408, %v3483
        %v3548 = vmul.f32 %v3484, 1.442695
        %v3549 = vpow.pop %v3548
        %v3550 = vmul.f32 %v3485, 1.442695
        %v3551 = vpow.pop %v3550
        %v3552 = vmul.f32 %v3486, 1.442695
        %v3553 = vpow.pop %v3552
        %v3554 = vmul.f32 %v3487, 1.442695
        %v3555 = vpow.pop %v3554
        %v3556 = vmul.f32 %v3488, 1.442695
        %v3557 = vpow.pop %v3556
        %v3558 = vmul.f32 %v3489, 1.442695
        %v3559 = vpow.pop %v3558
        %v3560 = vmul.f32 %v3490, 1.442695
        %v3561 = vpow.pop %v3560
        %v3562 = vmul.f32 %v3491, 1.442695
        %v3563 = vpow.pop %v3562
        %v3564 = vmul.f32 %v3492, 1.442695
        %v3565 = vpow.pop %v3564
        %v3566 = vmul.f32 %v3493, 1.442695
        %v3567 = vpow.pop %v3566
        %v3568 = vmul.f32 %v3494, 1.442695
        %v3569 = vpow.pop %v3568
        %v3570 = vmul.f32 %v3495, 1.442695
        %v3571 = vpow.pop %v3570
        %v3572 = vmul.f32 %v3496, 1.442695
        %v3573 = vpow.pop %v3572
        %v3574 = vmul.f32 %v3497, 1.442695
        %v3575 = vpow.pop %v3574
        %v3576 = vmul.f32 %v3498, 1.442695
        %v3577 = vpow.pop %v3576
        %v3578 = vmul.f32 %v3499, 1.442695
        %v3579 = vpow.pop %v3578
        %v3580 = vmul.f32 %v3500, 1.442695
        %v3581 = vpow.pop %v3580
        %v3582 = vmul.f32 %v3501, 1.442695
        %v3583 = vpow.pop %v3582
        %v3584 = vmul.f32 %v3502, 1.442695
        %v3585 = vpow.pop %v3584
        %v3586 = vmul.f32 %v3503, 1.442695
        %v3587 = vpow.pop %v3586
        %v3588 = vmul.f32 %v3504, 1.442695
        %v3589 = vpow.pop %v3588
        %v3590 = vmul.f32 %v3505, 1.442695
        %v3591 = vpow.pop %v3590
        %v3592 = vmul.f32 %v3506, 1.442695
        %v3593 = vpow.pop %v3592
        %v3594 = vmul.f32 %v3507, 1.442695
        %v3595 = vpow.pop %v3594
        %v3596 = vmul.f32 %v3508, 1.442695
        %v3597 = vpow.pop %v3596
        %v3598 = vmul.f32 %v3509, 1.442695
        %v3599 = vpow.pop %v3598
        %v3600 = vmul.f32 %v3510, 1.442695
        %v3601 = vpow.pop %v3600
        %v3602 = vmul.f32 %v3511, 1.442695
        %v3603 = vpow.pop %v3602
        %v3604 = vmul.f32 %v3512, 1.442695
        %v3605 = vpow.pop %v3604
        %v3606 = vmul.f32 %v3513, 1.442695
        %v3607 = vpow.pop %v3606
        %v3608 = vmul.f32 %v3514, 1.442695
        %v3609 = vpow.pop %v3608
        %v3610 = vmul.f32 %v3515, 1.442695
        %v3611 = vpow.pop %v3610
        %v3612 = vmul.f32 %v3516, 1.442695
        %v3613 = vpow.pop %v3612
        %v3614 = vmul.f32 %v3517, 1.442695
        %v3615 = vpow.pop %v3614
        %v3616 = vmul.f32 %v3518, 1.442695
        %v3617 = vpow.pop %v3616
        %v3618 = vmul.f32 %v3519, 1.442695
        %v3619 = vpow.pop %v3618
        %v3620 = vmul.f32 %v3520, 1.442695
        %v3621 = vpow.pop %v3620
        %v3622 = vmul.f32 %v3521, 1.442695
        %v3623 = vpow.pop %v3622
        %v3624 = vmul.f32 %v3522, 1.442695
        %v3625 = vpow.pop %v3624
        %v3626 = vmul.f32 %v3523, 1.442695
        %v3627 = vpow.pop %v3626
        %v3628 = vmul.f32 %v3524, 1.442695
        %v3629 = vpow.pop %v3628
        %v3630 = vmul.f32 %v3525, 1.442695
        %v3631 = vpow.pop %v3630
        %v3632 = vmul.f32 %v3526, 1.442695
        %v3633 = vpow.pop %v3632
        %v3634 = vmul.f32 %v3527, 1.442695
        %v3635 = vpow.pop %v3634
        %v3636 = vmul.f32 %v3528, 1.442695
        %v3637 = vpow.pop %v3636
        %v3638 = vmul.f32 %v3529, 1.442695
        %v3639 = vpow.pop %v3638
        %v3640 = vmul.f32 %v3530, 1.442695
        %v3641 = vpow.pop %v3640
        %v3642 = vmul.f32 %v3531, 1.442695
        %v3643 = vpow.pop %v3642
        %v3644 = vmul.f32 %v3532, 1.442695
        %v3645 = vpow.pop %v3644
        %v3646 = vmul.f32 %v3533, 1.442695
        %v3647 = vpow.pop %v3646
        %v3648 = vmul.f32 %v3534, 1.442695
        %v3649 = vpow.pop %v3648
        %v3650 = vmul.f32 %v3535, 1.442695
        %v3651 = vpow.pop %v3650
        %v3652 = vmul.f32 %v3536, 1.442695
        %v3653 = vpow.pop %v3652
        %v3654 = vmul.f32 %v3537, 1.442695
        %v3655 = vpow.pop %v3654
        %v3656 = vmul.f32 %v3538, 1.442695
        %v3657 = vpow.pop %v3656
        %v3658 = vmul.f32 %v3539, 1.442695
        %v3659 = vpow.pop %v3658
        %v3660 = vmul.f32 %v3540, 1.442695
        %v3661 = vpow.pop %v3660
        %v3662 = vmul.f32 %v3541, 1.442695
        %v3663 = vpow.pop %v3662
        %v3664 = vmul.f32 %v3542, 1.442695
        %v3665 = vpow.pop %v3664
        %v3666 = vmul.f32 %v3543, 1.442695
        %v3667 = vpow.pop %v3666
        %v3668 = vmul.f32 %v3544, 1.442695
        %v3669 = vpow.pop %v3668
        %v3670 = vmul.f32 %v3545, 1.442695
        %v3671 = vpow.pop %v3670
        %v3672 = vmul.f32 %v3546, 1.442695
        %v3673 = vpow.pop %v3672
        %v3674 = vmul.f32 %v3547, 1.442695
        %v3675 = vpow.pop %v3674
        %v3676 = vadd.f32 %v3549, %v3553
        %v3677 = vadd.f32 %v3676, %v3557
        %v3678 = vadd.f32 %v3677, %v3561
        %v3679 = vadd.f32 %v3678, %v3565
        %v3680 = vadd.f32 %v3679, %v3569
        %v3681 = vadd.f32 %v3680, %v3573
        %v3682 = vadd.f32 %v3681, %v3577
        %v3683 = vadd.f32 %v3682, %v3581
        %v3684 = vadd.f32 %v3683, %v3585
        %v3685 = vadd.f32 %v3684, %v3589
        %v3686 = vadd.f32 %v3685, %v3593
        %v3687 = vadd.f32 %v3686, %v3597
        %v3688 = vadd.f32 %v3687, %v3601
        %v3689 = vadd.f32 %v3688, %v3605
        %v3690 = vadd.f32 %v3689, %v3609
        %v3691 = vadd.f32 %v3690, %v3613
        %v3692 = vadd.f32 %v3691, %v3617
        %v3693 = vadd.f32 %v3692, %v3621
        %v3694 = vadd.f32 %v3693, %v3625
        %v3695 = vadd.f32 %v3694, %v3629
        %v3696 = vadd.f32 %v3695, %v3633
        %v3697 = vadd.f32 %v3696, %v3637
        %v3698 = vadd.f32 %v3697, %v3641
        %v3699 = vadd.f32 %v3698, %v3645
        %v3700 = vadd.f32 %v3699, %v3649
        %v3701 = vadd.f32 %v3700, %v3653
        %v3702 = vadd.f32 %v3701, %v3657
        %v3703 = vadd.f32 %v3702, %v3661
        %v3704 = vadd.f32 %v3703, %v3665
        %v3705 = vadd.f32 %v3704, %v3669
        %v3706 = vadd.f32 %v3705, %v3673
        %v3707 = vrot.slane %v3706, 4
        %v3708 = vadd.f32 %v3706, %v3707
        %v3709 = vrot.slane %v3708, 2
        %v3710 = vadd.f32 %v3708, %v3709
        %v3711 = vrot.slane %v3710, 1
        %v3712 = vadd.f32 %v3710, %v3711
        %v3713 = vadd.f32 %v3551, %v3555
        %v3714 = vadd.f32 %v3713, %v3559
        %v3715 = vadd.f32 %v3714, %v3563
        %v3716 = vadd.f32 %v3715, %v3567
        %v3717 = vadd.f32 %v3716, %v3571
        %v3718 = vadd.f32 %v3717, %v3575
        %v3719 = vadd.f32 %v3718, %v3579
        %v3720 = vadd.f32 %v3719, %v3583
        %v3721 = vadd.f32 %v3720, %v3587
        %v3722 = vadd.f32 %v3721, %v3591
        %v3723 = vadd.f32 %v3722, %v3595
        %v3724 = vadd.f32 %v3723, %v3599
        %v3725 = vadd.f32 %v3724, %v3603
        %v3726 = vadd.f32 %v3725, %v3607
        %v3727 = vadd.f32 %v3726, %v3611
        %v3728 = vadd.f32 %v3727, %v3615
        %v3729 = vadd.f32 %v3728, %v3619
        %v3730 = vadd.f32 %v3729, %v3623
        %v3731 = vadd.f32 %v3730, %v3627
        %v3732 = vadd.f32 %v3731, %v3631
        %v3733 = vadd.f32 %v3732, %v3635
        %v3734 = vadd.f32 %v3733, %v3639
        %v3735 = vadd.f32 %v3734, %v3643
        %v3736 = vadd.f32 %v3735, %v3647
        %v3737 = vadd.f32 %v3736, %v3651
        %v3738 = vadd.f32 %v3737, %v3655
        %v3739 = vadd.f32 %v3738, %v3659
        %v3740 = vadd.f32 %v3739, %v3663
        %v3741 = vadd.f32 %v3740, %v3667
        %v3742 = vadd.f32 %v3741, %v3671
        %v3743 = vadd.f32 %v3742, %v3675
        %v3744 = vrot.slane %v3743, 4
        %v3745 = vadd.f32 %v3743, %v3744
        %v3746 = vrot.slane %v3745, 2
        %v3747 = vadd.f32 %v3745, %v3746
        %v3748 = vrot.slane %v3747, 1
        %v3749 = vadd.f32 %v3747, %v3748
        %v3750 = vrcp.pop %v3712
        %v3751 = vrcp.pop %v3749
        %v3752 = vstv %s3120
        %v3753 = vmul.f32 %v3750, %v3752
        %v3754 = vmul.f32 %v3751, %v3752
        %v3755 = vmul.f32 %v1349, %v3753
        %v3756 = vmul.f32 %v1351, %v3754
        %v3757 = vmul.f32 %v1353, %v3753
        %v3758 = vmul.f32 %v1355, %v3754
        %v3759 = vmul.f32 %v1359, %v3753
        %v3760 = vmul.f32 %v1361, %v3754
        %v3761 = vmul.f32 %v1363, %v3753
        %v3762 = vmul.f32 %v1365, %v3754
        %v3763 = vmul.f32 %v1369, %v3753
        %v3764 = vmul.f32 %v1371, %v3754
        %v3765 = vmul.f32 %v1373, %v3753
        %v3766 = vmul.f32 %v1375, %v3754
        %v3767 = vmul.f32 %v1379, %v3753
        %v3768 = vmul.f32 %v1381, %v3754
        %v3769 = vmul.f32 %v1383, %v3753
        %v3770 = vmul.f32 %v1385, %v3754
        %v3771 = vmul.f32 %v1389, %v3753
        %v3772 = vmul.f32 %v1391, %v3754
        %v3773 = vmul.f32 %v1393, %v3753
        %v3774 = vmul.f32 %v1395, %v3754
        %v3775 = vmul.f32 %v1399, %v3753
        %v3776 = vmul.f32 %v1401, %v3754
        %v3777 = vmul.f32 %v1403, %v3753
        %v3778 = vmul.f32 %v1405, %v3754
        %v3779 = vmul.f32 %v1409, %v3753
        %v3780 = vmul.f32 %v1411, %v3754
        %v3781 = vmul.f32 %v1413, %v3753
        %v3782 = vmul.f32 %v1415, %v3754
        %v3783 = vmul.f32 %v1419, %v3753
        %v3784 = vmul.f32 %v1421, %v3754
        %v3785 = vmul.f32 %v1423, %v3753
        %v3786 = vmul.f32 %v1425, %v3754
        %v3787 = vpack.c.bf16 %v3757, %v3755
        %v3788 = vpack.c.bf16 %v3758, %v3756
        %v3789 = vpack.c.bf16 %v3761, %v3759
        %v3790 = vpack.c.bf16 %v3762, %v3760
        %v3791 = vpack.c.bf16 %v3765, %v3763
        %v3792 = vpack.c.bf16 %v3766, %v3764
        %v3793 = vpack.c.bf16 %v3769, %v3767
        %v3794 = vpack.c.bf16 %v3770, %v3768
        %v3795 = vpack.c.bf16 %v3773, %v3771
        %v3796 = vpack.c.bf16 %v3774, %v3772
        %v3797 = vpack.c.bf16 %v3777, %v3775
        %v3798 = vpack.c.bf16 %v3778, %v3776
        %v3799 = vpack.c.bf16 %v3781, %v3779
        %v3800 = vpack.c.bf16 %v3782, %v3780
        %v3801 = vpack.c.bf16 %v3785, %v3783
        %v3802 = vpack.c.bf16 %v3786, %v3784
        %v3803 = vpack.c.bf16 %v3553, %v3549
        %v3804 = vpack.c.bf16 %v3555, %v3551
        %v3805 = vpack.c.bf16 %v3561, %v3557
        %v3806 = vpack.c.bf16 %v3563, %v3559
        %v3807 = vpack.c.bf16 %v3569, %v3565
        %v3808 = vpack.c.bf16 %v3571, %v3567
        %v3809 = vpack.c.bf16 %v3577, %v3573
        %v3810 = vpack.c.bf16 %v3579, %v3575
        %v3811 = vpack.c.bf16 %v3585, %v3581
        %v3812 = vpack.c.bf16 %v3587, %v3583
        %v3813 = vpack.c.bf16 %v3593, %v3589
        %v3814 = vpack.c.bf16 %v3595, %v3591
        %v3815 = vpack.c.bf16 %v3601, %v3597
        %v3816 = vpack.c.bf16 %v3603, %v3599
        %v3817 = vpack.c.bf16 %v3609, %v3605
        %v3818 = vpack.c.bf16 %v3611, %v3607
        %v3819 = vpack.c.bf16 %v3617, %v3613
        %v3820 = vpack.c.bf16 %v3619, %v3615
        %v3821 = vpack.c.bf16 %v3625, %v3621
        %v3822 = vpack.c.bf16 %v3627, %v3623
        %v3823 = vpack.c.bf16 %v3633, %v3629
        %v3824 = vpack.c.bf16 %v3635, %v3631
        %v3825 = vpack.c.bf16 %v3641, %v3637
        %v3826 = vpack.c.bf16 %v3643, %v3639
        %v3827 = vpack.c.bf16 %v3649, %v3645
        %v3828 = vpack.c.bf16 %v3651, %v3647
        %v3829 = vpack.c.bf16 %v3657, %v3653
        %v3830 = vpack.c.bf16 %v3659, %v3655
        %v3831 = vpack.c.bf16 %v3665, %v3661
        %v3832 = vpack.c.bf16 %v3667, %v3663
        %v3833 = vpack.c.bf16 %v3673, %v3669
        %v3834 = vpack.c.bf16 %v3675, %v3671
        %3835 = vmatprep.subr.bf16.mxu0 %v3804
        %3836 = vmatpush1.bf16.xpose.msra.mxu0 %v3803
        %3837 = vmatprep.subr.bf16.mxu0 %v3806
        %3838 = vmatpush1.bf16.xpose.msra.mxu0 %v3805
        %3839 = vmatprep.subr.bf16.mxu0 %v3808
        %3840 = vmatpush1.bf16.xpose.msra.mxu0 %v3807
        %3841 = vmatprep.subr.bf16.mxu0 %v3810
        %3842 = vmatpush1.bf16.xpose.msra.mxu0 %v3809
        %3843 = vmatprep.subr.bf16.mxu0 %v3812
        %3844 = vmatpush1.bf16.xpose.msra.mxu0 %v3811
        %3845 = vmatprep.subr.bf16.mxu0 %v3814
        %3846 = vmatpush1.bf16.xpose.msra.mxu0 %v3813
        %3847 = vmatprep.subr.bf16.mxu0 %v3816
        %3848 = vmatpush1.bf16.xpose.msra.mxu0 %v3815
        %3849 = vmatprep.subr.bf16.mxu0 %v3818
        %3850 = vmatpush1.bf16.xpose.msra.mxu0 %v3817
        %3851 = vmatprep.subr.bf16.mxu0 %v3820
        %3852 = vmatpush1.bf16.xpose.msra.mxu0 %v3819
        %3853 = vmatprep.subr.bf16.mxu0 %v3822
        %3854 = vmatpush1.bf16.xpose.msra.mxu0 %v3821
        %3855 = vmatprep.subr.bf16.mxu0 %v3824
        %3856 = vmatpush1.bf16.xpose.msra.mxu0 %v3823
        %3857 = vmatprep.subr.bf16.mxu0 %v3826
        %3858 = vmatpush1.bf16.xpose.msra.mxu0 %v3825
        %3859 = vmatprep.subr.bf16.mxu0 %v3828
        %3860 = vmatpush1.bf16.xpose.msra.mxu0 %v3827
        %3861 = vmatprep.subr.bf16.mxu0 %v3830
        %3862 = vmatpush1.bf16.xpose.msra.mxu0 %v3829
        %3863 = vmatprep.subr.bf16.mxu0 %v3832
        %3864 = vmatpush1.bf16.xpose.msra.mxu0 %v3831
        %3865 = vmatprep.subr.bf16.mxu0 %v3834
        %3866 = vmatpush1.bf16.xpose.msra.mxu0 %v3833
        %3867 = vmatprep.mubr.bf16.mxu0 %v3788
        %3868 = vmatmul.mubr.bf16.gmra.mrb[0].mxu0 %v3787
        %v3869 = vpop.f32.mrb[0].mxu0
        %v3870 = vadd.f32 %v562, %v3869
        %v3871 = vpop.f32.mrb[0].mxu0
        %v3872 = vadd.f32 %v563, %v3871
        %v3873 = vpop.f32.mrb[0].mxu0
        %v3874 = vadd.f32 %v564, %v3873
        %v3875 = vpop.f32.mrb[0].mxu0
        %v3876 = vadd.f32 %v565, %v3875
        %3877 = vmatprep.mubr.bf16.mxu0 %v3790
        %3878 = vmatmul.mubr.bf16.gmra.mrb[0].mxu0 %v3789
        %v3879 = vpop.f32.mrb[0].mxu0
        %v3880 = vadd.f32 %v566, %v3879
        %v3881 = vpop.f32.mrb[0].mxu0
        %v3882 = vadd.f32 %v567, %v3881
        %v3883 = vpop.f32.mrb[0].mxu0
        %v3884 = vadd.f32 %v568, %v3883
        %v3885 = vpop.f32.mrb[0].mxu0
        %v3886 = vadd.f32 %v569, %v3885
        %3887 = vmatprep.mubr.bf16.mxu0 %v3792
        %3888 = vmatmul.mubr.bf16.gmra.mrb[0].mxu0 %v3791
        %v3889 = vpop.f32.mrb[0].mxu0
        %v3890 = vadd.f32 %v570, %v3889
        %v3891 = vpop.f32.mrb[0].mxu0
        %v3892 = vadd.f32 %v571, %v3891
        %v3893 = vpop.f32.mrb[0].mxu0
        %v3894 = vadd.f32 %v572, %v3893
        %v3895 = vpop.f32.mrb[0].mxu0
        %v3896 = vadd.f32 %v573, %v3895
        %3897 = vmatprep.mubr.bf16.mxu0 %v3794
        %3898 = vmatmul.mubr.bf16.gmra.mrb[0].mxu0 %v3793
        %v3899 = vpop.f32.mrb[0].mxu0
        %v3900 = vadd.f32 %v574, %v3899
        %v3901 = vpop.f32.mrb[0].mxu0
        %v3902 = vadd.f32 %v575, %v3901
        %v3903 = vpop.f32.mrb[0].mxu0
        %v3904 = vadd.f32 %v576, %v3903
        %v3905 = vpop.f32.mrb[0].mxu0
        %v3906 = vadd.f32 %v577, %v3905
        %3907 = vmatprep.mubr.bf16.mxu0 %v3796
        %3908 = vmatmul.mubr.bf16.gmra.mrb[0].mxu0 %v3795
        %v3909 = vpop.f32.mrb[0].mxu0
        %v3910 = vadd.f32 %v578, %v3909
        %v3911 = vpop.f32.mrb[0].mxu0
        %v3912 = vadd.f32 %v579, %v3911
        %v3913 = vpop.f32.mrb[0].mxu0
        %v3914 = vadd.f32 %v580, %v3913
        %v3915 = vpop.f32.mrb[0].mxu0
        %v3916 = vadd.f32 %v581, %v3915
        %3917 = vmatprep.mubr.bf16.mxu0 %v3798
        %3918 = vmatmul.mubr.bf16.gmra.mrb[0].mxu0 %v3797
        %v3919 = vpop.f32.mrb[0].mxu0
        %v3920 = vadd.f32 %v582, %v3919
        %v3921 = vpop.f32.mrb[0].mxu0
        %v3922 = vadd.f32 %v583, %v3921
        %v3923 = vpop.f32.mrb[0].mxu0
        %v3924 = vadd.f32 %v584, %v3923
        %v3925 = vpop.f32.mrb[0].mxu0
        %v3926 = vadd.f32 %v585, %v3925
        %3927 = vmatprep.mubr.bf16.mxu0 %v3800
        %3928 = vmatmul.mubr.bf16.gmra.mrb[0].mxu0 %v3799
        %v3929 = vpop.f32.mrb[0].mxu0
        %v3930 = vadd.f32 %v586, %v3929
        %v3931 = vpop.f32.mrb[0].mxu0
        %v3932 = vadd.f32 %v587, %v3931
        %v3933 = vpop.f32.mrb[0].mxu0
        %v3934 = vadd.f32 %v588, %v3933
        %v3935 = vpop.f32.mrb[0].mxu0
        %v3936 = vadd.f32 %v589, %v3935
        %3937 = vmatprep.mubr.bf16.mxu0 %v3802
        %3938 = vmatmul.mubr.bf16.gmra.mrb[0].mxu0 %v3801
        %v3939 = vpop.f32.mrb[0].mxu0
        %v3940 = vadd.f32 %v590, %v3939
        %v3941 = vpop.f32.mrb[0].mxu0
        %v3942 = vadd.f32 %v591, %v3941
        %v3943 = vpop.f32.mrb[0].mxu0
        %v3944 = vadd.f32 %v592, %v3943
        %v3945 = vpop.f32.mrb[0].mxu0
        %v3946 = vadd.f32 %v593, %v3945
        %3947 = vdwg.mxu0
        %v3948 = vmax.f32 %v3870, 0.0
        %v3949 = vmax.f32 %v3872, 0.0
        %v3950 = vmax.f32 %v3874, 0.0
        %v3951 = vmax.f32 %v3876, 0.0
        %v3952 = vmax.f32 %v3880, 0.0
        %v3953 = vmax.f32 %v3882, 0.0
        %v3954 = vmax.f32 %v3884, 0.0
        %v3955 = vmax.f32 %v3886, 0.0
        %v3956 = vmax.f32 %v3890, 0.0
        %v3957 = vmax.f32 %v3892, 0.0
        %v3958 = vmax.f32 %v3894, 0.0
        %v3959 = vmax.f32 %v3896, 0.0
        %v3960 = vmax.f32 %v3900, 0.0
        %v3961 = vmax.f32 %v3902, 0.0
        %v3962 = vmax.f32 %v3904, 0.0
        %v3963 = vmax.f32 %v3906, 0.0
        %v3964 = vmax.f32 %v3910, 0.0
        %v3965 = vmax.f32 %v3912, 0.0
        %v3966 = vmax.f32 %v3914, 0.0
        %v3967 = vmax.f32 %v3916, 0.0
        %v3968 = vmax.f32 %v3920, 0.0
        %v3969 = vmax.f32 %v3922, 0.0
        %v3970 = vmax.f32 %v3924, 0.0
        %v3971 = vmax.f32 %v3926, 0.0
        %v3972 = vmax.f32 %v3930, 0.0
        %v3973 = vmax.f32 %v3932, 0.0
        %v3974 = vmax.f32 %v3934, 0.0
        %v3975 = vmax.f32 %v3936, 0.0
        %v3976 = vmax.f32 %v3940, 0.0
        %v3977 = vmax.f32 %v3942, 0.0
        %v3978 = vmax.f32 %v3944, 0.0
        %v3979 = vmax.f32 %v3946, 0.0
        %v3980 = vpack.c.bf16 %v3090, %v3088
        %v3981 = vpack.c.bf16 %v3091, %v3089
        %v3982 = vpack.c.bf16 %v3094, %v3092
        %v3983 = vpack.c.bf16 %v3095, %v3093
        %v3984 = vpack.c.bf16 %v3098, %v3096
        %v3985 = vpack.c.bf16 %v3099, %v3097
        %v3986 = vpack.c.bf16 %v3102, %v3100
        %v3987 = vpack.c.bf16 %v3103, %v3101
        %v3988 = vpack.c.bf16 %v3106, %v3104
        %v3989 = vpack.c.bf16 %v3107, %v3105
        %v3990 = vpack.c.bf16 %v3110, %v3108
        %v3991 = vpack.c.bf16 %v3111, %v3109
        %v3992 = vpack.c.bf16 %v3114, %v3112
        %v3993 = vpack.c.bf16 %v3115, %v3113
        %v3994 = vpack.c.bf16 %v3118, %v3116
        %v3995 = vpack.c.bf16 %v3119, %v3117
        %v3996 = vpack.c.bf16 %v3950, %v3948
        %v3997 = vpack.c.bf16 %v3951, %v3949
        %v3998 = vpack.c.bf16 %v3954, %v3952
        %v3999 = vpack.c.bf16 %v3955, %v3953
        %v4000 = vpack.c.bf16 %v3958, %v3956
        %v4001 = vpack.c.bf16 %v3959, %v3957
        %v4002 = vpack.c.bf16 %v3962, %v3960
        %v4003 = vpack.c.bf16 %v3963, %v3961
        %v4004 = vpack.c.bf16 %v3966, %v3964
        %v4005 = vpack.c.bf16 %v3967, %v3965
        %v4006 = vpack.c.bf16 %v3970, %v3968
        %v4007 = vpack.c.bf16 %v3971, %v3969
        %v4008 = vpack.c.bf16 %v3974, %v3972
        %v4009 = vpack.c.bf16 %v3975, %v3973
        %v4010 = vpack.c.bf16 %v3978, %v3976
        %v4011 = vpack.c.bf16 %v3979, %v3977
        %4012 = vmatprep.subr.bf16.mxu0 %v3981
        %4013 = vmatpush1.bf16.xpose.msra.mxu0 %v3980
        %4014 = vmatprep.subr.bf16.mxu0 %v3983
        %4015 = vmatpush1.bf16.xpose.msra.mxu0 %v3982
        %4016 = vmatprep.subr.bf16.mxu0 %v3985
        %4017 = vmatpush1.bf16.xpose.msra.mxu0 %v3984
        %4018 = vmatprep.subr.bf16.mxu0 %v3987
        %4019 = vmatpush1.bf16.xpose.msra.mxu0 %v3986
        %4020 = vmatprep.subr.bf16.mxu0 %v3989
        %4021 = vmatpush1.bf16.xpose.msra.mxu0 %v3988
        %4022 = vmatprep.subr.bf16.mxu0 %v3991
        %4023 = vmatpush1.bf16.xpose.msra.mxu0 %v3990
        %4024 = vmatprep.subr.bf16.mxu0 %v3993
        %4025 = vmatpush1.bf16.xpose.msra.mxu0 %v3992
        %4026 = vmatprep.subr.bf16.mxu0 %v3995
        %4027 = vmatpush1.bf16.xpose.msra.mxu0 %v3994
        %4028 = vmatprep.subr.bf16.mxu0 0
        %4029 = vmatpush1.bf16.xpose.msra.mxu0 0
        %4030 = vmatprep.subr.bf16.mxu0 0
        %4031 = vmatpush1.bf16.xpose.msra.mxu0 0
        %4032 = vmatprep.subr.bf16.mxu0 0
        %4033 = vmatpush1.bf16.xpose.msra.mxu0 0
        %4034 = vmatprep.subr.bf16.mxu0 0
        %4035 = vmatpush1.bf16.xpose.msra.mxu0 0
        %4036 = vmatprep.subr.bf16.mxu0 0
        %4037 = vmatpush1.bf16.xpose.msra.mxu0 0
        %4038 = vmatprep.subr.bf16.mxu0 0
        %4039 = vmatpush1.bf16.xpose.msra.mxu0 0
        %4040 = vmatprep.subr.bf16.mxu0 0
        %4041 = vmatpush1.bf16.xpose.msra.mxu0 0
        %4042 = vmatprep.subr.bf16.mxu0 0
        %4043 = vmatpush1.bf16.xpose.msra.mxu0 0
        %4044 = vmatprep.mubr.bf16.mxu0 1065369472
        %4045 = vmatmul.mubr.bf16.gmra.mrb[0].mxu0 1065369472
        %v4046 = vpop.f32.mrb[0].mxu0
        %v4047 = vadd.f32 0.0, %v4046
        %v4048 = vpop.f32.mrb[0].mxu0
        %v4049 = vpop.f32.mrb[0].mxu0
        %v4050 = vpop.f32.mrb[0].mxu0
        %4051 = vdwg.mxu0
        %v4052 = vmul.f32 %v4047, 0.00390625
        %4053 = vmatprep.subr.bf16.mxu0 %v3997
        %4054 = vmatpush1.bf16.xpose.msra.mxu0 %v3996
        %4055 = vmatprep.subr.bf16.mxu0 %v3999
        %4056 = vmatpush1.bf16.xpose.msra.mxu0 %v3998
        %4057 = vmatprep.subr.bf16.mxu0 %v4001
        %4058 = vmatpush1.bf16.xpose.msra.mxu0 %v4000
        %4059 = vmatprep.subr.bf16.mxu0 %v4003
        %4060 = vmatpush1.bf16.xpose.msra.mxu0 %v4002
        %4061 = vmatprep.subr.bf16.mxu0 %v4005
        %4062 = vmatpush1.bf16.xpose.msra.mxu0 %v4004
        %4063 = vmatprep.subr.bf16.mxu0 %v4007
        %4064 = vmatpush1.bf16.xpose.msra.mxu0 %v4006
        %4065 = vmatprep.subr.bf16.mxu0 %v4009
        %4066 = vmatpush1.bf16.xpose.msra.mxu0 %v4008
        %4067 = vmatprep.subr.bf16.mxu0 %v4011
        %4068 = vmatpush1.bf16.xpose.msra.mxu0 %v4010
        %4069 = vmatprep.subr.bf16.mxu0 0
        %4070 = vmatpush1.bf16.xpose.msra.mxu0 0
        %4071 = vmatprep.subr.bf16.mxu0 0
        %4072 = vmatpush1.bf16.xpose.msra.mxu0 0
        %4073 = vmatprep.subr.bf16.mxu0 0
        %4074 = vmatpush1.bf16.xpose.msra.mxu0 0
        %4075 = vmatprep.subr.bf16.mxu0 0
        %4076 = vmatpush1.bf16.xpose.msra.mxu0 0
        %4077 = vmatprep.subr.bf16.mxu0 0
        %4078 = vmatpush1.bf16.xpose.msra.mxu0 0
        %4079 = vmatprep.subr.bf16.mxu0 0
        %4080 = vmatpush1.bf16.xpose.msra.mxu0 0
        %4081 = vmatprep.subr.bf16.mxu0 0
        %4082 = vmatpush1.bf16.xpose.msra.mxu0 0
        %4083 = vmatprep.subr.bf16.mxu0 0
        %4084 = vmatpush1.bf16.xpose.msra.mxu0 0
        %4085 = vmatprep.mubr.bf16.mxu0 1065369472
        %4086 = vmatmul.mubr.bf16.gmra.mrb[0].mxu0 1065369472
        %v4087 = vpop.f32.mrb[0].mxu0
        %v4088 = vadd.f32 0.0, %v4087
        %v4089 = vpop.f32.mrb[0].mxu0
        %v4090 = vpop.f32.mrb[0].mxu0
        %v4091 = vpop.f32.mrb[0].mxu0
        %4092 = vdwg.mxu0
        %v4093 = vmul.f32 %v4088, 0.00390625
        %v4094 = vpack.c.bf16 %v4052, %v4052
        %v4095 = vpack.c.bf16 %v4093, %v4093
        %v4096 = vld [vmem:[%s7] sm:$0xf]
        %v4097 = vld [vmem:[%s7 + $0x4] sm:$0xf]
        %v4098 = vld [vmem:[%s7 + $0x8] sm:$0xf]
        %v4099 = vld [vmem:[%s7 + $0xc] sm:$0xf]
        %v4100 = vld [vmem:[%s7 + $0x10] sm:$0xf]
        %v4101 = vld [vmem:[%s7 + $0x14] sm:$0xf]
        %v4102 = vld [vmem:[%s7 + $0x18] sm:$0xf]
        %v4103 = vld [vmem:[%s7 + $0x1c] sm:$0xf]
        %v4104 = vld [vmem:[%s7 + $0x20] sm:$0xf]
        %v4105 = vld [vmem:[%s7 + $0x24] sm:$0xf]
        %v4106 = vld [vmem:[%s7 + $0x28] sm:$0xf]
        %v4107 = vld [vmem:[%s7 + $0x2c] sm:$0xf]
        %v4108 = vld [vmem:[%s7 + $0x30] sm:$0xf]
        %v4109 = vld [vmem:[%s7 + $0x34] sm:$0xf]
        %v4110 = vld [vmem:[%s7 + $0x38] sm:$0xf]
        %v4111 = vld [vmem:[%s7 + $0x3c] sm:$0xf]
        %v4112 = vld [vmem:[%s7 + $0x40] sm:$0xf]
        %v4113 = vld [vmem:[%s7 + $0x44] sm:$0xf]
        %v4114 = vld [vmem:[%s7 + $0x48] sm:$0xf]
        %v4115 = vld [vmem:[%s7 + $0x4c] sm:$0xf]
        %v4116 = vld [vmem:[%s7 + $0x50] sm:$0xf]
        %v4117 = vld [vmem:[%s7 + $0x54] sm:$0xf]
        %v4118 = vld [vmem:[%s7 + $0x58] sm:$0xf]
        %v4119 = vld [vmem:[%s7 + $0x5c] sm:$0xf]
        %v4120 = vld [vmem:[%s7 + $0x60] sm:$0xf]
        %v4121 = vld [vmem:[%s7 + $0x64] sm:$0xf]
        %v4122 = vld [vmem:[%s7 + $0x68] sm:$0xf]
        %v4123 = vld [vmem:[%s7 + $0x6c] sm:$0xf]
        %v4124 = vld [vmem:[%s7 + $0x70] sm:$0xf]
        %v4125 = vld [vmem:[%s7 + $0x74] sm:$0xf]
        %v4126 = vld [vmem:[%s7 + $0x78] sm:$0xf]
        %v4127 = vld [vmem:[%s7 + $0x7c] sm:$0xf]
        %v4128 = vld [vmem:[%s8] sm:$0x1]
        %v4161 = vunpack.c.l.b16 %v4096
        %v4162 = vunpack.c.l.b16 %v4097
        %v4163 = vunpack.c.l.b16 %v4098
        %v4164 = vunpack.c.l.b16 %v4099
        %v4165 = vunpack.c.l.b16 %v4100
        %v4166 = vunpack.c.l.b16 %v4101
        %v4167 = vunpack.c.l.b16 %v4102
        %v4168 = vunpack.c.l.b16 %v4103
        %v4169 = vunpack.c.l.b16 %v4104
        %v4170 = vunpack.c.l.b16 %v4105
        %v4171 = vunpack.c.l.b16 %v4106
        %v4172 = vunpack.c.l.b16 %v4107
        %v4173 = vunpack.c.l.b16 %v4108
        %v4174 = vunpack.c.l.b16 %v4109
        %v4175 = vunpack.c.l.b16 %v4110
        %v4176 = vunpack.c.l.b16 %v4111
        %v4177 = vunpack.c.l.b16 %v4112
        %v4178 = vunpack.c.l.b16 %v4113
        %v4179 = vunpack.c.l.b16 %v4114
        %v4180 = vunpack.c.l.b16 %v4115
        %v4181 = vunpack.c.l.b16 %v4116
        %v4182 = vunpack.c.l.b16 %v4117
        %v4183 = vunpack.c.l.b16 %v4118
        %v4184 = vunpack.c.l.b16 %v4119
        %v4185 = vunpack.c.l.b16 %v4120
        %v4186 = vunpack.c.l.b16 %v4121
        %v4187 = vunpack.c.l.b16 %v4122
        %v4188 = vunpack.c.l.b16 %v4123
        %v4189 = vunpack.c.l.b16 %v4124
        %v4190 = vunpack.c.l.b16 %v4125
        %v4191 = vunpack.c.l.b16 %v4126
        %v4192 = vunpack.c.l.b16 %v4127
        %v4193 = vpack.c.b16 %v4162, %v4161
        %v4194 = vpack.c.b16 %v4164, %v4163
        %v4195 = vpack.c.b16 %v4166, %v4165
        %v4196 = vpack.c.b16 %v4168, %v4167
        %v4197 = vpack.c.b16 %v4170, %v4169
        %v4198 = vpack.c.b16 %v4172, %v4171
        %v4199 = vpack.c.b16 %v4174, %v4173
        %v4200 = vpack.c.b16 %v4176, %v4175
        %v4201 = vpack.c.b16 %v4178, %v4177
        %v4202 = vpack.c.b16 %v4180, %v4179
        %v4203 = vpack.c.b16 %v4182, %v4181
        %v4204 = vpack.c.b16 %v4184, %v4183
        %v4205 = vpack.c.b16 %v4186, %v4185
        %v4206 = vpack.c.b16 %v4188, %v4187
        %v4207 = vpack.c.b16 %v4190, %v4189
        %v4208 = vpack.c.b16 %v4192, %v4191
        %4225 = vmatprep.subr.bf16.mxu0 0
        %4226 = vmatpush1.bf16.msra.mxu0 %v4193
        %4227 = vmatprep.subr.bf16.mxu0 0
        %4228 = vmatpush1.bf16.msra.mxu0 %v4194
        %4229 = vmatprep.subr.bf16.mxu0 0
        %4230 = vmatpush1.bf16.msra.mxu0 %v4195
        %4231 = vmatprep.subr.bf16.mxu0 0
        %4232 = vmatpush1.bf16.msra.mxu0 %v4196
        %4233 = vmatprep.subr.bf16.mxu0 0
        %4234 = vmatpush1.bf16.msra.mxu0 %v4197
        %4235 = vmatprep.subr.bf16.mxu0 0
        %4236 = vmatpush1.bf16.msra.mxu0 %v4198
        %4237 = vmatprep.subr.bf16.mxu0 0
        %4238 = vmatpush1.bf16.msra.mxu0 %v4199
        %4239 = vmatprep.subr.bf16.mxu0 0
        %4240 = vmatpush1.bf16.msra.mxu0 %v4200
        %4241 = vmatprep.subr.bf16.mxu0 0
        %4242 = vmatpush1.bf16.msra.mxu0 %v4201
        %4243 = vmatprep.subr.bf16.mxu0 0
        %4244 = vmatpush1.bf16.msra.mxu0 %v4202
        %4245 = vmatprep.subr.bf16.mxu0 0
        %4246 = vmatpush1.bf16.msra.mxu0 %v4203
        %4247 = vmatprep.subr.bf16.mxu0 0
        %4248 = vmatpush1.bf16.msra.mxu0 %v4204
        %4249 = vmatprep.subr.bf16.mxu0 0
        %4250 = vmatpush1.bf16.msra.mxu0 %v4205
        %4251 = vmatprep.subr.bf16.mxu0 0
        %4252 = vmatpush1.bf16.msra.mxu0 %v4206
        %4253 = vmatprep.subr.bf16.mxu0 0
        %4254 = vmatpush1.bf16.msra.mxu0 %v4207
        %4255 = vmatprep.subr.bf16.mxu0 0
        %4256 = vmatpush1.bf16.msra.mxu0 %v4208
        %4257 = vmatprep.mubr.bf16.mxu0 %v4095
        %4258 = vmatmul.mubr.bf16.gmra.mrb[0].mxu0 %v4094
        %v4259 = vpop.f32.mrb[0].mxu0
        %v4260 = vadd.f32 %v4128, %v4259
        %v4261 = vpop.f32.mrb[0].mxu0
        %v4262 = vpop.f32.mrb[0].mxu0
        %v4263 = vpop.f32.mrb[0].mxu0
        %4264 = vdwg.mxu0
        %v4265 = vmax.f32 %v4260, 0.0
        %v4266 = vpack.c.bf16 %v4265, %v4265
        %v4267 = vld [vmem:[%s9] sm:$0xff]
        %v4268 = vld [vmem:[%s9 + $0x8] sm:$0xff]
        %v4269 = vld [vmem:[%s9 + $0x10] sm:$0xff]
        %v4270 = vld [vmem:[%s9 + $0x18] sm:$0xff]
        %v4271 = vld [vmem:[%s9 + $0x20] sm:$0xff]
        %v4272 = vld [vmem:[%s9 + $0x28] sm:$0xff]
        %v4273 = vld [vmem:[%s9 + $0x30] sm:$0xff]
        %v4274 = vld [vmem:[%s9 + $0x38] sm:$0xff]
        %v4275 = vld [vmem:[%s10] sm:$0x3]
        %v4284 = vunpack.c.l.b16 %v4267
        %v4285 = vunpack.c.h.b16 %v4267
        %v4286 = vunpack.c.l.b16 %v4268
        %v4287 = vunpack.c.h.b16 %v4268
        %v4288 = vunpack.c.l.b16 %v4269
        %v4289 = vunpack.c.h.b16 %v4269
        %v4290 = vunpack.c.l.b16 %v4270
        %v4291 = vunpack.c.h.b16 %v4270
        %v4292 = vunpack.c.l.b16 %v4271
        %v4293 = vunpack.c.h.b16 %v4271
        %v4294 = vunpack.c.l.b16 %v4272
        %v4295 = vunpack.c.h.b16 %v4272
        %v4296 = vunpack.c.l.b16 %v4273
        %v4297 = vunpack.c.h.b16 %v4273
        %v4298 = vunpack.c.l.b16 %v4274
        %v4299 = vunpack.c.h.b16 %v4274
        %v4300 = vpack.c.b16 %v4286, %v4284
        %v4301 = vpack.c.b16 %v4287, %v4285
        %v4302 = vpack.c.b16 %v4290, %v4288
        %v4303 = vpack.c.b16 %v4291, %v4289
        %v4304 = vpack.c.b16 %v4294, %v4292
        %v4305 = vpack.c.b16 %v4295, %v4293
        %v4306 = vpack.c.b16 %v4298, %v4296
        %v4307 = vpack.c.b16 %v4299, %v4297
        %v4317 = vlaneseq
        %v4318 = vshrl.u32 %v4317, 7
        %v4319 = vsub.s32 0, %v4318
        %v4320 = vrot.slane %v4275, %v4319
        %v4321 = vlaneseq
        %v4322 = vshrl.u32 %v4321, 7
        %v4323 = vsub.s32 1, %v4322
        %v4324 = vrot.slane %v4275, %v4323
        %vm4327 = vcmask 523264
        %v4329 = vsel %vm4327, %v4266, 0
        %4331 = vmatprep.subr.bf16.mxu0 %v4301
        %4332 = vmatpush1.bf16.msra.mxu0 %v4300
        %4333 = vmatprep.subr.bf16.mxu0 %v4303
        %4334 = vmatpush1.bf16.msra.mxu0 %v4302
        %4335 = vmatprep.subr.bf16.mxu0 %v4305
        %4336 = vmatpush1.bf16.msra.mxu0 %v4304
        %4337 = vmatprep.subr.bf16.mxu0 %v4307
        %4338 = vmatpush1.bf16.msra.mxu0 %v4306
        %4339 = vmatprep.subr.bf16.mxu0 0
        %4340 = vmatpush1.bf16.msra.mxu0 0
        %4341 = vmatprep.subr.bf16.mxu0 0
        %4342 = vmatpush1.bf16.msra.mxu0 0
        %4343 = vmatprep.subr.bf16.mxu0 0
        %4344 = vmatpush1.bf16.msra.mxu0 0
        %4345 = vmatprep.subr.bf16.mxu0 0
        %4346 = vmatpush1.bf16.msra.mxu0 0
        %4347 = vmatprep.subr.bf16.mxu0 0
        %4348 = vmatpush1.bf16.msra.mxu0 0
        %4349 = vmatprep.subr.bf16.mxu0 0
        %4350 = vmatpush1.bf16.msra.mxu0 0
        %4351 = vmatprep.subr.bf16.mxu0 0
        %4352 = vmatpush1.bf16.msra.mxu0 0
        %4353 = vmatprep.subr.bf16.mxu0 0
        %4354 = vmatpush1.bf16.msra.mxu0 0
        %4355 = vmatprep.subr.bf16.mxu0 0
        %4356 = vmatpush1.bf16.msra.mxu0 0
        %4357 = vmatprep.subr.bf16.mxu0 0
        %4358 = vmatpush1.bf16.msra.mxu0 0
        %4359 = vmatprep.subr.bf16.mxu0 0
        %4360 = vmatpush1.bf16.msra.mxu0 0
        %4361 = vmatprep.subr.bf16.mxu0 0
        %4362 = vmatpush1.bf16.msra.mxu0 0
        %4363 = vmatprep.mubr.bf16.mxu0 0
        %4364 = vmatmul.mubr.bf16.gmra.mrb[0].mxu0 %v4329
        %v4365 = vpop.f32.mrb[0].mxu0
        %v4366 = vadd.f32 %v4320, %v4365
        %v4367 = vpop.f32.mrb[0].mxu0
        %v4368 = vadd.f32 %v4324, %v4367
        %v4369 = vpop.f32.mrb[0].mxu0
        %v4370 = vpop.f32.mrb[0].mxu0
        %4371 = vdwg.mxu0
        %v4372 = vpack.c.bf16 %v4366, %v4366
        %v4373 = vpack.c.bf16 %v4368, %v4368
        %v4374 = vld [vmem:[%s11] sm:$0xf]
        %v4375 = vld [vmem:[%s11 + $0x4] sm:$0xf]
        %v4376 = vld [vmem:[%s11 + $0x8] sm:$0xf]
        %v4377 = vld [vmem:[%s11 + $0xc] sm:$0xf]
        %v4378 = vld [vmem:[%s11 + $0x10] sm:$0xf]
        %v4379 = vld [vmem:[%s11 + $0x14] sm:$0xf]
        %v4380 = vld [vmem:[%s11 + $0x18] sm:$0xf]
        %v4381 = vld [vmem:[%s11 + $0x1c] sm:$0xf]
        %v4382 = vld [vmem:[%s11 + $0x20] sm:$0xf]
        %v4383 = vld [vmem:[%s11 + $0x24] sm:$0xf]
        %v4384 = vld [vmem:[%s11 + $0x28] sm:$0xf]
        %v4385 = vld [vmem:[%s11 + $0x2c] sm:$0xf]
        %v4386 = vld [vmem:[%s11 + $0x30] sm:$0xf]
        %v4387 = vld [vmem:[%s11 + $0x34] sm:$0xf]
        %v4388 = vld [vmem:[%s11 + $0x38] sm:$0xf]
        %v4389 = vld [vmem:[%s11 + $0x3c] sm:$0xf]
        %v4391 = vpack.i.b16 %v4372, %v4372
        %v4393 = vlaneseq
        %v4394 = vshrl.u32 %v4393, 7
        %v4395 = vsub.s32 0, %v4394
        %v4396 = vrot.slane %v4391, %v4395
        %v4398 = vunpack.c.l.b16 %v4396
        %v4399 = vpack.c.b16 %v4398, %v4398
        %v4401 = vmul.bf16 %v4374, %v4399
        %v4402 = vmul.bf16 %v4375, %v4399
        %v4403 = vmul.bf16 %v4376, %v4399
        %v4404 = vmul.bf16 %v4377, %v4399
        %v4405 = vmul.bf16 %v4378, %v4399
        %v4406 = vmul.bf16 %v4379, %v4399
        %v4407 = vmul.bf16 %v4380, %v4399
        %v4408 = vmul.bf16 %v4381, %v4399
        %v4409 = vmul.bf16 %v4382, %v4399
        %v4410 = vmul.bf16 %v4383, %v4399
        %v4411 = vmul.bf16 %v4384, %v4399
        %v4412 = vmul.bf16 %v4385, %v4399
        %v4413 = vmul.bf16 %v4386, %v4399
        %v4414 = vmul.bf16 %v4387, %v4399
        %v4415 = vmul.bf16 %v4388, %v4399
        %v4416 = vmul.bf16 %v4389, %v4399
        %v4417 = vld [vmem:[%s12] sm:$0xf]
        %v4418 = vld [vmem:[%s12 + $0x4] sm:$0xf]
        %v4419 = vld [vmem:[%s12 + $0x8] sm:$0xf]
        %v4420 = vld [vmem:[%s12 + $0xc] sm:$0xf]
        %v4421 = vld [vmem:[%s12 + $0x10] sm:$0xf]
        %v4422 = vld [vmem:[%s12 + $0x14] sm:$0xf]
        %v4423 = vld [vmem:[%s12 + $0x18] sm:$0xf]
        %v4424 = vld [vmem:[%s12 + $0x1c] sm:$0xf]
        %v4425 = vld [vmem:[%s12 + $0x20] sm:$0xf]
        %v4426 = vld [vmem:[%s12 + $0x24] sm:$0xf]
        %v4427 = vld [vmem:[%s12 + $0x28] sm:$0xf]
        %v4428 = vld [vmem:[%s12 + $0x2c] sm:$0xf]
        %v4429 = vld [vmem:[%s12 + $0x30] sm:$0xf]
        %v4430 = vld [vmem:[%s12 + $0x34] sm:$0xf]
        %v4431 = vld [vmem:[%s12 + $0x38] sm:$0xf]
        %v4432 = vld [vmem:[%s12 + $0x3c] sm:$0xf]
        %v4434 = vpack.i.b16 %v4373, %v4373
        %v4436 = vlaneseq
        %v4437 = vshrl.u32 %v4436, 7
        %v4438 = vsub.s32 0, %v4437
        %v4439 = vrot.slane %v4434, %v4438
        %v4441 = vunpack.c.l.b16 %v4439
        %v4442 = vpack.c.b16 %v4441, %v4441
        %v4444 = vmul.bf16 %v4417, %v4442
        %v4445 = vmul.bf16 %v4418, %v4442
        %v4446 = vmul.bf16 %v4419, %v4442
        %v4447 = vmul.bf16 %v4420, %v4442
        %v4448 = vmul.bf16 %v4421, %v4442
        %v4449 = vmul.bf16 %v4422, %v4442
        %v4450 = vmul.bf16 %v4423, %v4442
        %v4451 = vmul.bf16 %v4424, %v4442
        %v4452 = vmul.bf16 %v4425, %v4442
        %v4453 = vmul.bf16 %v4426, %v4442
        %v4454 = vmul.bf16 %v4427, %v4442
        %v4455 = vmul.bf16 %v4428, %v4442
        %v4456 = vmul.bf16 %v4429, %v4442
        %v4457 = vmul.bf16 %v4430, %v4442
        %v4458 = vmul.bf16 %v4431, %v4442
        %v4459 = vmul.bf16 %v4432, %v4442
        %v4476 = vunpack.c.l.b16 %v4444
        %v4477 = vunpack.c.l.b16 %v4445
        %v4478 = vunpack.c.l.b16 %v4446
        %v4479 = vunpack.c.l.b16 %v4447
        %v4480 = vunpack.c.l.b16 %v4448
        %v4481 = vunpack.c.l.b16 %v4449
        %v4482 = vunpack.c.l.b16 %v4450
        %v4483 = vunpack.c.l.b16 %v4451
        %v4484 = vunpack.c.l.b16 %v4452
        %v4485 = vunpack.c.l.b16 %v4453
        %v4486 = vunpack.c.l.b16 %v4454
        %v4487 = vunpack.c.l.b16 %v4455
        %v4488 = vunpack.c.l.b16 %v4456
        %v4489 = vunpack.c.l.b16 %v4457
        %v4490 = vunpack.c.l.b16 %v4458
        %v4491 = vunpack.c.l.b16 %v4459
        %v4492 = vpack.c.b16 %v4477, %v4476
        %v4493 = vpack.c.b16 %v4479, %v4478
        %v4494 = vpack.c.b16 %v4481, %v4480
        %v4495 = vpack.c.b16 %v4483, %v4482
        %v4496 = vpack.c.b16 %v4485, %v4484
        %v4497 = vpack.c.b16 %v4487, %v4486
        %v4498 = vpack.c.b16 %v4489, %v4488
        %v4499 = vpack.c.b16 %v4491, %v4490
        %4508 = vmatprep.subr.bf16.mxu0 %v3997
        %4509 = vmatpush1.bf16.msra.mxu0 %v3996
        %4510 = vmatprep.subr.bf16.mxu0 %v3999
        %4511 = vmatpush1.bf16.msra.mxu0 %v3998
        %4512 = vmatprep.subr.bf16.mxu0 %v4001
        %4513 = vmatpush1.bf16.msra.mxu0 %v4000
        %4514 = vmatprep.subr.bf16.mxu0 %v4003
        %4515 = vmatpush1.bf16.msra.mxu0 %v4002
        %4516 = vmatprep.subr.bf16.mxu0 %v4005
        %4517 = vmatpush1.bf16.msra.mxu0 %v4004
        %4518 = vmatprep.subr.bf16.mxu0 %v4007
        %4519 = vmatpush1.bf16.msra.mxu0 %v4006
        %4520 = vmatprep.subr.bf16.mxu0 %v4009
        %4521 = vmatpush1.bf16.msra.mxu0 %v4008
        %4522 = vmatprep.subr.bf16.mxu0 %v4011
        %4523 = vmatpush1.bf16.msra.mxu0 %v4010
        %4524 = vmatprep.subr.bf16.mxu0 0
        %4525 = vmatpush1.bf16.msra.mxu0 0
        %4526 = vmatprep.subr.bf16.mxu0 0
        %4527 = vmatpush1.bf16.msra.mxu0 0
        %4528 = vmatprep.subr.bf16.mxu0 0
        %4529 = vmatpush1.bf16.msra.mxu0 0
        %4530 = vmatprep.subr.bf16.mxu0 0
        %4531 = vmatpush1.bf16.msra.mxu0 0
        %4532 = vmatprep.subr.bf16.mxu0 0
        %4533 = vmatpush1.bf16.msra.mxu0 0
        %4534 = vmatprep.subr.bf16.mxu0 0
        %4535 = vmatpush1.bf16.msra.mxu0 0
        %4536 = vmatprep.subr.bf16.mxu0 0
        %4537 = vmatpush1.bf16.msra.mxu0 0
        %4538 = vmatprep.subr.bf16.mxu0 0
        %4539 = vmatpush1.bf16.msra.mxu0 0
        %4540 = vmatprep.mubr.bf16.mxu0 0
        %4541 = vmatmul.mubr.bf16.gmra.mrb[0].mxu0 %v4492
        %v4542 = vpop.f32.mrb[0].mxu0
        %v4543 = vadd.f32 0.0, %v4542
        %v4544 = vpop.f32.mrb[0].mxu0
        %v4545 = vadd.f32 0.0, %v4544
        %v4546 = vpop.f32.mrb[0].mxu0
        %v4547 = vadd.f32 0.0, %v4546
        %v4548 = vpop.f32.mrb[0].mxu0
        %v4549 = vadd.f32 0.0, %v4548
        %4550 = vmatprep.mubr.bf16.mxu0 0
        %4551 = vmatmul.mubr.bf16.gmra.mrb[0].mxu0 %v4493
        %v4552 = vpop.f32.mrb[0].mxu0
        %v4553 = vadd.f32 0.0, %v4552
        %v4554 = vpop.f32.mrb[0].mxu0
        %v4555 = vadd.f32 0.0, %v4554
        %v4556 = vpop.f32.mrb[0].mxu0
        %v4557 = vadd.f32 0.0, %v4556
        %v4558 = vpop.f32.mrb[0].mxu0
        %v4559 = vadd.f32 0.0, %v4558
        %4560 = vmatprep.mubr.bf16.mxu0 0
        %4561 = vmatmul.mubr.bf16.gmra.mrb[0].mxu0 %v4494
        %v4562 = vpop.f32.mrb[0].mxu0
        %v4563 = vadd.f32 0.0, %v4562
        %v4564 = vpop.f32.mrb[0].mxu0
        %v4565 = vadd.f32 0.0, %v4564
        %v4566 = vpop.f32.mrb[0].mxu0
        %v4567 = vadd.f32 0.0, %v4566
        %v4568 = vpop.f32.mrb[0].mxu0
        %v4569 = vadd.f32 0.0, %v4568
        %4570 = vmatprep.mubr.bf16.mxu0 0
        %4571 = vmatmul.mubr.bf16.gmra.mrb[0].mxu0 %v4495
        %v4572 = vpop.f32.mrb[0].mxu0
        %v4573 = vadd.f32 0.0, %v4572
        %v4574 = vpop.f32.mrb[0].mxu0
        %v4575 = vadd.f32 0.0, %v4574
        %v4576 = vpop.f32.mrb[0].mxu0
        %v4577 = vadd.f32 0.0, %v4576
        %v4578 = vpop.f32.mrb[0].mxu0
        %v4579 = vadd.f32 0.0, %v4578
        %4580 = vmatprep.mubr.bf16.mxu0 0
        %4581 = vmatmul.mubr.bf16.gmra.mrb[0].mxu0 %v4496
        %v4582 = vpop.f32.mrb[0].mxu0
        %v4583 = vadd.f32 0.0, %v4582
        %v4584 = vpop.f32.mrb[0].mxu0
        %v4585 = vadd.f32 0.0, %v4584
        %v4586 = vpop.f32.mrb[0].mxu0
        %v4587 = vadd.f32 0.0, %v4586
        %v4588 = vpop.f32.mrb[0].mxu0
        %v4589 = vadd.f32 0.0, %v4588
        %4590 = vmatprep.mubr.bf16.mxu0 0
        %4591 = vmatmul.mubr.bf16.gmra.mrb[0].mxu0 %v4497
        %v4592 = vpop.f32.mrb[0].mxu0
        %v4593 = vadd.f32 0.0, %v4592
        %v4594 = vpop.f32.mrb[0].mxu0
        %v4595 = vadd.f32 0.0, %v4594
        %v4596 = vpop.f32.mrb[0].mxu0
        %v4597 = vadd.f32 0.0, %v4596
        %v4598 = vpop.f32.mrb[0].mxu0
        %v4599 = vadd.f32 0.0, %v4598
        %4600 = vmatprep.mubr.bf16.mxu0 0
        %4601 = vmatmul.mubr.bf16.gmra.mrb[0].mxu0 %v4498
        %v4602 = vpop.f32.mrb[0].mxu0
        %v4603 = vadd.f32 0.0, %v4602
        %v4604 = vpop.f32.mrb[0].mxu0
        %v4605 = vadd.f32 0.0, %v4604
        %v4606 = vpop.f32.mrb[0].mxu0
        %v4607 = vadd.f32 0.0, %v4606
        %v4608 = vpop.f32.mrb[0].mxu0
        %v4609 = vadd.f32 0.0, %v4608
        %4610 = vmatprep.mubr.bf16.mxu0 0
        %4611 = vmatmul.mubr.bf16.gmra.mrb[0].mxu0 %v4499
        %v4612 = vpop.f32.mrb[0].mxu0
        %v4613 = vadd.f32 0.0, %v4612
        %v4614 = vpop.f32.mrb[0].mxu0
        %v4615 = vadd.f32 0.0, %v4614
        %v4616 = vpop.f32.mrb[0].mxu0
        %v4617 = vadd.f32 0.0, %v4616
        %v4618 = vpop.f32.mrb[0].mxu0
        %v4619 = vadd.f32 0.0, %v4618
        %4620 = vdwg.mxu0
        %v4637 = vunpack.c.l.b16 %v4401
        %v4638 = vunpack.c.l.b16 %v4402
        %v4639 = vunpack.c.l.b16 %v4403
        %v4640 = vunpack.c.l.b16 %v4404
        %v4641 = vunpack.c.l.b16 %v4405
        %v4642 = vunpack.c.l.b16 %v4406
        %v4643 = vunpack.c.l.b16 %v4407
        %v4644 = vunpack.c.l.b16 %v4408
        %v4645 = vunpack.c.l.b16 %v4409
        %v4646 = vunpack.c.l.b16 %v4410
        %v4647 = vunpack.c.l.b16 %v4411
        %v4648 = vunpack.c.l.b16 %v4412
        %v4649 = vunpack.c.l.b16 %v4413
        %v4650 = vunpack.c.l.b16 %v4414
        %v4651 = vunpack.c.l.b16 %v4415
        %v4652 = vunpack.c.l.b16 %v4416
        %v4653 = vpack.c.b16 %v4638, %v4637
        %v4654 = vpack.c.b16 %v4640, %v4639
        %v4655 = vpack.c.b16 %v4642, %v4641
        %v4656 = vpack.c.b16 %v4644, %v4643
        %v4657 = vpack.c.b16 %v4646, %v4645
        %v4658 = vpack.c.b16 %v4648, %v4647
        %v4659 = vpack.c.b16 %v4650, %v4649
        %v4660 = vpack.c.b16 %v4652, %v4651
        %4669 = vmatprep.subr.bf16.mxu0 %v3981
        %4670 = vmatpush1.bf16.msra.mxu0 %v3980
        %4671 = vmatprep.subr.bf16.mxu0 %v3983
        %4672 = vmatpush1.bf16.msra.mxu0 %v3982
        %4673 = vmatprep.subr.bf16.mxu0 %v3985
        %4674 = vmatpush1.bf16.msra.mxu0 %v3984
        %4675 = vmatprep.subr.bf16.mxu0 %v3987
        %4676 = vmatpush1.bf16.msra.mxu0 %v3986
        %4677 = vmatprep.subr.bf16.mxu0 %v3989
        %4678 = vmatpush1.bf16.msra.mxu0 %v3988
        %4679 = vmatprep.subr.bf16.mxu0 %v3991
        %4680 = vmatpush1.bf16.msra.mxu0 %v3990
        %4681 = vmatprep.subr.bf16.mxu0 %v3993
        %4682 = vmatpush1.bf16.msra.mxu0 %v3992
        %4683 = vmatprep.subr.bf16.mxu0 %v3995
        %4684 = vmatpush1.bf16.msra.mxu0 %v3994
        %4685 = vmatprep.subr.bf16.mxu0 0
        %4686 = vmatpush1.bf16.msra.mxu0 0
        %4687 = vmatprep.subr.bf16.mxu0 0
        %4688 = vmatpush1.bf16.msra.mxu0 0
        %4689 = vmatprep.subr.bf16.mxu0 0
        %4690 = vmatpush1.bf16.msra.mxu0 0
        %4691 = vmatprep.subr.bf16.mxu0 0
        %4692 = vmatpush1.bf16.msra.mxu0 0
        %4693 = vmatprep.subr.bf16.mxu0 0
        %4694 = vmatpush1.bf16.msra.mxu0 0
        %4695 = vmatprep.subr.bf16.mxu0 0
        %4696 = vmatpush1.bf16.msra.mxu0 0
        %4697 = vmatprep.subr.bf16.mxu0 0
        %4698 = vmatpush1.bf16.msra.mxu0 0
        %4699 = vmatprep.subr.bf16.mxu0 0
        %4700 = vmatpush1.bf16.msra.mxu0 0
        %4701 = vmatprep.mubr.bf16.mxu0 0
        %4702 = vmatmul.mubr.bf16.gmra.mrb[0].mxu0 %v4653
        %v4703 = vpop.f32.mrb[0].mxu0
        %v4704 = vadd.f32 %v4543, %v4703
        %v4705 = vpop.f32.mrb[0].mxu0
        %v4706 = vadd.f32 %v4545, %v4705
        %v4707 = vpop.f32.mrb[0].mxu0
        %v4708 = vadd.f32 %v4547, %v4707
        %v4709 = vpop.f32.mrb[0].mxu0
        %v4710 = vadd.f32 %v4549, %v4709
        %4711 = vmatprep.mubr.bf16.mxu0 0
        %4712 = vmatmul.mubr.bf16.gmra.mrb[0].mxu0 %v4654
        %v4713 = vpop.f32.mrb[0].mxu0
        %v4714 = vadd.f32 %v4553, %v4713
        %v4715 = vpop.f32.mrb[0].mxu0
        %v4716 = vadd.f32 %v4555, %v4715
        %v4717 = vpop.f32.mrb[0].mxu0
        %v4718 = vadd.f32 %v4557, %v4717
        %v4719 = vpop.f32.mrb[0].mxu0
        %v4720 = vadd.f32 %v4559, %v4719
        %4721 = vmatprep.mubr.bf16.mxu0 0
        %4722 = vmatmul.mubr.bf16.gmra.mrb[0].mxu0 %v4655
        %v4723 = vpop.f32.mrb[0].mxu0
        %v4724 = vadd.f32 %v4563, %v4723
        %v4725 = vpop.f32.mrb[0].mxu0
        %v4726 = vadd.f32 %v4565, %v4725
        %v4727 = vpop.f32.mrb[0].mxu0
        %v4728 = vadd.f32 %v4567, %v4727
        %v4729 = vpop.f32.mrb[0].mxu0
        %v4730 = vadd.f32 %v4569, %v4729
        %4731 = vmatprep.mubr.bf16.mxu0 0
        %4732 = vmatmul.mubr.bf16.gmra.mrb[0].mxu0 %v4656
        %v4733 = vpop.f32.mrb[0].mxu0
        %v4734 = vadd.f32 %v4573, %v4733
        %v4735 = vpop.f32.mrb[0].mxu0
        %v4736 = vadd.f32 %v4575, %v4735
        %v4737 = vpop.f32.mrb[0].mxu0
        %v4738 = vadd.f32 %v4577, %v4737
        %v4739 = vpop.f32.mrb[0].mxu0
        %v4740 = vadd.f32 %v4579, %v4739
        %4741 = vmatprep.mubr.bf16.mxu0 0
        %4742 = vmatmul.mubr.bf16.gmra.mrb[0].mxu0 %v4657
        %v4743 = vpop.f32.mrb[0].mxu0
        %v4744 = vadd.f32 %v4583, %v4743
        %v4745 = vpop.f32.mrb[0].mxu0
        %v4746 = vadd.f32 %v4585, %v4745
        %v4747 = vpop.f32.mrb[0].mxu0
        %v4748 = vadd.f32 %v4587, %v4747
        %v4749 = vpop.f32.mrb[0].mxu0
        %v4750 = vadd.f32 %v4589, %v4749
        %4751 = vmatprep.mubr.bf16.mxu0 0
        %4752 = vmatmul.mubr.bf16.gmra.mrb[0].mxu0 %v4658
        %v4753 = vpop.f32.mrb[0].mxu0
        %v4754 = vadd.f32 %v4593, %v4753
        %v4755 = vpop.f32.mrb[0].mxu0
        %v4756 = vadd.f32 %v4595, %v4755
        %v4757 = vpop.f32.mrb[0].mxu0
        %v4758 = vadd.f32 %v4597, %v4757
        %v4759 = vpop.f32.mrb[0].mxu0
        %v4760 = vadd.f32 %v4599, %v4759
        %4761 = vmatprep.mubr.bf16.mxu0 0
        %4762 = vmatmul.mubr.bf16.gmra.mrb[0].mxu0 %v4659
        %v4763 = vpop.f32.mrb[0].mxu0
        %v4764 = vadd.f32 %v4603, %v4763
        %v4765 = vpop.f32.mrb[0].mxu0
        %v4766 = vadd.f32 %v4605, %v4765
        %v4767 = vpop.f32.mrb[0].mxu0
        %v4768 = vadd.f32 %v4607, %v4767
        %v4769 = vpop.f32.mrb[0].mxu0
        %v4770 = vadd.f32 %v4609, %v4769
        %4771 = vmatprep.mubr.bf16.mxu0 0
        %4772 = vmatmul.mubr.bf16.gmra.mrb[0].mxu0 %v4660
        %v4773 = vpop.f32.mrb[0].mxu0
        %v4774 = vadd.f32 %v4613, %v4773
        %v4775 = vpop.f32.mrb[0].mxu0
        %v4776 = vadd.f32 %v4615, %v4775
        %v4777 = vpop.f32.mrb[0].mxu0
        %v4778 = vadd.f32 %v4617, %v4777
        %v4779 = vpop.f32.mrb[0].mxu0
        %v4780 = vadd.f32 %v4619, %v4779
        %4781 = vdwg.mxu0
        %v4782 = vld [vmem:[%s13] sm:$0xff]
        %v4783 = vld [vmem:[%s13 + $0x8] sm:$0xff]
        %v4784 = vld [vmem:[%s13 + $0x10] sm:$0xff]
        %v4785 = vld [vmem:[%s13 + $0x18] sm:$0xff]
        %v4786 = vld [vmem:[%s13 + $0x20] sm:$0xff]
        %v4787 = vld [vmem:[%s13 + $0x28] sm:$0xff]
        %v4788 = vld [vmem:[%s13 + $0x30] sm:$0xff]
        %v4789 = vld [vmem:[%s13 + $0x38] sm:$0xff]
        %v4790 = vld [vmem:[%s13 + $0x40] sm:$0xff]
        %v4791 = vld [vmem:[%s13 + $0x48] sm:$0xff]
        %v4792 = vld [vmem:[%s13 + $0x50] sm:$0xff]
        %v4793 = vld [vmem:[%s13 + $0x58] sm:$0xff]
        %v4794 = vld [vmem:[%s13 + $0x60] sm:$0xff]
        %v4795 = vld [vmem:[%s13 + $0x68] sm:$0xff]
        %v4796 = vld [vmem:[%s13 + $0x70] sm:$0xff]
        %v4797 = vld [vmem:[%s13 + $0x78] sm:$0xff]
        %4799 = vset.pattern.permute.xlu0 0
        %4800 = vperm.xlu0 %4799, %v4782
        %v4801 = vpop.permute.xlu0 %4800
        %4804 = vset.pattern.permute.xlu0 0
        %4805 = vperm.xlu0 %4804, %v4783
        %v4806 = vpop.permute.xlu0 %4805
        %4809 = vset.pattern.permute.xlu0 0
        %4810 = vperm.xlu0 %4809, %v4784
        %v4811 = vpop.permute.xlu0 %4810
        %4814 = vset.pattern.permute.xlu0 0
        %4815 = vperm.xlu0 %4814, %v4785
        %v4816 = vpop.permute.xlu0 %4815
        %4819 = vset.pattern.permute.xlu0 0
        %4820 = vperm.xlu0 %4819, %v4786
        %v4821 = vpop.permute.xlu0 %4820
        %4824 = vset.pattern.permute.xlu0 0
        %4825 = vperm.xlu0 %4824, %v4787
        %v4826 = vpop.permute.xlu0 %4825
        %4829 = vset.pattern.permute.xlu0 0
        %4830 = vperm.xlu0 %4829, %v4788
        %v4831 = vpop.permute.xlu0 %4830
        %4834 = vset.pattern.permute.xlu0 0
        %4835 = vperm.xlu0 %4834, %v4789
        %v4836 = vpop.permute.xlu0 %4835
        %4839 = vset.pattern.permute.xlu0 0
        %4840 = vperm.xlu0 %4839, %v4790
        %v4841 = vpop.permute.xlu0 %4840
        %4844 = vset.pattern.permute.xlu0 0
        %4845 = vperm.xlu0 %4844, %v4791
        %v4846 = vpop.permute.xlu0 %4845
        %4849 = vset.pattern.permute.xlu0 0
        %4850 = vperm.xlu0 %4849, %v4792
        %v4851 = vpop.permute.xlu0 %4850
        %4854 = vset.pattern.permute.xlu0 0
        %4855 = vperm.xlu0 %4854, %v4793
        %v4856 = vpop.permute.xlu0 %4855
        %4859 = vset.pattern.permute.xlu0 0
        %4860 = vperm.xlu0 %4859, %v4794
        %v4861 = vpop.permute.xlu0 %4860
        %4864 = vset.pattern.permute.xlu0 0
        %4865 = vperm.xlu0 %4864, %v4795
        %v4866 = vpop.permute.xlu0 %4865
        %4869 = vset.pattern.permute.xlu0 0
        %4870 = vperm.xlu0 %4869, %v4796
        %v4871 = vpop.permute.xlu0 %4870
        %4874 = vset.pattern.permute.xlu0 0
        %4875 = vperm.xlu0 %4874, %v4797
        %v4876 = vpop.permute.xlu0 %4875
        %v4878 = vadd.f32 %v4704, %v4801
        %v4879 = vadd.f32 %v4706, %v4801
        %v4880 = vadd.f32 %v4708, %v4806
        %v4881 = vadd.f32 %v4710, %v4806
        %v4882 = vadd.f32 %v4714, %v4811
        %v4883 = vadd.f32 %v4716, %v4811
        %v4884 = vadd.f32 %v4718, %v4816
        %v4885 = vadd.f32 %v4720, %v4816
        %v4886 = vadd.f32 %v4724, %v4821
        %v4887 = vadd.f32 %v4726, %v4821
        %v4888 = vadd.f32 %v4728, %v4826
        %v4889 = vadd.f32 %v4730, %v4826
        %v4890 = vadd.f32 %v4734, %v4831
        %v4891 = vadd.f32 %v4736, %v4831
        %v4892 = vadd.f32 %v4738, %v4836
        %v4893 = vadd.f32 %v4740, %v4836
        %v4894 = vadd.f32 %v4744, %v4841
        %v4895 = vadd.f32 %v4746, %v4841
        %v4896 = vadd.f32 %v4748, %v4846
        %v4897 = vadd.f32 %v4750, %v4846
        %v4898 = vadd.f32 %v4754, %v4851
        %v4899 = vadd.f32 %v4756, %v4851
        %v4900 = vadd.f32 %v4758, %v4856
        %v4901 = vadd.f32 %v4760, %v4856
        %v4902 = vadd.f32 %v4764, %v4861
        %v4903 = vadd.f32 %v4766, %v4861
        %v4904 = vadd.f32 %v4768, %v4866
        %v4905 = vadd.f32 %v4770, %v4866
        %v4906 = vadd.f32 %v4774, %v4871
        %v4907 = vadd.f32 %v4776, %v4871
        %v4908 = vadd.f32 %v4778, %v4876
        %v4909 = vadd.f32 %v4780, %v4876
        %v4910 = vmax.f32 %v4878, 0.0
        %v4911 = vmax.f32 %v4879, 0.0
        %v4912 = vmax.f32 %v4880, 0.0
        %v4913 = vmax.f32 %v4881, 0.0
        %v4914 = vmax.f32 %v4882, 0.0
        %v4915 = vmax.f32 %v4883, 0.0
        %v4916 = vmax.f32 %v4884, 0.0
        %v4917 = vmax.f32 %v4885, 0.0
        %v4918 = vmax.f32 %v4886, 0.0
        %v4919 = vmax.f32 %v4887, 0.0
        %v4920 = vmax.f32 %v4888, 0.0
        %v4921 = vmax.f32 %v4889, 0.0
        %v4922 = vmax.f32 %v4890, 0.0
        %v4923 = vmax.f32 %v4891, 0.0
        %v4924 = vmax.f32 %v4892, 0.0
        %v4925 = vmax.f32 %v4893, 0.0
        %v4926 = vmax.f32 %v4894, 0.0
        %v4927 = vmax.f32 %v4895, 0.0
        %v4928 = vmax.f32 %v4896, 0.0
        %v4929 = vmax.f32 %v4897, 0.0
        %v4930 = vmax.f32 %v4898, 0.0
        %v4931 = vmax.f32 %v4899, 0.0
        %v4932 = vmax.f32 %v4900, 0.0
        %v4933 = vmax.f32 %v4901, 0.0
        %v4934 = vmax.f32 %v4902, 0.0
        %v4935 = vmax.f32 %v4903, 0.0
        %v4936 = vmax.f32 %v4904, 0.0
        %v4937 = vmax.f32 %v4905, 0.0
        %v4938 = vmax.f32 %v4906, 0.0
        %v4939 = vmax.f32 %v4907, 0.0
        %v4940 = vmax.f32 %v4908, 0.0
        %v4941 = vmax.f32 %v4909, 0.0
        %v4942 = vadd.f32 %v530, %v4910
        %v4943 = vadd.f32 %v531, %v4911
        %v4944 = vadd.f32 %v532, %v4912
        %v4945 = vadd.f32 %v533, %v4913
        %v4946 = vadd.f32 %v534, %v4914
        %v4947 = vadd.f32 %v535, %v4915
        %v4948 = vadd.f32 %v536, %v4916
        %v4949 = vadd.f32 %v537, %v4917
        %v4950 = vadd.f32 %v538, %v4918
        %v4951 = vadd.f32 %v539, %v4919
        %v4952 = vadd.f32 %v540, %v4920
        %v4953 = vadd.f32 %v541, %v4921
        %v4954 = vadd.f32 %v542, %v4922
        %v4955 = vadd.f32 %v543, %v4923
        %v4956 = vadd.f32 %v544, %v4924
        %v4957 = vadd.f32 %v545, %v4925
        %v4958 = vadd.f32 %v546, %v4926
        %v4959 = vadd.f32 %v547, %v4927
        %v4960 = vadd.f32 %v548, %v4928
        %v4961 = vadd.f32 %v549, %v4929
        %v4962 = vadd.f32 %v550, %v4930
        %v4963 = vadd.f32 %v551, %v4931
        %v4964 = vadd.f32 %v552, %v4932
        %v4965 = vadd.f32 %v553, %v4933
        %v4966 = vadd.f32 %v554, %v4934
        %v4967 = vadd.f32 %v555, %v4935
        %v4968 = vadd.f32 %v556, %v4936
        %v4969 = vadd.f32 %v557, %v4937
        %v4970 = vadd.f32 %v558, %v4938
        %v4971 = vadd.f32 %v559, %v4939
        %v4972 = vadd.f32 %v560, %v4940
        %v4973 = vadd.f32 %v561, %v4941
        %v4974 = vmul.f32 %v4942, 0.5
        %v4975 = vmul.f32 %v4943, 0.5
        %v4976 = vmul.f32 %v4944, 0.5
        %v4977 = vmul.f32 %v4945, 0.5
        %v4978 = vmul.f32 %v4946, 0.5
        %v4979 = vmul.f32 %v4947, 0.5
        %v4980 = vmul.f32 %v4948, 0.5
        %v4981 = vmul.f32 %v4949, 0.5
        %v4982 = vmul.f32 %v4950, 0.5
        %v4983 = vmul.f32 %v4951, 0.5
        %v4984 = vmul.f32 %v4952, 0.5
        %v4985 = vmul.f32 %v4953, 0.5
        %v4986 = vmul.f32 %v4954, 0.5
        %v4987 = vmul.f32 %v4955, 0.5
        %v4988 = vmul.f32 %v4956, 0.5
        %v4989 = vmul.f32 %v4957, 0.5
        %v4990 = vmul.f32 %v4958, 0.5
        %v4991 = vmul.f32 %v4959, 0.5
        %v4992 = vmul.f32 %v4960, 0.5
        %v4993 = vmul.f32 %v4961, 0.5
        %v4994 = vmul.f32 %v4962, 0.5
        %v4995 = vmul.f32 %v4963, 0.5
        %v4996 = vmul.f32 %v4964, 0.5
        %v4997 = vmul.f32 %v4965, 0.5
        %v4998 = vmul.f32 %v4966, 0.5
        %v4999 = vmul.f32 %v4967, 0.5
        %v5000 = vmul.f32 %v4968, 0.5
        %v5001 = vmul.f32 %v4969, 0.5
        %v5002 = vmul.f32 %v4970, 0.5
        %v5003 = vmul.f32 %v4971, 0.5
        %v5004 = vmul.f32 %v4972, 0.5
        %v5005 = vmul.f32 %v4973, 0.5
        %v5006 = vmax.f32 %v4974, 0.0
        %v5007 = vmax.f32 %v4975, 0.0
        %v5008 = vmax.f32 %v4976, 0.0
        %v5009 = vmax.f32 %v4977, 0.0
        %v5010 = vmax.f32 %v4978, 0.0
        %v5011 = vmax.f32 %v4979, 0.0
        %v5012 = vmax.f32 %v4980, 0.0
        %v5013 = vmax.f32 %v4981, 0.0
        %v5014 = vmax.f32 %v4982, 0.0
        %v5015 = vmax.f32 %v4983, 0.0
        %v5016 = vmax.f32 %v4984, 0.0
        %v5017 = vmax.f32 %v4985, 0.0
        %v5018 = vmax.f32 %v4986, 0.0
        %v5019 = vmax.f32 %v4987, 0.0
        %v5020 = vmax.f32 %v4988, 0.0
        %v5021 = vmax.f32 %v4989, 0.0
        %v5022 = vmax.f32 %v4990, 0.0
        %v5023 = vmax.f32 %v4991, 0.0
        %v5024 = vmax.f32 %v4992, 0.0
        %v5025 = vmax.f32 %v4993, 0.0
        %v5026 = vmax.f32 %v4994, 0.0
        %v5027 = vmax.f32 %v4995, 0.0
        %v5028 = vmax.f32 %v4996, 0.0
        %v5029 = vmax.f32 %v4997, 0.0
        %v5030 = vmax.f32 %v4998, 0.0
        %v5031 = vmax.f32 %v4999, 0.0
        %v5032 = vmax.f32 %v5000, 0.0
        %v5033 = vmax.f32 %v5001, 0.0
        %v5034 = vmax.f32 %v5002, 0.0
        %v5035 = vmax.f32 %v5003, 0.0
        %v5036 = vmax.f32 %v5004, 0.0
        %v5037 = vmax.f32 %v5005, 0.0
        %5038 = vst [vmem:[%s485] sm:$0xff] %v5006
        %5039 = vst [vmem:[%s485 + $0x8] sm:$0xff] %v5007
        %5040 = vst [vmem:[%s485 + $0x10] sm:$0xff] %v5008
        %5041 = vst [vmem:[%s485 + $0x18] sm:$0xff] %v5009
        %5042 = vst [vmem:[%s485 + $0x20] sm:$0xff] %v5010
        %5043 = vst [vmem:[%s485 + $0x28] sm:$0xff] %v5011
        %5044 = vst [vmem:[%s485 + $0x30] sm:$0xff] %v5012
        %5045 = vst [vmem:[%s485 + $0x38] sm:$0xff] %v5013
        %5046 = vst [vmem:[%s485 + $0x40] sm:$0xff] %v5014
        %5047 = vst [vmem:[%s485 + $0x48] sm:$0xff] %v5015
        %5048 = vst [vmem:[%s485 + $0x50] sm:$0xff] %v5016
        %5049 = vst [vmem:[%s485 + $0x58] sm:$0xff] %v5017
        %5050 = vst [vmem:[%s485 + $0x60] sm:$0xff] %v5018
        %5051 = vst [vmem:[%s485 + $0x68] sm:$0xff] %v5019
        %5052 = vst [vmem:[%s485 + $0x70] sm:$0xff] %v5020
        %5053 = vst [vmem:[%s485 + $0x78] sm:$0xff] %v5021
        %5054 = vst [vmem:[%s485 + $0x80] sm:$0xff] %v5022
        %5055 = vst [vmem:[%s485 + $0x88] sm:$0xff] %v5023
        %5056 = vst [vmem:[%s485 + $0x90] sm:$0xff] %v5024
        %5057 = vst [vmem:[%s485 + $0x98] sm:$0xff] %v5025
        %5058 = vst [vmem:[%s485 + $0xa0] sm:$0xff] %v5026
        %5059 = vst [vmem:[%s485 + $0xa8] sm:$0xff] %v5027
        %5060 = vst [vmem:[%s485 + $0xb0] sm:$0xff] %v5028
        %5061 = vst [vmem:[%s485 + $0xb8] sm:$0xff] %v5029
        %5062 = vst [vmem:[%s485 + $0xc0] sm:$0xff] %v5030
        %5063 = vst [vmem:[%s485 + $0xc8] sm:$0xff] %v5031
        %5064 = vst [vmem:[%s485 + $0xd0] sm:$0xff] %v5032
        %5065 = vst [vmem:[%s485 + $0xd8] sm:$0xff] %v5033
        %5066 = vst [vmem:[%s485 + $0xe0] sm:$0xff] %v5034
        %5067 = vst [vmem:[%s485 + $0xe8] sm:$0xff] %v5035
        %5068 = vst [vmem:[%s485 + $0xf0] sm:$0xff] %v5036
        %5069 = vst [vmem:[%s485 + $0xf8] sm:$0xff] %v5037
        %v5070 = vadd.f32 %v562, %v4910
        %v5071 = vadd.f32 %v563, %v4911
        %v5072 = vadd.f32 %v564, %v4912
        %v5073 = vadd.f32 %v565, %v4913
        %v5074 = vadd.f32 %v566, %v4914
        %v5075 = vadd.f32 %v567, %v4915
        %v5076 = vadd.f32 %v568, %v4916
        %v5077 = vadd.f32 %v569, %v4917
        %v5078 = vadd.f32 %v570, %v4918
        %v5079 = vadd.f32 %v571, %v4919
        %v5080 = vadd.f32 %v572, %v4920
        %v5081 = vadd.f32 %v573, %v4921
        %v5082 = vadd.f32 %v574, %v4922
        %v5083 = vadd.f32 %v575, %v4923
        %v5084 = vadd.f32 %v576, %v4924
        %v5085 = vadd.f32 %v577, %v4925
        %v5086 = vadd.f32 %v578, %v4926
        %v5087 = vadd.f32 %v579, %v4927
        %v5088 = vadd.f32 %v580, %v4928
        %v5089 = vadd.f32 %v581, %v4929
        %v5090 = vadd.f32 %v582, %v4930
        %v5091 = vadd.f32 %v583, %v4931
        %v5092 = vadd.f32 %v584, %v4932
        %v5093 = vadd.f32 %v585, %v4933
        %v5094 = vadd.f32 %v586, %v4934
        %v5095 = vadd.f32 %v587, %v4935
        %v5096 = vadd.f32 %v588, %v4936
        %v5097 = vadd.f32 %v589, %v4937
        %v5098 = vadd.f32 %v590, %v4938
        %v5099 = vadd.f32 %v591, %v4939
        %v5100 = vadd.f32 %v592, %v4940
        %v5101 = vadd.f32 %v593, %v4941
        %v5102 = vmul.f32 %v5070, 0.5
        %v5103 = vmul.f32 %v5071, 0.5
        %v5104 = vmul.f32 %v5072, 0.5
        %v5105 = vmul.f32 %v5073, 0.5
        %v5106 = vmul.f32 %v5074, 0.5
        %v5107 = vmul.f32 %v5075, 0.5
        %v5108 = vmul.f32 %v5076, 0.5
        %v5109 = vmul.f32 %v5077, 0.5
        %v5110 = vmul.f32 %v5078, 0.5
        %v5111 = vmul.f32 %v5079, 0.5
        %v5112 = vmul.f32 %v5080, 0.5
        %v5113 = vmul.f32 %v5081, 0.5
        %v5114 = vmul.f32 %v5082, 0.5
        %v5115 = vmul.f32 %v5083, 0.5
        %v5116 = vmul.f32 %v5084, 0.5
        %v5117 = vmul.f32 %v5085, 0.5
        %v5118 = vmul.f32 %v5086, 0.5
        %v5119 = vmul.f32 %v5087, 0.5
        %v5120 = vmul.f32 %v5088, 0.5
        %v5121 = vmul.f32 %v5089, 0.5
        %v5122 = vmul.f32 %v5090, 0.5
        %v5123 = vmul.f32 %v5091, 0.5
        %v5124 = vmul.f32 %v5092, 0.5
        %v5125 = vmul.f32 %v5093, 0.5
        %v5126 = vmul.f32 %v5094, 0.5
        %v5127 = vmul.f32 %v5095, 0.5
        %v5128 = vmul.f32 %v5096, 0.5
        %v5129 = vmul.f32 %v5097, 0.5
        %v5130 = vmul.f32 %v5098, 0.5
        %v5131 = vmul.f32 %v5099, 0.5
        %v5132 = vmul.f32 %v5100, 0.5
        %v5133 = vmul.f32 %v5101, 0.5
        %v5134 = vmax.f32 %v5102, 0.0
        %v5135 = vmax.f32 %v5103, 0.0
        %v5136 = vmax.f32 %v5104, 0.0
        %v5137 = vmax.f32 %v5105, 0.0
        %v5138 = vmax.f32 %v5106, 0.0
        %v5139 = vmax.f32 %v5107, 0.0
        %v5140 = vmax.f32 %v5108, 0.0
        %v5141 = vmax.f32 %v5109, 0.0
        %v5142 = vmax.f32 %v5110, 0.0
        %v5143 = vmax.f32 %v5111, 0.0
        %v5144 = vmax.f32 %v5112, 0.0
        %v5145 = vmax.f32 %v5113, 0.0
        %v5146 = vmax.f32 %v5114, 0.0
        %v5147 = vmax.f32 %v5115, 0.0
        %v5148 = vmax.f32 %v5116, 0.0
        %v5149 = vmax.f32 %v5117, 0.0
        %v5150 = vmax.f32 %v5118, 0.0
        %v5151 = vmax.f32 %v5119, 0.0
        %v5152 = vmax.f32 %v5120, 0.0
        %v5153 = vmax.f32 %v5121, 0.0
        %v5154 = vmax.f32 %v5122, 0.0
        %v5155 = vmax.f32 %v5123, 0.0
        %v5156 = vmax.f32 %v5124, 0.0
        %v5157 = vmax.f32 %v5125, 0.0
        %v5158 = vmax.f32 %v5126, 0.0
        %v5159 = vmax.f32 %v5127, 0.0
        %v5160 = vmax.f32 %v5128, 0.0
        %v5161 = vmax.f32 %v5129, 0.0
        %v5162 = vmax.f32 %v5130, 0.0
        %v5163 = vmax.f32 %v5131, 0.0
        %v5164 = vmax.f32 %v5132, 0.0
        %v5165 = vmax.f32 %v5133, 0.0
        %s5166 = scalar_lea.vmem %s485, 256 [#allocation4]
        %5167 = vst [vmem:[%s5166] sm:$0xff] %v5134
        %5168 = vst [vmem:[%s5166 + $0x8] sm:$0xff] %v5135
        %5169 = vst [vmem:[%s5166 + $0x10] sm:$0xff] %v5136
        %5170 = vst [vmem:[%s5166 + $0x18] sm:$0xff] %v5137
        %5171 = vst [vmem:[%s5166 + $0x20] sm:$0xff] %v5138
        %5172 = vst [vmem:[%s5166 + $0x28] sm:$0xff] %v5139
        %5173 = vst [vmem:[%s5166 + $0x30] sm:$0xff] %v5140
        %5174 = vst [vmem:[%s5166 + $0x38] sm:$0xff] %v5141
        %5175 = vst [vmem:[%s5166 + $0x40] sm:$0xff] %v5142
        %5176 = vst [vmem:[%s5166 + $0x48] sm:$0xff] %v5143
        %5177 = vst [vmem:[%s5166 + $0x50] sm:$0xff] %v5144
        %5178 = vst [vmem:[%s5166 + $0x58] sm:$0xff] %v5145
        %5179 = vst [vmem:[%s5166 + $0x60] sm:$0xff] %v5146
        %5180 = vst [vmem:[%s5166 + $0x68] sm:$0xff] %v5147
        %5181 = vst [vmem:[%s5166 + $0x70] sm:$0xff] %v5148
        %5182 = vst [vmem:[%s5166 + $0x78] sm:$0xff] %v5149
        %5183 = vst [vmem:[%s5166 + $0x80] sm:$0xff] %v5150
        %5184 = vst [vmem:[%s5166 + $0x88] sm:$0xff] %v5151
        %5185 = vst [vmem:[%s5166 + $0x90] sm:$0xff] %v5152
        %5186 = vst [vmem:[%s5166 + $0x98] sm:$0xff] %v5153
        %5187 = vst [vmem:[%s5166 + $0xa0] sm:$0xff] %v5154
        %5188 = vst [vmem:[%s5166 + $0xa8] sm:$0xff] %v5155
        %5189 = vst [vmem:[%s5166 + $0xb0] sm:$0xff] %v5156
        %5190 = vst [vmem:[%s5166 + $0xb8] sm:$0xff] %v5157
        %5191 = vst [vmem:[%s5166 + $0xc0] sm:$0xff] %v5158
        %5192 = vst [vmem:[%s5166 + $0xc8] sm:$0xff] %v5159
        %5193 = vst [vmem:[%s5166 + $0xd0] sm:$0xff] %v5160
        %5194 = vst [vmem:[%s5166 + $0xd8] sm:$0xff] %v5161
        %5195 = vst [vmem:[%s5166 + $0xe0] sm:$0xff] %v5162
        %5196 = vst [vmem:[%s5166 + $0xe8] sm:$0xff] %v5163
        %5197 = vst [vmem:[%s5166 + $0xf0] sm:$0xff] %v5164
        %5198 = vst [vmem:[%s5166 + $0xf8] sm:$0xff] %v5165
        %s5199 = sand.u32 %s338, 1
        %s5200 = sand.u32 %s338, 1
        %s5201 = smul.addr %s5200, 512
        %s5202 = scalar_lea.vmem [#allocation4], %s5201
        // Predicated region
        $region81: #{fgse_forward.1} parent=75 // pred_check
          %p5203 = pneg %p348
        $region82: #{fgse_forward.1} parent=75 // pred_check_branch
          %5205 = sbr.rel (%p5203) target = $region84
        $region83: #{fgse_forward.1} parent=75 // pred_region
          %s5206 = smul.addr %s26, 32
          %s5207 = smul.addr %s5206, 8
          %s5208 = scalar_lea.vmem %s14, %s5207
          // Predicated region
          $region85: #{fgse_forward.1} parent=83 // pred_check
            _
          $region86: #{fgse_forward.1} parent=83 // pred_check_branch
            %5210 = sbr.rel (0) target = $region88
          $region87: #{fgse_forward.1} parent=83 // pred_region
            // Predicated region
            $region89: #{fgse_forward.1} parent=87 // pred_check
              _
            $region90: #{fgse_forward.1} parent=87 // pred_check_branch
              %5212 = sbr.rel (0) target = $region92
            $region91: #{fgse_forward.1} parent=87 // pred_region
              loop: start=0, step=1, limit=1
              $region93: #{fgse_forward.1} parent=91 // loop_pre_header
                _
              $region94: #{fgse_forward.1} parent=91 // loop_header
                %s5214 = sphi 0, %s5218
                %p5215 = scmp.ge.s32.totalorder %s5214, 1
                %s5219 = sphi %s5202, %s5202
                %s5220 = sphi %s5208, %s5208
              $region95: #{fgse_forward.1} parent=91 // loop_header_branch
                %5217 = sbr.rel (%p5215) target = $region99
              $region96: #{fgse_forward.1} parent=91 // loop_body
                %v5221 = vld [vmem:[%s5219] sm:$0xff]
                %5222 = vst [vmem:[%s5220] sm:$0xff] %v5221
                %v5223 = vld [vmem:[%s5219 + $0x8] sm:$0xff]
                %5224 = vst [vmem:[%s5220 + $0x8] sm:$0xff] %v5223
                %v5225 = vld [vmem:[%s5219 + $0x10] sm:$0xff]
                %5226 = vst [vmem:[%s5220 + $0x10] sm:$0xff] %v5225
                %v5227 = vld [vmem:[%s5219 + $0x18] sm:$0xff]
                %5228 = vst [vmem:[%s5220 + $0x18] sm:$0xff] %v5227
                %v5229 = vld [vmem:[%s5219 + $0x20] sm:$0xff]
                %5230 = vst [vmem:[%s5220 + $0x20] sm:$0xff] %v5229
                %v5231 = vld [vmem:[%s5219 + $0x28] sm:$0xff]
                %5232 = vst [vmem:[%s5220 + $0x28] sm:$0xff] %v5231
                %v5233 = vld [vmem:[%s5219 + $0x30] sm:$0xff]
                %5234 = vst [vmem:[%s5220 + $0x30] sm:$0xff] %v5233
                %v5235 = vld [vmem:[%s5219 + $0x38] sm:$0xff]
                %5236 = vst [vmem:[%s5220 + $0x38] sm:$0xff] %v5235
                %v5237 = vld [vmem:[%s5219 + $0x40] sm:$0xff]
                %5238 = vst [vmem:[%s5220 + $0x40] sm:$0xff] %v5237
                %v5239 = vld [vmem:[%s5219 + $0x48] sm:$0xff]
                %5240 = vst [vmem:[%s5220 + $0x48] sm:$0xff] %v5239
                %v5241 = vld [vmem:[%s5219 + $0x50] sm:$0xff]
                %5242 = vst [vmem:[%s5220 + $0x50] sm:$0xff] %v5241
                %v5243 = vld [vmem:[%s5219 + $0x58] sm:$0xff]
                %5244 = vst [vmem:[%s5220 + $0x58] sm:$0xff] %v5243
                %v5245 = vld [vmem:[%s5219 + $0x60] sm:$0xff]
                %5246 = vst [vmem:[%s5220 + $0x60] sm:$0xff] %v5245
                %v5247 = vld [vmem:[%s5219 + $0x68] sm:$0xff]
                %5248 = vst [vmem:[%s5220 + $0x68] sm:$0xff] %v5247
                %v5249 = vld [vmem:[%s5219 + $0x70] sm:$0xff]
                %5250 = vst [vmem:[%s5220 + $0x70] sm:$0xff] %v5249
                %v5251 = vld [vmem:[%s5219 + $0x78] sm:$0xff]
                %5252 = vst [vmem:[%s5220 + $0x78] sm:$0xff] %v5251
                %v5253 = vld [vmem:[%s5219 + $0x80] sm:$0xff]
                %5254 = vst [vmem:[%s5220 + $0x80] sm:$0xff] %v5253
                %v5255 = vld [vmem:[%s5219 + $0x88] sm:$0xff]
                %5256 = vst [vmem:[%s5220 + $0x88] sm:$0xff] %v5255
                %v5257 = vld [vmem:[%s5219 + $0x90] sm:$0xff]
                %5258 = vst [vmem:[%s5220 + $0x90] sm:$0xff] %v5257
                %v5259 = vld [vmem:[%s5219 + $0x98] sm:$0xff]
                %5260 = vst [vmem:[%s5220 + $0x98] sm:$0xff] %v5259
                %v5261 = vld [vmem:[%s5219 + $0xa0] sm:$0xff]
                %5262 = vst [vmem:[%s5220 + $0xa0] sm:$0xff] %v5261
                %v5263 = vld [vmem:[%s5219 + $0xa8] sm:$0xff]
                %5264 = vst [vmem:[%s5220 + $0xa8] sm:$0xff] %v5263
                %v5265 = vld [vmem:[%s5219 + $0xb0] sm:$0xff]
                %5266 = vst [vmem:[%s5220 + $0xb0] sm:$0xff] %v5265
                %v5267 = vld [vmem:[%s5219 + $0xb8] sm:$0xff]
                %5268 = vst [vmem:[%s5220 + $0xb8] sm:$0xff] %v5267
                %v5269 = vld [vmem:[%s5219 + $0xc0] sm:$0xff]
                %5270 = vst [vmem:[%s5220 + $0xc0] sm:$0xff] %v5269
                %v5271 = vld [vmem:[%s5219 + $0xc8] sm:$0xff]
                %5272 = vst [vmem:[%s5220 + $0xc8] sm:$0xff] %v5271
                %v5273 = vld [vmem:[%s5219 + $0xd0] sm:$0xff]
                %5274 = vst [vmem:[%s5220 + $0xd0] sm:$0xff] %v5273
                %v5275 = vld [vmem:[%s5219 + $0xd8] sm:$0xff]
                %5276 = vst [vmem:[%s5220 + $0xd8] sm:$0xff] %v5275
                %v5277 = vld [vmem:[%s5219 + $0xe0] sm:$0xff]
                %5278 = vst [vmem:[%s5220 + $0xe0] sm:$0xff] %v5277
                %v5279 = vld [vmem:[%s5219 + $0xe8] sm:$0xff]
                %5280 = vst [vmem:[%s5220 + $0xe8] sm:$0xff] %v5279
                %v5281 = vld [vmem:[%s5219 + $0xf0] sm:$0xff]
                %5282 = vst [vmem:[%s5220 + $0xf0] sm:$0xff] %v5281
                %v5283 = vld [vmem:[%s5219 + $0xf8] sm:$0xff]
                %5284 = vst [vmem:[%s5220 + $0xf8] sm:$0xff] %v5283
                %v5285 = vld [vmem:[%s5219 + $0x100] sm:$0xff]
                %5286 = vst [vmem:[%s5220 + $0x200] sm:$0xff] %v5285
                %v5287 = vld [vmem:[%s5219 + $0x108] sm:$0xff]
                %5288 = vst [vmem:[%s5220 + $0x208] sm:$0xff] %v5287
                %v5289 = vld [vmem:[%s5219 + $0x110] sm:$0xff]
                %5290 = vst [vmem:[%s5220 + $0x210] sm:$0xff] %v5289
                %v5291 = vld [vmem:[%s5219 + $0x118] sm:$0xff]
                %5292 = vst [vmem:[%s5220 + $0x218] sm:$0xff] %v5291
                %v5293 = vld [vmem:[%s5219 + $0x120] sm:$0xff]
                %5294 = vst [vmem:[%s5220 + $0x220] sm:$0xff] %v5293
                %v5295 = vld [vmem:[%s5219 + $0x128] sm:$0xff]
                %5296 = vst [vmem:[%s5220 + $0x228] sm:$0xff] %v5295
                %v5297 = vld [vmem:[%s5219 + $0x130] sm:$0xff]
                %5298 = vst [vmem:[%s5220 + $0x230] sm:$0xff] %v5297
                %v5299 = vld [vmem:[%s5219 + $0x138] sm:$0xff]
                %5300 = vst [vmem:[%s5220 + $0x238] sm:$0xff] %v5299
                %v5301 = vld [vmem:[%s5219 + $0x140] sm:$0xff]
                %5302 = vst [vmem:[%s5220 + $0x240] sm:$0xff] %v5301
                %v5303 = vld [vmem:[%s5219 + $0x148] sm:$0xff]
                %5304 = vst [vmem:[%s5220 + $0x248] sm:$0xff] %v5303
                %v5305 = vld [vmem:[%s5219 + $0x150] sm:$0xff]
                %5306 = vst [vmem:[%s5220 + $0x250] sm:$0xff] %v5305
                %v5307 = vld [vmem:[%s5219 + $0x158] sm:$0xff]
                %5308 = vst [vmem:[%s5220 + $0x258] sm:$0xff] %v5307
                %v5309 = vld [vmem:[%s5219 + $0x160] sm:$0xff]
                %5310 = vst [vmem:[%s5220 + $0x260] sm:$0xff] %v5309
                %v5311 = vld [vmem:[%s5219 + $0x168] sm:$0xff]
                %5312 = vst [vmem:[%s5220 + $0x268] sm:$0xff] %v5311
                %v5313 = vld [vmem:[%s5219 + $0x170] sm:$0xff]
                %5314 = vst [vmem:[%s5220 + $0x270] sm:$0xff] %v5313
                %v5315 = vld [vmem:[%s5219 + $0x178] sm:$0xff]
                %5316 = vst [vmem:[%s5220 + $0x278] sm:$0xff] %v5315
                %v5317 = vld [vmem:[%s5219 + $0x180] sm:$0xff]
                %5318 = vst [vmem:[%s5220 + $0x280] sm:$0xff] %v5317
                %v5319 = vld [vmem:[%s5219 + $0x188] sm:$0xff]
                %5320 = vst [vmem:[%s5220 + $0x288] sm:$0xff] %v5319
                %v5321 = vld [vmem:[%s5219 + $0x190] sm:$0xff]
                %5322 = vst [vmem:[%s5220 + $0x290] sm:$0xff] %v5321
                %v5323 = vld [vmem:[%s5219 + $0x198] sm:$0xff]
                %5324 = vst [vmem:[%s5220 + $0x298] sm:$0xff] %v5323
                %v5325 = vld [vmem:[%s5219 + $0x1a0] sm:$0xff]
                %5326 = vst [vmem:[%s5220 + $0x2a0] sm:$0xff] %v5325
                %v5327 = vld [vmem:[%s5219 + $0x1a8] sm:$0xff]
                %5328 = vst [vmem:[%s5220 + $0x2a8] sm:$0xff] %v5327
                %v5329 = vld [vmem:[%s5219 + $0x1b0] sm:$0xff]
                %5330 = vst [vmem:[%s5220 + $0x2b0] sm:$0xff] %v5329
                %v5331 = vld [vmem:[%s5219 + $0x1b8] sm:$0xff]
                %5332 = vst [vmem:[%s5220 + $0x2b8] sm:$0xff] %v5331
                %v5333 = vld [vmem:[%s5219 + $0x1c0] sm:$0xff]
                %5334 = vst [vmem:[%s5220 + $0x2c0] sm:$0xff] %v5333
                %v5335 = vld [vmem:[%s5219 + $0x1c8] sm:$0xff]
                %5336 = vst [vmem:[%s5220 + $0x2c8] sm:$0xff] %v5335
                %v5337 = vld [vmem:[%s5219 + $0x1d0] sm:$0xff]
                %5338 = vst [vmem:[%s5220 + $0x2d0] sm:$0xff] %v5337
                %v5339 = vld [vmem:[%s5219 + $0x1d8] sm:$0xff]
                %5340 = vst [vmem:[%s5220 + $0x2d8] sm:$0xff] %v5339
                %v5341 = vld [vmem:[%s5219 + $0x1e0] sm:$0xff]
                %5342 = vst [vmem:[%s5220 + $0x2e0] sm:$0xff] %v5341
                %v5343 = vld [vmem:[%s5219 + $0x1e8] sm:$0xff]
                %5344 = vst [vmem:[%s5220 + $0x2e8] sm:$0xff] %v5343
                %v5345 = vld [vmem:[%s5219 + $0x1f0] sm:$0xff]
                %5346 = vst [vmem:[%s5220 + $0x2f0] sm:$0xff] %v5345
                %v5347 = vld [vmem:[%s5219 + $0x1f8] sm:$0xff]
                %5348 = vst [vmem:[%s5220 + $0x2f8] sm:$0xff] %v5347
              $region97: #{fgse_forward.1} parent=91 // loop_footer
                %s5218 = sadd.s32 1, %s5214
              $region98: #{fgse_forward.1} parent=91 // loop_footer_branch
                %5213 = sbr.rel target = $region94
              $region99: #{fgse_forward.1} parent=91 // loop_exit
                _
            $region92: #{fgse_forward.1} parent=87 // pred_fallthru
              _
            // Predicated region
            $region100: #{fgse_forward.1} parent=87 // pred_check
              _
            $region101: #{fgse_forward.1} parent=87 // pred_check_branch
              %5350 = sbr.rel target = $region103
            $region102: #{fgse_forward.1} parent=87 // pred_region
              _
            $region103: #{fgse_forward.1} parent=87 // pred_fallthru
              _
          $region88: #{fgse_forward.1} parent=83 // pred_fallthru
            _
          %5351 = vnop
        $region84: #{fgse_forward.1} parent=75 // pred_fallthru
          _
      $region76: #{fgse_forward.1} parent=5 // pred_fallthru
        _
      %p5352 = scmp.le.s32.totalorder 2, %s21
      // Predicated region
      $region104: #{fgse_forward.1} parent=5 // pred_check
        %p5353 = pneg %p5352
      $region105: #{fgse_forward.1} parent=5 // pred_check_branch
        %5355 = sbr.rel (%p5353) target = $region107
      $region106: #{fgse_forward.1} parent=5 // pred_region
        %s5356 = ssub.s32 %s21, 2
        // Predicated region
        $region108: #{fgse_forward.1} parent=106 // pred_check
          %p5357 = pneg %p354
        $region109: #{fgse_forward.1} parent=106 // pred_check_branch
          %5359 = sbr.rel (%p5357) target = $region111
        $region110: #{fgse_forward.1} parent=106 // pred_region
          %s5360 = sand.u32 %s339, 1
          %s5361 = sand.u32 %s339, 1
          %s5362 = smul.addr %s5361, 512
          %s5363 = scalar_lea.vmem [#allocation4], %s5362
        $region111: #{fgse_forward.1} parent=106 // pred_fallthru
          _
      $region107: #{fgse_forward.1} parent=5 // pred_fallthru
        _
    $region6: #{fgse_forward.1} parent=1 // loop_footer
      %s25 = sadd.s32 1, %s21
    $region7: #{fgse_forward.1} parent=1 // loop_footer_branch
      %20 = sbr.rel target = $region3
    $region8: #{fgse_forward.1} parent=1 // loop_exit
      _
    %5364 = vsyncpa [#allocation3], 1
    %s5365 = scalar_lea.sflag [#allocation3], 1
    %5366 = vsyncpa %s5365, 1

</llo_original>
